<compile_context>
chip_gen: v5e
topology: v5e:2x2
jax: 0.10.0
libtpu: 0.0.40
codegen_flags: <defaults>
</compile_context>

<pallas_src>
import functools

import jax
import jax.numpy as jnp
from jax import lax
from jax.experimental import pallas as pl
from jax.experimental.pallas import tpu as pltpu

NUM_LABELS = 30


# -----------------------------------------------------------------------------
# Kernel 1: forward LSTM recurrence over one (batch block, time chunk).
# -----------------------------------------------------------------------------
def _lstm_recurrence_kernel(gates_ref, whh_ref, out_ref, h_ref, c_ref):
    """gates_ref: (4, tS, tB, H) f32  precomputed x @ W_ih + b (per-gate, time-major)
       whh_ref:   (H, 4H) bf16 fused, or (4, H, H) bf16 per-gate (toy H < 128)
       out_ref:   (tB, H) f32  h_fwd output block
       h_ref/c_ref: (tB, H) f32 scratch carries across time chunks.
    """
    chunk = pl.program_id(1)
    _, tS, _, H = gates_ref.shape
    fused = len(whh_ref.shape) == 2

    @pl.when(chunk == 0)
    def _init():
        h_ref[...] = jnp.zeros_like(h_ref)
        c_ref[...] = jnp.zeros_like(c_ref)

    # Hoist recurrent-weight loads out of the serial loop.
    if fused:
        whh = whh_ref[...]                       # (H, 4H) bf16
    else:
        whh_i = whh_ref[0]
        whh_f = whh_ref[1]
        whh_g = whh_ref[2]
        whh_o = whh_ref[3]

    def step(t, carry):
        h, c = carry
        hb = h.astype(jnp.bfloat16)              # single bf16 pack per step
        if fused:
            # One (tB,H)x(H,4H) MXU dot; gate slices are 128-aligned (H%128==0).
            pre = jnp.dot(hb, whh, preferred_element_type=jnp.float32)
            pre_i = gates_ref[0, t] + pre[:, 0 * H:1 * H]
            pre_f = gates_ref[1, t] + pre[:, 1 * H:2 * H]
            pre_g = gates_ref[2, t] + pre[:, 2 * H:3 * H]
            pre_o = gates_ref[3, t] + pre[:, 3 * H:4 * H]
        else:
            pre_i = gates_ref[0, t] + jnp.dot(hb, whh_i, preferred_element_type=jnp.float32)
            pre_f = gates_ref[1, t] + jnp.dot(hb, whh_f, preferred_element_type=jnp.float32)
            pre_g = gates_ref[2, t] + jnp.dot(hb, whh_g, preferred_element_type=jnp.float32)
            pre_o = gates_ref[3, t] + jnp.dot(hb, whh_o, preferred_element_type=jnp.float32)
        i_g = jax.nn.sigmoid(pre_i)
        f_g = jax.nn.sigmoid(pre_f)
        g_g = jnp.tanh(pre_g)
        o_g = jax.nn.sigmoid(pre_o)
        c_new = f_g * c + i_g * g_g
        h_new = o_g * jnp.tanh(c_new)
        return h_new, c_new

    h = h_ref[...]
    c = c_ref[...]
    if tS <= 32:
        # Short chunk: full static unroll (max scheduler visibility).
        for t in range(tS):
            h, c = step(t, (h, c))
    else:
        # Long chunk: partial unroll bounds code size / vreg pressure.
        h, c = lax.fori_loop(0, tS, step, (h, c), unroll=8)

    h_ref[...] = h
    c_ref[...] = c
    out_ref[...] = h                             # resident block; HBM writeback at end


# -----------------------------------------------------------------------------
# Kernel 2: reverse-direction one-step + Dropout(identity) + Linear(2H -> 30).
# -----------------------------------------------------------------------------
def _reverse_step_and_linear_kernel(h_fwd_ref, x_last_ref, wih_b_ref, b_b_ref,
                                    wl_f_ref, wl_b_ref, bl_ref, out_ref):
    """lstm_output[:, -1, H:2H] is the reverse LSTM's FIRST step from a zero
    initial state, so the h_prev @ W_hh_b term vanishes.  nn.Dropout(0.2) is the
    identity in eval mode.  Linear(2H,30) is done without a lane concat."""
    H = h_fwd_ref.shape[1]
    xb = x_last_ref[...].astype(jnp.bfloat16)
    gb = jnp.dot(xb, wih_b_ref[...], preferred_element_type=jnp.float32) + b_b_ref[...]
    i_b = jax.nn.sigmoid(gb[:, 0 * H:1 * H])
    g_b = jnp.tanh(gb[:, 2 * H:3 * H])
    o_b = jax.nn.sigmoid(gb[:, 3 * H:4 * H])
    h_bwd = o_b * jnp.tanh(i_b * g_b)            # f_b * c_prev == 0

    logits = (jnp.dot(h_fwd_ref[...].astype(jnp.bfloat16), wl_f_ref[...],
                      preferred_element_type=jnp.float32)
              + jnp.dot(h_bwd.astype(jnp.bfloat16), wl_b_ref[...],
                        preferred_element_type=jnp.float32)
              + bl_ref[...])
    out_ref[...] = logits.astype(out_ref.dtype)


# -----------------------------------------------------------------------------
# Sizing helpers (trace-time Python).
# -----------------------------------------------------------------------------
def _vmem_capacity_bytes():
    """Physical VMEM per core (64 MiB on v7x, 128 MiB on v5e/v6e)."""
    try:
        return int(pltpu.get_tpu_info().vmem_capacity_bytes)
    except Exception:
        return 64 * 1024 * 1024          # conservative fallback


def _is_v7x():
    try:
        return "v7" in jax.devices()[0].device_kind.lower()
    except Exception:
        return False


def _pick_time_chunk(S, tB, H, vmem_cap):
    """Largest divisor-of-S chunk whose double-buffered gates block plus
    resident weights/carries fits in ~half of VMEM.  Capped at 32 on 64 MiB
    parts (v7x), 128 on 128 MiB parts (v5e/v6e)."""
    max_ts = 32 if vmem_cap <= 64 * 1024 * 1024 else 128
    budget = vmem_cap // 2
    fixed = 4 * H * H * 2 + 16 * tB * H * 4           # W_hh + carries/temps
    for cand in (128, 64, 32, 16, 8, 4, 2, 1):
        if cand > max_ts or S % cand:
            continue
        streamed = 2 * (4 * cand * tB * H * 4)        # double-buffered f32 gates
        if fixed + streamed <= budget:
            return cand
    return 1


def _vmem_limit_bytes(tS, tB, H, vmem_cap):
    """Explicit resident estimate + headroom; never request full physical VMEM."""
    f32, bf16 = 4, 2
    est = (2 * 4 * tS * tB * H * f32     # double-buffered streamed gates block
           + 2 * 4 * H * H * bf16        # recurrent weights (2x if not single-buffered)
           + 2 * tB * H * f32            # h_fwd output block
           + 2 * tB * H * f32            # h / c scratch carries
           + 8 * tB * H * f32)           # live per-step gate pre-activations
    limit = max(32 * 1024 * 1024, 2 * est)
    return int(min(limit, int(0.85 * vmem_cap)))


# -----------------------------------------------------------------------------
# Wrapper: forward pass of the classifier head.
# -----------------------------------------------------------------------------
def lstm_classifier_head(hidden_states, params, *, single_buffer_weights=True):
    """hidden_states: (B, S, H) float32 -- stand-in for model_output[0]."""
    B, S, H = hidden_states.shape

    # Batch padding / splitting.  On v7x (2 TCs) a batch >= 16 is split into
    # two parallel blocks, one per core; on 1-TC chips keep a single block.
    if B > 8 and _is_v7x():
        B_pad = -(-B // 16) * 16
        n_b, tB = 2, B_pad // 2
    else:
        B_pad = max(8, -(-B // 8) * 8)
        n_b, tB = 1, B_pad

    x = hidden_states
    if B_pad != B:
        x = jnp.pad(x, ((0, B_pad - B), (0, 0), (0, 0)))

    vmem_cap = _vmem_capacity_bytes()
    tS = _pick_time_chunk(S, tB, H, vmem_cap)
    n_chunks = S // tS
    fused = (H % 128 == 0)

    # ---- input projection for the WHOLE sequence, off the serial path -------
    # Fully parallel MXU matmul (XLA), bias folded in, written directly in the
    # per-gate / time-major layout streamed by the recurrence kernel.
    # PyTorch LSTM gate order: i, f, g, o.
    wih_r = params["wih_f"].reshape(H, 4, H).astype(jnp.bfloat16)
    gates = jnp.einsum("bsh,hgf->gsbf", x.astype(jnp.bfloat16), wih_r,
                       preferred_element_type=jnp.float32)
    gates = gates + params["b_f"].reshape(4, H)[:, None, None, :]   # (4,S,B_pad,H)

    # ---- recurrent weights: fused (H,4H) at production H, per-gate for toy H
    wmode = dict(pipeline_mode=pl.Buffered(1)) if single_buffer_weights else {}
    if fused:
        whh = params["whh_f"].astype(jnp.bfloat16)                          # (H,4H)
        whh_spec = pl.BlockSpec((H, 4 * H), lambda b, t: (0, 0), **wmode)
    else:
        whh = jnp.stack([params["whh_f"][:, k * H:(k + 1) * H] for k in range(4)],
                        axis=0).astype(jnp.bfloat16)                        # (4,H,H)
        whh_spec = pl.BlockSpec((4, H, H), lambda b, t: (0, 0, 0), **wmode)

    grid_spec = pltpu.PrefetchScalarGridSpec(
        num_scalar_prefetch=0,
        grid=(n_b, n_chunks),
        in_specs=[
            pl.BlockSpec((4, tS, tB, H), lambda b, t: (0, t, b, 0)),  # gates chunk
            whh_spec,                                                 # W_hh (const)
        ],
        out_specs=pl.BlockSpec((tB, H), lambda b, t: (b, 0)),         # h_fwd
        scratch_shapes=[
            pltpu.VMEM((tB, H), jnp.float32),   # h carry across time chunks
            pltpu.VMEM((tB, H), jnp.float32),   # c carry across time chunks
        ],
    )

    h_fwd = pl.pallas_call(
        _lstm_recurrence_kernel,
        out_shape=jax.ShapeDtypeStruct((B_pad, H), jnp.float32),
        grid_spec=grid_spec,
        compiler_params=pltpu.CompilerParams(
            dimension_semantics=("parallel", "arbitrary"),
            vmem_limit_bytes=_vmem_limit_bytes(tS, tB, H, vmem_cap)),
    )(gates, whh)

    # ---- reverse one-step + Dropout(identity, eval) + Linear(2H, 30) --------
    logits = pl.pallas_call(
        _reverse_step_and_linear_kernel,
        out_shape=jax.ShapeDtypeStruct((B_pad, NUM_LABELS), jnp.float32),
    )(h_fwd, x[:, S - 1, :],
      params["wih_b"].astype(jnp.bfloat16), params["b_b"],
      params["wl"][:H].astype(jnp.bfloat16), params["wl"][H:].astype(jnp.bfloat16),
      params["bl"])

    return logits[:B]


# -----------------------------------------------------------------------------
# Parameter construction (PyTorch-compatible shapes, stored transposed).
# -----------------------------------------------------------------------------
def make_params(key, hidden_size):
    H = hidden_size
    k = 1.0 / jnp.sqrt(jnp.float32(H))   # PyTorch LSTM default init range
    ks = jax.random.split(key, 9)

    def u(k_, shape):
        return jax.random.uniform(k_, shape, jnp.float32, -k, k)

    return {
        # LSTM weights stored transposed: (in_features, 4H); gate order i,f,g,o.
        "wih_f": u(ks[0], (H, 4 * H)),
        "whh_f": u(ks[1], (H, 4 * H)),
        "b_f":   u(ks[2], (1, 4 * H)),   # bias_ih + bias_hh folded together
        "wih_b": u(ks[3], (H, 4 * H)),
        "whh_b": u(ks[4], (H, 4 * H)),   # unused in the output (zero init state)
        "b_b":   u(ks[5], (1, 4 * H)),
        # Linear: init_weights() -> normal(0, 0.5) weight, zero bias.
        "wl": 0.5 * jax.random.normal(ks[6], (2 * H, NUM_LABELS), jnp.float32),
        "bl": jnp.zeros((1, NUM_LABELS), jnp.float32),
    }


def reference_head(hidden_states, params):
    """Pure-JAX f32 reference of the same forward pass (for validation)."""
    B, S, H = hidden_states.shape

    def cell(x_t, h, c, wih, whh, b):
        gates = x_t @ wih + h @ whh + b
        i = jax.nn.sigmoid(gates[:, 0 * H:1 * H])
        f = jax.nn.sigmoid(gates[:, 1 * H:2 * H])
        g = jnp.tanh(gates[:, 2 * H:3 * H])
        o = jax.nn.sigmoid(gates[:, 3 * H:4 * H])
        c = f * c + i * g
        h = o * jnp.tanh(c)
        return h, c

    h = jnp.zeros((B, H)); c = jnp.zeros((B, H))
    for t in range(S):
        h, c = cell(hidden_states[:, t, :], h, c,
                    params["wih_f"], params["whh_f"], params["b_f"])
    h_fwd = h

    h = jnp.zeros((B, H)); c = jnp.zeros((B, H))
    # reverse direction output at position S-1 == one step on x[:, S-1, :]
    h_bwd, _ = cell(hidden_states[:, S - 1, :], h, c,
                    params["wih_b"], params["whh_b"], params["b_b"])

    last = jnp.concatenate([h_fwd, h_bwd], axis=-1)
    return last @ params["wl"] + params["bl"]


if __name__ == "__main__":
    B, S, H = 2, 8, 32   # batch, seq_len, config.hidden_size (toy stand-in)

    key = jax.random.PRNGKey(0)
    k_x, k_p = jax.random.split(key)

    # Stand-in for the transformer's last_hidden_state (model_output[0]).
    hidden_states = jax.random.normal(k_x, (B, S, H), jnp.float32)
    params = make_params(k_p, H)

    run = jax.jit(functools.partial(lstm_classifier_head, single_buffer_weights=True))
    try:
        logits = jax.block_until_ready(run(hidden_states, params))
    except Exception:
        # Graceful fallback if pl.Buffered(1) is unsupported on this build:
        # identical kernel, default (double) buffering of the constant weights.
        run = jax.jit(functools.partial(lstm_classifier_head,
                                        single_buffer_weights=False))
        logits = jax.block_until_ready(run(hidden_states, params))

    ref = reference_head(hidden_states, params)
    assert logits.shape == (B, NUM_LABELS)
    # bf16 MXU operands vs f32 reference -> looser tolerance.
    assert jnp.allclose(logits, ref, rtol=5e-2, atol=5e-2), "mismatch vs reference"

    print("KERNEL_OK")
</pallas_src>

<mosaic_0001>
module attributes {stable_mosaic.version = 11 : i64} {
  func.func @_reverse_step_and_linear_kernel(%arg0: memref<8x32xf32, #tpu.memory_space<vmem>>, %arg1: memref<8x32xf32, #tpu.memory_space<vmem>>, %arg2: memref<32x128xbf16, #tpu.memory_space<vmem>>, %arg3: memref<1x128xf32, #tpu.memory_space<vmem>>, %arg4: memref<32x30xbf16, #tpu.memory_space<vmem>>, %arg5: memref<32x30xbf16, #tpu.memory_space<vmem>>, %arg6: memref<1x30xf32, #tpu.memory_space<vmem>>, %arg7: memref<8x30xf32, #tpu.memory_space<vmem>>) attributes {dimension_semantics = [], scalar_prefetch = 0 : i64, scratch_operands = 0 : i64, tpu.core_type = #tpu.core_type<tc>} {
    %c0 = arith.constant 0 : index
    %c0_0 = arith.constant 0 : index
    %0 = vector.load %arg1[%c0, %c0_0] : memref<8x32xf32, #tpu.memory_space<vmem>>, vector<8x32xf32>
    %1 = arith.truncf %0 : vector<8x32xf32> to vector<8x32xbf16>
    %c0_1 = arith.constant 0 : index
    %c0_2 = arith.constant 0 : index
    %2 = vector.load %arg2[%c0_1, %c0_2] : memref<32x128xbf16, #tpu.memory_space<vmem>>, vector<32x128xbf16>
    %cst = arith.constant dense<0.000000e+00> : vector<8x128xf32>
    %3 = tpu.matmul %1, %2, %cst {dimension_numbers = #tpu.dot_dimension_numbers<[1], [0], [0], [1], [0, 0, 1, 1], [], []>} : vector<8x32xbf16>, vector<32x128xbf16>, vector<8x128xf32> -> vector<8x128xf32>
    %c0_3 = arith.constant 0 : index
    %c0_4 = arith.constant 0 : index
    %4 = vector.load %arg3[%c0_3, %c0_4] : memref<1x128xf32, #tpu.memory_space<vmem>>, vector<1x128xf32>
    %5 = vector.broadcast %4 : vector<1x128xf32> to vector<8x128xf32>
    %6 = arith.addf %3, %5 : vector<8x128xf32>
    %7 = vector.extract_strided_slice %6 {offsets = [0, 0], sizes = [8, 32], strides = [1, 1]} : vector<8x128xf32> to vector<8x32xf32>
    %8 = arith.negf %7 : vector<8x32xf32>
    %9 = math.exp %8 : vector<8x32xf32>
    %cst_5 = arith.constant 1.000000e+00 : f32
    %10 = vector.broadcast %cst_5 : f32 to vector<8x32xf32>
    %11 = arith.addf %10, %9 : vector<8x32xf32>
    %12 = arith.divf %10, %11 : vector<8x32xf32>
    %13 = vector.extract_strided_slice %6 {offsets = [0, 64], sizes = [8, 32], strides = [1, 1]} : vector<8x128xf32> to vector<8x32xf32>
    %14 = math.tanh %13 : vector<8x32xf32>
    %15 = vector.extract_strided_slice %6 {offsets = [0, 96], sizes = [8, 32], strides = [1, 1]} : vector<8x128xf32> to vector<8x32xf32>
    %16 = arith.negf %15 : vector<8x32xf32>
    %17 = math.exp %16 : vector<8x32xf32>
    %cst_6 = arith.constant 1.000000e+00 : f32
    %18 = vector.broadcast %cst_6 : f32 to vector<8x32xf32>
    %19 = arith.addf %18, %17 : vector<8x32xf32>
    %20 = arith.divf %18, %19 : vector<8x32xf32>
    %21 = arith.mulf %12, %14 : vector<8x32xf32>
    %22 = math.tanh %21 : vector<8x32xf32>
    %23 = arith.mulf %20, %22 : vector<8x32xf32>
    %c0_7 = arith.constant 0 : index
    %c0_8 = arith.constant 0 : index
    %24 = vector.load %arg0[%c0_7, %c0_8] : memref<8x32xf32, #tpu.memory_space<vmem>>, vector<8x32xf32>
    %25 = arith.truncf %24 : vector<8x32xf32> to vector<8x32xbf16>
    %c0_9 = arith.constant 0 : index
    %c0_10 = arith.constant 0 : index
    %26 = vector.load %arg4[%c0_9, %c0_10] : memref<32x30xbf16, #tpu.memory_space<vmem>>, vector<32x30xbf16>
    %cst_11 = arith.constant dense<0.000000e+00> : vector<8x30xf32>
    %27 = tpu.matmul %25, %26, %cst_11 {dimension_numbers = #tpu.dot_dimension_numbers<[1], [0], [0], [1], [0, 0, 1, 1], [], []>} : vector<8x32xbf16>, vector<32x30xbf16>, vector<8x30xf32> -> vector<8x30xf32>
    %28 = arith.truncf %23 : vector<8x32xf32> to vector<8x32xbf16>
    %c0_12 = arith.constant 0 : index
    %c0_13 = arith.constant 0 : index
    %29 = vector.load %arg5[%c0_12, %c0_13] : memref<32x30xbf16, #tpu.memory_space<vmem>>, vector<32x30xbf16>
    %cst_14 = arith.constant dense<0.000000e+00> : vector<8x30xf32>
    %30 = tpu.matmul %28, %29, %cst_14 {dimension_numbers = #tpu.dot_dimension_numbers<[1], [0], [0], [1], [0, 0, 1, 1], [], []>} : vector<8x32xbf16>, vector<32x30xbf16>, vector<8x30xf32> -> vector<8x30xf32>
    %31 = arith.addf %27, %30 : vector<8x30xf32>
    %c0_15 = arith.constant 0 : index
    %c0_16 = arith.constant 0 : index
    %32 = vector.load %arg6[%c0_15, %c0_16] : memref<1x30xf32, #tpu.memory_space<vmem>>, vector<1x30xf32>
    %33 = vector.broadcast %32 : vector<1x30xf32> to vector<8x30xf32>
    %34 = arith.addf %31, %33 : vector<8x30xf32>
    %c0_17 = arith.constant 0 : index
    %c0_18 = arith.constant 0 : index
    %35 = vector.load %arg7[%c0_17, %c0_18] : memref<8x30xf32, #tpu.memory_space<vmem>>, vector<8x30xf32>
    tpu.vector_store %arg7[%c0_17, %c0_18], %34 {strides = array<i32>} : memref<8x30xf32, #tpu.memory_space<vmem>>, vector<8x30xf32>,
    return
  }
}

module attributes {stable_mosaic.version = 11 : i64} {
  func.func @_lstm_recurrence_kernel(%arg0: i32, %arg1: i32, %arg2: memref<4x8x8x32xf32, #tpu.memory_space<vmem>>, %arg3: memref<4x32x32xbf16, #tpu.memory_space<vmem>>, %arg4: memref<8x32xf32, #tpu.memory_space<vmem>>, %arg5: memref<8x32xf32, #tpu.memory_space<vmem>>, %arg6: memref<8x32xf32, #tpu.memory_space<vmem>>) attributes {dimension_semantics = [#tpu.dimension_semantics<parallel>, #tpu.dimension_semantics<arbitrary>], iteration_bounds = array<i64: 1, 1>, scalar_prefetch = 0 : i64, scratch_operands = 2 : i64, tpu.core_type = #tpu.core_type<tc>, window_params = [{transform_indices = @transform_0, window_bounds = array<i64: 4, 8, 8, 32>}, {pipeline_mode = #tpu.pipeline_mode<synchronous>, transform_indices = @transform_1, window_bounds = array<i64: 4, 32, 32>}, {transform_indices = @transform_2, window_bounds = array<i64: 8, 32>}]} {
    %c0_i32 = arith.constant 0 : i32
    %0 = arith.cmpi eq, %arg1, %c0_i32 : i32
    %1 = arith.extui %0 : i1 to i32
    %c0_i32_0 = arith.constant 0 : i32
    %2 = arith.cmpi ne, %1, %c0_i32_0 : i32
    scf.if %2 {
      %cst_198 = arith.constant 0.000000e+00 : f32
      %320 = vector.broadcast %cst_198 : f32 to vector<8x32xf32>
      %c0_199 = arith.constant 0 : index
      %c0_200 = arith.constant 0 : index
      %321 = vector.load %arg5[%c0_199, %c0_200] : memref<8x32xf32, #tpu.memory_space<vmem>>, vector<8x32xf32>
      tpu.vector_store %arg5[%c0_199, %c0_200], %320 {strides = array<i32>} : memref<8x32xf32, #tpu.memory_space<vmem>>, vector<8x32xf32>,
      %cst_201 = arith.constant 0.000000e+00 : f32
      %322 = vector.broadcast %cst_201 : f32 to vector<8x32xf32>
      %c0_202 = arith.constant 0 : index
      %c0_203 = arith.constant 0 : index
      %323 = vector.load %arg6[%c0_202, %c0_203] : memref<8x32xf32, #tpu.memory_space<vmem>>, vector<8x32xf32>
      tpu.vector_store %arg6[%c0_202, %c0_203], %322 {strides = array<i32>} : memref<8x32xf32, #tpu.memory_space<vmem>>, vector<8x32xf32>,
    } else {
    }
    %c0 = arith.constant 0 : index
    %c0_1 = arith.constant 0 : index
    %c0_2 = arith.constant 0 : index
    %3 = vector.load %arg3[%c0, %c0_1, %c0_2] : memref<4x32x32xbf16, #tpu.memory_space<vmem>>, vector<1x32x32xbf16>
    %4 = vector.shape_cast %3 : vector<1x32x32xbf16> to vector<32x32xbf16>
    %c1 = arith.constant 1 : index
    %c0_3 = arith.constant 0 : index
    %c0_4 = arith.constant 0 : index
    %5 = vector.load %arg3[%c1, %c0_3, %c0_4] : memref<4x32x32xbf16, #tpu.memory_space<vmem>>, vector<1x32x32xbf16>
    %6 = vector.shape_cast %5 : vector<1x32x32xbf16> to vector<32x32xbf16>
    %c2 = arith.constant 2 : index
    %c0_5 = arith.constant 0 : index
    %c0_6 = arith.constant 0 : index
    %7 = vector.load %arg3[%c2, %c0_5, %c0_6] : memref<4x32x32xbf16, #tpu.memory_space<vmem>>, vector<1x32x32xbf16>
    %8 = vector.shape_cast %7 : vector<1x32x32xbf16> to vector<32x32xbf16>
    %c3 = arith.constant 3 : index
    %c0_7 = arith.constant 0 : index
    %c0_8 = arith.constant 0 : index
    %9 = vector.load %arg3[%c3, %c0_7, %c0_8] : memref<4x32x32xbf16, #tpu.memory_space<vmem>>, vector<1x32x32xbf16>
    %10 = vector.shape_cast %9 : vector<1x32x32xbf16> to vector<32x32xbf16>
    %c0_9 = arith.constant 0 : index
    %c0_10 = arith.constant 0 : index
    %11 = vector.load %arg5[%c0_9, %c0_10] : memref<8x32xf32, #tpu.memory_space<vmem>>, vector<8x32xf32>
    %c0_11 = arith.constant 0 : index
    %c0_12 = arith.constant 0 : index
    %12 = vector.load %arg6[%c0_11, %c0_12] : memref<8x32xf32, #tpu.memory_space<vmem>>, vector<8x32xf32>
    %13 = arith.truncf %11 : vector<8x32xf32> to vector<8x32xbf16>
    %c0_13 = arith.constant 0 : index
    %c0_14 = arith.constant 0 : index
    %c0_15 = arith.constant 0 : index
    %c0_16 = arith.constant 0 : index
    %14 = vector.load %arg2[%c0_13, %c0_14, %c0_15, %c0_16] : memref<4x8x8x32xf32, #tpu.memory_space<vmem>>, vector<1x1x8x32xf32>
    %15 = vector.shape_cast %14 : vector<1x1x8x32xf32> to vector<8x32xf32>
    %cst = arith.constant dense<0.000000e+00> : vector<8x32xf32>
    %16 = tpu.matmul %13, %4, %cst {dimension_numbers = #tpu.dot_dimension_numbers<[1], [0], [0], [1], [0, 0, 1, 1], [], []>} : vector<8x32xbf16>, vector<32x32xbf16>, vector<8x32xf32> -> vector<8x32xf32>
    %17 = arith.addf %15, %16 : vector<8x32xf32>
    %c1_17 = arith.constant 1 : index
    %c0_18 = arith.constant 0 : index
    %c0_19 = arith.constant 0 : index
    %c0_20 = arith.constant 0 : index
    %18 = vector.load %arg2[%c1_17, %c0_18, %c0_19, %c0_20] : memref<4x8x8x32xf32, #tpu.memory_space<vmem>>, vector<1x1x8x32xf32>
    %19 = vector.shape_cast %18 : vector<1x1x8x32xf32> to vector<8x32xf32>
    %cst_21 = arith.constant dense<0.000000e+00> : vector<8x32xf32>
    %20 = tpu.matmul %13, %6, %cst_21 {dimension_numbers = #tpu.dot_dimension_numbers<[1], [0], [0], [1], [0, 0, 1, 1], [], []>} : vector<8x32xbf16>, vector<32x32xbf16>, vector<8x32xf32> -> vector<8x32xf32>
    %21 = arith.addf %19, %20 : vector<8x32xf32>
    %c2_22 = arith.constant 2 : index
    %c0_23 = arith.constant 0 : index
    %c0_24 = arith.constant 0 : index
    %c0_25 = arith.constant 0 : index
    %22 = vector.load %arg2[%c2_22, %c0_23, %c0_24, %c0_25] : memref<4x8x8x32xf32, #tpu.memory_space<vmem>>, vector<1x1x8x32xf32>
    %23 = vector.shape_cast %22 : vector<1x1x8x32xf32> to vector<8x32xf32>
    %cst_26 = arith.constant dense<0.000000e+00> : vector<8x32xf32>
    %24 = tpu.matmul %13, %8, %cst_26 {dimension_numbers = #tpu.dot_dimension_numbers<[1], [0], [0], [1], [0, 0, 1, 1], [], []>} : vector<8x32xbf16>, vector<32x32xbf16>, vector<8x32xf32> -> vector<8x32xf32>
    %25 = arith.addf %23, %24 : vector<8x32xf32>
    %c3_27 = arith.constant 3 : index
    %c0_28 = arith.constant 0 : index
    %c0_29 = arith.constant 0 : index
    %c0_30 = arith.constant 0 : index
    %26 = vector.load %arg2[%c3_27, %c0_28, %c0_29, %c0_30] : memref<4x8x8x32xf32, #tpu.memory_space<vmem>>, vector<1x1x8x32xf32>
    %27 = vector.shape_cast %26 : vector<1x1x8x32xf32> to vector<8x32xf32>
    %cst_31 = arith.constant dense<0.000000e+00> : vector<8x32xf32>
    %28 = tpu.matmul %13, %10, %cst_31 {dimension_numbers = #tpu.dot_dimension_numbers<[1], [0], [0], [1], [0, 0, 1, 1], [], []>} : vector<8x32xbf16>, vector<32x32xbf16>, vector<8x32xf32> -> vector<8x32xf32>
    %29 = arith.addf %27, %28 : vector<8x32xf32>
    %30 = arith.negf %17 : vector<8x32xf32>
    %31 = math.exp %30 : vector<8x32xf32>
    %cst_32 = arith.constant 1.000000e+00 : f32
    %32 = vector.broadcast %cst_32 : f32 to vector<8x32xf32>
    %33 = arith.addf %32, %31 : vector<8x32xf32>
    %34 = arith.divf %32, %33 : vector<8x32xf32>
    %35 = arith.negf %21 : vector<8x32xf32>
    %36 = math.exp %35 : vector<8x32xf32>
    %cst_33 = arith.constant 1.000000e+00 : f32
    %37 = vector.broadcast %cst_33 : f32 to vector<8x32xf32>
    %38 = arith.addf %37, %36 : vector<8x32xf32>
    %39 = arith.divf %37, %38 : vector<8x32xf32>
    %40 = math.tanh %25 : vector<8x32xf32>
    %41 = arith.negf %29 : vector<8x32xf32>
    %42 = math.exp %41 : vector<8x32xf32>
    %cst_34 = arith.constant 1.000000e+00 : f32
    %43 = vector.broadcast %cst_34 : f32 to vector<8x32xf32>
    %44 = arith.addf %43, %42 : vector<8x32xf32>
    %45 = arith.divf %43, %44 : vector<8x32xf32>
    %46 = arith.mulf %39, %12 : vector<8x32xf32>
    %47 = arith.mulf %34, %40 : vector<8x32xf32>
    %48 = arith.addf %46, %47 : vector<8x32xf32>
    %49 = math.tanh %48 : vector<8x32xf32>
    %50 = arith.mulf %45, %49 : vector<8x32xf32>
    %51 = arith.truncf %50 : vector<8x32xf32> to vector<8x32xbf16>
    %c0_35 = arith.constant 0 : index
    %c1_36 = arith.constant 1 : index
    %c0_37 = arith.constant 0 : index
    %c0_38 = arith.constant 0 : index
    %52 = vector.load %arg2[%c0_35, %c1_36, %c0_37, %c0_38] : memref<4x8x8x32xf32, #tpu.memory_space<vmem>>, vector<1x1x8x32xf32>
    %53 = vector.shape_cast %52 : vector<1x1x8x32xf32> to vector<8x32xf32>
    %cst_39 = arith.constant dense<0.000000e+00> : vector<8x32xf32>
    %54 = tpu.matmul %51, %4, %cst_39 {dimension_numbers = #tpu.dot_dimension_numbers<[1], [0], [0], [1], [0, 0, 1, 1], [], []>} : vector<8x32xbf16>, vector<32x32xbf16>, vector<8x32xf32> -> vector<8x32xf32>
    %55 = arith.addf %53, %54 : vector<8x32xf32>
    %c1_40 = arith.constant 1 : index
    %c1_41 = arith.constant 1 : index
    %c0_42 = arith.constant 0 : index
    %c0_43 = arith.constant 0 : index
    %56 = vector.load %arg2[%c1_40, %c1_41, %c0_42, %c0_43] : memref<4x8x8x32xf32, #tpu.memory_space<vmem>>, vector<1x1x8x32xf32>
    %57 = vector.shape_cast %56 : vector<1x1x8x32xf32> to vector<8x32xf32>
    %cst_44 = arith.constant dense<0.000000e+00> : vector<8x32xf32>
    %58 = tpu.matmul %51, %6, %cst_44 {dimension_numbers = #tpu.dot_dimension_numbers<[1], [0], [0], [1], [0, 0, 1, 1], [], []>} : vector<8x32xbf16>, vector<32x32xbf16>, vector<8x32xf32> -> vector<8x32xf32>
    %59 = arith.addf %57, %58 : vector<8x32xf32>
    %c2_45 = arith.constant 2 : index
    %c1_46 = arith.constant 1 : index
    %c0_47 = arith.constant 0 : index
    %c0_48 = arith.constant 0 : index
    %60 = vector.load %arg2[%c2_45, %c1_46, %c0_47, %c0_48] : memref<4x8x8x32xf32, #tpu.memory_space<vmem>>, vector<1x1x8x32xf32>
    %61 = vector.shape_cast %60 : vector<1x1x8x32xf32> to vector<8x32xf32>
    %cst_49 = arith.constant dense<0.000000e+00> : vector<8x32xf32>
    %62 = tpu.matmul %51, %8, %cst_49 {dimension_numbers = #tpu.dot_dimension_numbers<[1], [0], [0], [1], [0, 0, 1, 1], [], []>} : vector<8x32xbf16>, vector<32x32xbf16>, vector<8x32xf32> -> vector<8x32xf32>
    %63 = arith.addf %61, %62 : vector<8x32xf32>
    %c3_50 = arith.constant 3 : index
    %c1_51 = arith.constant 1 : index
    %c0_52 = arith.constant 0 : index
    %c0_53 = arith.constant 0 : index
    %64 = vector.load %arg2[%c3_50, %c1_51, %c0_52, %c0_53] : memref<4x8x8x32xf32, #tpu.memory_space<vmem>>, vector<1x1x8x32xf32>
    %65 = vector.shape_cast %64 : vector<1x1x8x32xf32> to vector<8x32xf32>
    %cst_54 = arith.constant dense<0.000000e+00> : vector<8x32xf32>
    %66 = tpu.matmul %51, %10, %cst_54 {dimension_numbers = #tpu.dot_dimension_numbers<[1], [0], [0], [1], [0, 0, 1, 1], [], []>} : vector<8x32xbf16>, vector<32x32xbf16>, vector<8x32xf32> -> vector<8x32xf32>
    %67 = arith.addf %65, %66 : vector<8x32xf32>
    %68 = arith.negf %55 : vector<8x32xf32>
    %69 = math.exp %68 : vector<8x32xf32>
    %cst_55 = arith.constant 1.000000e+00 : f32
    %70 = vector.broadcast %cst_55 : f32 to vector<8x32xf32>
    %71 = arith.addf %70, %69 : vector<8x32xf32>
    %72 = arith.divf %70, %71 : vector<8x32xf32>
    %73 = arith.negf %59 : vector<8x32xf32>
    %74 = math.exp %73 : vector<8x32xf32>
    %cst_56 = arith.constant 1.000000e+00 : f32
    %75 = vector.broadcast %cst_56 : f32 to vector<8x32xf32>
    %76 = arith.addf %75, %74 : vector<8x32xf32>
    %77 = arith.divf %75, %76 : vector<8x32xf32>
    %78 = math.tanh %63 : vector<8x32xf32>
    %79 = arith.negf %67 : vector<8x32xf32>
    %80 = math.exp %79 : vector<8x32xf32>
    %cst_57 = arith.constant 1.000000e+00 : f32
    %81 = vector.broadcast %cst_57 : f32 to vector<8x32xf32>
    %82 = arith.addf %81, %80 : vector<8x32xf32>
    %83 = arith.divf %81, %82 : vector<8x32xf32>
    %84 = arith.mulf %77, %48 : vector<8x32xf32>
    %85 = arith.mulf %72, %78 : vector<8x32xf32>
    %86 = arith.addf %84, %85 : vector<8x32xf32>
    %87 = math.tanh %86 : vector<8x32xf32>
    %88 = arith.mulf %83, %87 : vector<8x32xf32>
    %89 = arith.truncf %88 : vector<8x32xf32> to vector<8x32xbf16>
    %c0_58 = arith.constant 0 : index
    %c2_59 = arith.constant 2 : index
    %c0_60 = arith.constant 0 : index
    %c0_61 = arith.constant 0 : index
    %90 = vector.load %arg2[%c0_58, %c2_59, %c0_60, %c0_61] : memref<4x8x8x32xf32, #tpu.memory_space<vmem>>, vector<1x1x8x32xf32>
    %91 = vector.shape_cast %90 : vector<1x1x8x32xf32> to vector<8x32xf32>
    %cst_62 = arith.constant dense<0.000000e+00> : vector<8x32xf32>
    %92 = tpu.matmul %89, %4, %cst_62 {dimension_numbers = #tpu.dot_dimension_numbers<[1], [0], [0], [1], [0, 0, 1, 1], [], []>} : vector<8x32xbf16>, vector<32x32xbf16>, vector<8x32xf32> -> vector<8x32xf32>
    %93 = arith.addf %91, %92 : vector<8x32xf32>
    %c1_63 = arith.constant 1 : index
    %c2_64 = arith.constant 2 : index
    %c0_65 = arith.constant 0 : index
    %c0_66 = arith.constant 0 : index
    %94 = vector.load %arg2[%c1_63, %c2_64, %c0_65, %c0_66] : memref<4x8x8x32xf32, #tpu.memory_space<vmem>>, vector<1x1x8x32xf32>
    %95 = vector.shape_cast %94 : vector<1x1x8x32xf32> to vector<8x32xf32>
    %cst_67 = arith.constant dense<0.000000e+00> : vector<8x32xf32>
    %96 = tpu.matmul %89, %6, %cst_67 {dimension_numbers = #tpu.dot_dimension_numbers<[1], [0], [0], [1], [0, 0, 1, 1], [], []>} : vector<8x32xbf16>, vector<32x32xbf16>, vector<8x32xf32> -> vector<8x32xf32>
    %97 = arith.addf %95, %96 : vector<8x32xf32>
    %c2_68 = arith.constant 2 : index
    %c2_69 = arith.constant 2 : index
    %c0_70 = arith.constant 0 : index
    %c0_71 = arith.constant 0 : index
    %98 = vector.load %arg2[%c2_68, %c2_69, %c0_70, %c0_71] : memref<4x8x8x32xf32, #tpu.memory_space<vmem>>, vector<1x1x8x32xf32>
    %99 = vector.shape_cast %98 : vector<1x1x8x32xf32> to vector<8x32xf32>
    %cst_72 = arith.constant dense<0.000000e+00> : vector<8x32xf32>
    %100 = tpu.matmul %89, %8, %cst_72 {dimension_numbers = #tpu.dot_dimension_numbers<[1], [0], [0], [1], [0, 0, 1, 1], [], []>} : vector<8x32xbf16>, vector<32x32xbf16>, vector<8x32xf32> -> vector<8x32xf32>
    %101 = arith.addf %99, %100 : vector<8x32xf32>
    %c3_73 = arith.constant 3 : index
    %c2_74 = arith.constant 2 : index
    %c0_75 = arith.constant 0 : index
    %c0_76 = arith.constant 0 : index
    %102 = vector.load %arg2[%c3_73, %c2_74, %c0_75, %c0_76] : memref<4x8x8x32xf32, #tpu.memory_space<vmem>>, vector<1x1x8x32xf32>
    %103 = vector.shape_cast %102 : vector<1x1x8x32xf32> to vector<8x32xf32>
    %cst_77 = arith.constant dense<0.000000e+00> : vector<8x32xf32>
    %104 = tpu.matmul %89, %10, %cst_77 {dimension_numbers = #tpu.dot_dimension_numbers<[1], [0], [0], [1], [0, 0, 1, 1], [], []>} : vector<8x32xbf16>, vector<32x32xbf16>, vector<8x32xf32> -> vector<8x32xf32>
    %105 = arith.addf %103, %104 : vector<8x32xf32>
    %106 = arith.negf %93 : vector<8x32xf32>
    %107 = math.exp %106 : vector<8x32xf32>
    %cst_78 = arith.constant 1.000000e+00 : f32
    %108 = vector.broadcast %cst_78 : f32 to vector<8x32xf32>
    %109 = arith.addf %108, %107 : vector<8x32xf32>
    %110 = arith.divf %108, %109 : vector<8x32xf32>
    %111 = arith.negf %97 : vector<8x32xf32>
    %112 = math.exp %111 : vector<8x32xf32>
    %cst_79 = arith.constant 1.000000e+00 : f32
    %113 = vector.broadcast %cst_79 : f32 to vector<8x32xf32>
    %114 = arith.addf %113, %112 : vector<8x32xf32>
    %115 = arith.divf %113, %114 : vector<8x32xf32>
    %116 = math.tanh %101 : vector<8x32xf32>
    %117 = arith.negf %105 : vector<8x32xf32>
    %118 = math.exp %117 : vector<8x32xf32>
    %cst_80 = arith.constant 1.000000e+00 : f32
    %119 = vector.broadcast %cst_80 : f32 to vector<8x32xf32>
    %120 = arith.addf %119, %118 : vector<8x32xf32>
    %121 = arith.divf %119, %120 : vector<8x32xf32>
    %122 = arith.mulf %115, %86 : vector<8x32xf32>
    %123 = arith.mulf %110, %116 : vector<8x32xf32>
    %124 = arith.addf %122, %123 : vector<8x32xf32>
    %125 = math.tanh %124 : vector<8x32xf32>
    %126 = arith.mulf %121, %125 : vector<8x32xf32>
    %127 = arith.truncf %126 : vector<8x32xf32> to vector<8x32xbf16>
    %c0_81 = arith.constant 0 : index
    %c3_82 = arith.constant 3 : index
    %c0_83 = arith.constant 0 : index
    %c0_84 = arith.constant 0 : index
    %128 = vector.load %arg2[%c0_81, %c3_82, %c0_83, %c0_84] : memref<4x8x8x32xf32, #tpu.memory_space<vmem>>, vector<1x1x8x32xf32>
    %129 = vector.shape_cast %128 : vector<1x1x8x32xf32> to vector<8x32xf32>
    %cst_85 = arith.constant dense<0.000000e+00> : vector<8x32xf32>
    %130 = tpu.matmul %127, %4, %cst_85 {dimension_numbers = #tpu.dot_dimension_numbers<[1], [0], [0], [1], [0, 0, 1, 1], [], []>} : vector<8x32xbf16>, vector<32x32xbf16>, vector<8x32xf32> -> vector<8x32xf32>
    %131 = arith.addf %129, %130 : vector<8x32xf32>
    %c1_86 = arith.constant 1 : index
    %c3_87 = arith.constant 3 : index
    %c0_88 = arith.constant 0 : index
    %c0_89 = arith.constant 0 : index
    %132 = vector.load %arg2[%c1_86, %c3_87, %c0_88, %c0_89] : memref<4x8x8x32xf32, #tpu.memory_space<vmem>>, vector<1x1x8x32xf32>
    %133 = vector.shape_cast %132 : vector<1x1x8x32xf32> to vector<8x32xf32>
    %cst_90 = arith.constant dense<0.000000e+00> : vector<8x32xf32>
    %134 = tpu.matmul %127, %6, %cst_90 {dimension_numbers = #tpu.dot_dimension_numbers<[1], [0], [0], [1], [0, 0, 1, 1], [], []>} : vector<8x32xbf16>, vector<32x32xbf16>, vector<8x32xf32> -> vector<8x32xf32>
    %135 = arith.addf %133, %134 : vector<8x32xf32>
    %c2_91 = arith.constant 2 : index
    %c3_92 = arith.constant 3 : index
    %c0_93 = arith.constant 0 : index
    %c0_94 = arith.constant 0 : index
    %136 = vector.load %arg2[%c2_91, %c3_92, %c0_93, %c0_94] : memref<4x8x8x32xf32, #tpu.memory_space<vmem>>, vector<1x1x8x32xf32>
    %137 = vector.shape_cast %136 : vector<1x1x8x32xf32> to vector<8x32xf32>
    %cst_95 = arith.constant dense<0.000000e+00> : vector<8x32xf32>
    %138 = tpu.matmul %127, %8, %cst_95 {dimension_numbers = #tpu.dot_dimension_numbers<[1], [0], [0], [1], [0, 0, 1, 1], [], []>} : vector<8x32xbf16>, vector<32x32xbf16>, vector<8x32xf32> -> vector<8x32xf32>
    %139 = arith.addf %137, %138 : vector<8x32xf32>
    %c3_96 = arith.constant 3 : index
    %c3_97 = arith.constant 3 : index
    %c0_98 = arith.constant 0 : index
    %c0_99 = arith.constant 0 : index
    %140 = vector.load %arg2[%c3_96, %c3_97, %c0_98, %c0_99] : memref<4x8x8x32xf32, #tpu.memory_space<vmem>>, vector<1x1x8x32xf32>
    %141 = vector.shape_cast %140 : vector<1x1x8x32xf32> to vector<8x32xf32>
    %cst_100 = arith.constant dense<0.000000e+00> : vector<8x32xf32>
    %142 = tpu.matmul %127, %10, %cst_100 {dimension_numbers = #tpu.dot_dimension_numbers<[1], [0], [0], [1], [0, 0, 1, 1], [], []>} : vector<8x32xbf16>, vector<32x32xbf16>, vector<8x32xf32> -> vector<8x32xf32>
    %143 = arith.addf %141, %142 : vector<8x32xf32>
    %144 = arith.negf %131 : vector<8x32xf32>
    %145 = math.exp %144 : vector<8x32xf32>
    %cst_101 = arith.constant 1.000000e+00 : f32
    %146 = vector.broadcast %cst_101 : f32 to vector<8x32xf32>
    %147 = arith.addf %146, %145 : vector<8x32xf32>
    %148 = arith.divf %146, %147 : vector<8x32xf32>
    %149 = arith.negf %135 : vector<8x32xf32>
    %150 = math.exp %149 : vector<8x32xf32>
    %cst_102 = arith.constant 1.000000e+00 : f32
    %151 = vector.broadcast %cst_102 : f32 to vector<8x32xf32>
    %152 = arith.addf %151, %150 : vector<8x32xf32>
    %153 = arith.divf %151, %152 : vector<8x32xf32>
    %154 = math.tanh %139 : vector<8x32xf32>
    %155 = arith.negf %143 : vector<8x32xf32>
    %156 = math.exp %155 : vector<8x32xf32>
    %cst_103 = arith.constant 1.000000e+00 : f32
    %157 = vector.broadcast %cst_103 : f32 to vector<8x32xf32>
    %158 = arith.addf %157, %156 : vector<8x32xf32>
    %159 = arith.divf %157, %158 : vector<8x32xf32>
    %160 = arith.mulf %153, %124 : vector<8x32xf32>
    %161 = arith.mulf %148, %154 : vector<8x32xf32>
    %162 = arith.addf %160, %161 : vector<8x32xf32>
    %163 = math.tanh %162 : vector<8x32xf32>
    %164 = arith.mulf %159, %163 : vector<8x32xf32>
    %165 = arith.truncf %164 : vector<8x32xf32> to vector<8x32xbf16>
    %c0_104 = arith.constant 0 : index
    %c4 = arith.constant 4 : index
    %c0_105 = arith.constant 0 : index
    %c0_106 = arith.constant 0 : index
    %166 = vector.load %arg2[%c0_104, %c4, %c0_105, %c0_106] : memref<4x8x8x32xf32, #tpu.memory_space<vmem>>, vector<1x1x8x32xf32>
    %167 = vector.shape_cast %166 : vector<1x1x8x32xf32> to vector<8x32xf32>
    %cst_107 = arith.constant dense<0.000000e+00> : vector<8x32xf32>
    %168 = tpu.matmul %165, %4, %cst_107 {dimension_numbers = #tpu.dot_dimension_numbers<[1], [0], [0], [1], [0, 0, 1, 1], [], []>} : vector<8x32xbf16>, vector<32x32xbf16>, vector<8x32xf32> -> vector<8x32xf32>
    %169 = arith.addf %167, %168 : vector<8x32xf32>
    %c1_108 = arith.constant 1 : index
    %c4_109 = arith.constant 4 : index
    %c0_110 = arith.constant 0 : index
    %c0_111 = arith.constant 0 : index
    %170 = vector.load %arg2[%c1_108, %c4_109, %c0_110, %c0_111] : memref<4x8x8x32xf32, #tpu.memory_space<vmem>>, vector<1x1x8x32xf32>
    %171 = vector.shape_cast %170 : vector<1x1x8x32xf32> to vector<8x32xf32>
    %cst_112 = arith.constant dense<0.000000e+00> : vector<8x32xf32>
    %172 = tpu.matmul %165, %6, %cst_112 {dimension_numbers = #tpu.dot_dimension_numbers<[1], [0], [0], [1], [0, 0, 1, 1], [], []>} : vector<8x32xbf16>, vector<32x32xbf16>, vector<8x32xf32> -> vector<8x32xf32>
    %173 = arith.addf %171, %172 : vector<8x32xf32>
    %c2_113 = arith.constant 2 : index
    %c4_114 = arith.constant 4 : index
    %c0_115 = arith.constant 0 : index
    %c0_116 = arith.constant 0 : index
    %174 = vector.load %arg2[%c2_113, %c4_114, %c0_115, %c0_116] : memref<4x8x8x32xf32, #tpu.memory_space<vmem>>, vector<1x1x8x32xf32>
    %175 = vector.shape_cast %174 : vector<1x1x8x32xf32> to vector<8x32xf32>
    %cst_117 = arith.constant dense<0.000000e+00> : vector<8x32xf32>
    %176 = tpu.matmul %165, %8, %cst_117 {dimension_numbers = #tpu.dot_dimension_numbers<[1], [0], [0], [1], [0, 0, 1, 1], [], []>} : vector<8x32xbf16>, vector<32x32xbf16>, vector<8x32xf32> -> vector<8x32xf32>
    %177 = arith.addf %175, %176 : vector<8x32xf32>
    %c3_118 = arith.constant 3 : index
    %c4_119 = arith.constant 4 : index
    %c0_120 = arith.constant 0 : index
    %c0_121 = arith.constant 0 : index
    %178 = vector.load %arg2[%c3_118, %c4_119, %c0_120, %c0_121] : memref<4x8x8x32xf32, #tpu.memory_space<vmem>>, vector<1x1x8x32xf32>
    %179 = vector.shape_cast %178 : vector<1x1x8x32xf32> to vector<8x32xf32>
    %cst_122 = arith.constant dense<0.000000e+00> : vector<8x32xf32>
    %180 = tpu.matmul %165, %10, %cst_122 {dimension_numbers = #tpu.dot_dimension_numbers<[1], [0], [0], [1], [0, 0, 1, 1], [], []>} : vector<8x32xbf16>, vector<32x32xbf16>, vector<8x32xf32> -> vector<8x32xf32>
    %181 = arith.addf %179, %180 : vector<8x32xf32>
    %182 = arith.negf %169 : vector<8x32xf32>
    %183 = math.exp %182 : vector<8x32xf32>
    %cst_123 = arith.constant 1.000000e+00 : f32
    %184 = vector.broadcast %cst_123 : f32 to vector<8x32xf32>
    %185 = arith.addf %184, %183 : vector<8x32xf32>
    %186 = arith.divf %184, %185 : vector<8x32xf32>
    %187 = arith.negf %173 : vector<8x32xf32>
    %188 = math.exp %187 : vector<8x32xf32>
    %cst_124 = arith.constant 1.000000e+00 : f32
    %189 = vector.broadcast %cst_124 : f32 to vector<8x32xf32>
    %190 = arith.addf %189, %188 : vector<8x32xf32>
    %191 = arith.divf %189, %190 : vector<8x32xf32>
    %192 = math.tanh %177 : vector<8x32xf32>
    %193 = arith.negf %181 : vector<8x32xf32>
    %194 = math.exp %193 : vector<8x32xf32>
    %cst_125 = arith.constant 1.000000e+00 : f32
    %195 = vector.broadcast %cst_125 : f32 to vector<8x32xf32>
    %196 = arith.addf %195, %194 : vector<8x32xf32>
    %197 = arith.divf %195, %196 : vector<8x32xf32>
    %198 = arith.mulf %191, %162 : vector<8x32xf32>
    %199 = arith.mulf %186, %192 : vector<8x32xf32>
    %200 = arith.addf %198, %199 : vector<8x32xf32>
    %201 = math.tanh %200 : vector<8x32xf32>
    %202 = arith.mulf %197, %201 : vector<8x32xf32>
    %203 = arith.truncf %202 : vector<8x32xf32> to vector<8x32xbf16>
    %c0_126 = arith.constant 0 : index
    %c5 = arith.constant 5 : index
    %c0_127 = arith.constant 0 : index
    %c0_128 = arith.constant 0 : index
    %204 = vector.load %arg2[%c0_126, %c5, %c0_127, %c0_128] : memref<4x8x8x32xf32, #tpu.memory_space<vmem>>, vector<1x1x8x32xf32>
    %205 = vector.shape_cast %204 : vector<1x1x8x32xf32> to vector<8x32xf32>
    %cst_129 = arith.constant dense<0.000000e+00> : vector<8x32xf32>
    %206 = tpu.matmul %203, %4, %cst_129 {dimension_numbers = #tpu.dot_dimension_numbers<[1], [0], [0], [1], [0, 0, 1, 1], [], []>} : vector<8x32xbf16>, vector<32x32xbf16>, vector<8x32xf32> -> vector<8x32xf32>
    %207 = arith.addf %205, %206 : vector<8x32xf32>
    %c1_130 = arith.constant 1 : index
    %c5_131 = arith.constant 5 : index
    %c0_132 = arith.constant 0 : index
    %c0_133 = arith.constant 0 : index
    %208 = vector.load %arg2[%c1_130, %c5_131, %c0_132, %c0_133] : memref<4x8x8x32xf32, #tpu.memory_space<vmem>>, vector<1x1x8x32xf32>
    %209 = vector.shape_cast %208 : vector<1x1x8x32xf32> to vector<8x32xf32>
    %cst_134 = arith.constant dense<0.000000e+00> : vector<8x32xf32>
    %210 = tpu.matmul %203, %6, %cst_134 {dimension_numbers = #tpu.dot_dimension_numbers<[1], [0], [0], [1], [0, 0, 1, 1], [], []>} : vector<8x32xbf16>, vector<32x32xbf16>, vector<8x32xf32> -> vector<8x32xf32>
    %211 = arith.addf %209, %210 : vector<8x32xf32>
    %c2_135 = arith.constant 2 : index
    %c5_136 = arith.constant 5 : index
    %c0_137 = arith.constant 0 : index
    %c0_138 = arith.constant 0 : index
    %212 = vector.load %arg2[%c2_135, %c5_136, %c0_137, %c0_138] : memref<4x8x8x32xf32, #tpu.memory_space<vmem>>, vector<1x1x8x32xf32>
    %213 = vector.shape_cast %212 : vector<1x1x8x32xf32> to vector<8x32xf32>
    %cst_139 = arith.constant dense<0.000000e+00> : vector<8x32xf32>
    %214 = tpu.matmul %203, %8, %cst_139 {dimension_numbers = #tpu.dot_dimension_numbers<[1], [0], [0], [1], [0, 0, 1, 1], [], []>} : vector<8x32xbf16>, vector<32x32xbf16>, vector<8x32xf32> -> vector<8x32xf32>
    %215 = arith.addf %213, %214 : vector<8x32xf32>
    %c3_140 = arith.constant 3 : index
    %c5_141 = arith.constant 5 : index
    %c0_142 = arith.constant 0 : index
    %c0_143 = arith.constant 0 : index
    %216 = vector.load %arg2[%c3_140, %c5_141, %c0_142, %c0_143] : memref<4x8x8x32xf32, #tpu.memory_space<vmem>>, vector<1x1x8x32xf32>
    %217 = vector.shape_cast %216 : vector<1x1x8x32xf32> to vector<8x32xf32>
    %cst_144 = arith.constant dense<0.000000e+00> : vector<8x32xf32>
    %218 = tpu.matmul %203, %10, %cst_144 {dimension_numbers = #tpu.dot_dimension_numbers<[1], [0], [0], [1], [0, 0, 1, 1], [], []>} : vector<8x32xbf16>, vector<32x32xbf16>, vector<8x32xf32> -> vector<8x32xf32>
    %219 = arith.addf %217, %218 : vector<8x32xf32>
    %220 = arith.negf %207 : vector<8x32xf32>
    %221 = math.exp %220 : vector<8x32xf32>
    %cst_145 = arith.constant 1.000000e+00 : f32
    %222 = vector.broadcast %cst_145 : f32 to vector<8x32xf32>
    %223 = arith.addf %222, %221 : vector<8x32xf32>
    %224 = arith.divf %222, %223 : vector<8x32xf32>
    %225 = arith.negf %211 : vector<8x32xf32>
    %226 = math.exp %225 : vector<8x32xf32>
    %cst_146 = arith.constant 1.000000e+00 : f32
    %227 = vector.broadcast %cst_146 : f32 to vector<8x32xf32>
    %228 = arith.addf %227, %226 : vector<8x32xf32>
    %229 = arith.divf %227, %228 : vector<8x32xf32>
    %230 = math.tanh %215 : vector<8x32xf32>
    %231 = arith.negf %219 : vector<8x32xf32>
    %232 = math.exp %231 : vector<8x32xf32>
    %cst_147 = arith.constant 1.000000e+00 : f32
    %233 = vector.broadcast %cst_147 : f32 to vector<8x32xf32>
    %234 = arith.addf %233, %232 : vector<8x32xf32>
    %235 = arith.divf %233, %234 : vector<8x32xf32>
    %236 = arith.mulf %229, %200 : vector<8x32xf32>
    %237 = arith.mulf %224, %230 : vector<8x32xf32>
    %238 = arith.addf %236, %237 : vector<8x32xf32>
    %239 = math.tanh %238 : vector<8x32xf32>
    %240 = arith.mulf %235, %239 : vector<8x32xf32>
    %241 = arith.truncf %240 : vector<8x32xf32> to vector<8x32xbf16>
    %c0_148 = arith.constant 0 : index
    %c6 = arith.constant 6 : index
    %c0_149 = arith.constant 0 : index
    %c0_150 = arith.constant 0 : index
    %242 = vector.load %arg2[%c0_148, %c6, %c0_149, %c0_150] : memref<4x8x8x32xf32, #tpu.memory_space<vmem>>, vector<1x1x8x32xf32>
    %243 = vector.shape_cast %242 : vector<1x1x8x32xf32> to vector<8x32xf32>
    %cst_151 = arith.constant dense<0.000000e+00> : vector<8x32xf32>
    %244 = tpu.matmul %241, %4, %cst_151 {dimension_numbers = #tpu.dot_dimension_numbers<[1], [0], [0], [1], [0, 0, 1, 1], [], []>} : vector<8x32xbf16>, vector<32x32xbf16>, vector<8x32xf32> -> vector<8x32xf32>
    %245 = arith.addf %243, %244 : vector<8x32xf32>
    %c1_152 = arith.constant 1 : index
    %c6_153 = arith.constant 6 : index
    %c0_154 = arith.constant 0 : index
    %c0_155 = arith.constant 0 : index
    %246 = vector.load %arg2[%c1_152, %c6_153, %c0_154, %c0_155] : memref<4x8x8x32xf32, #tpu.memory_space<vmem>>, vector<1x1x8x32xf32>
    %247 = vector.shape_cast %246 : vector<1x1x8x32xf32> to vector<8x32xf32>
    %cst_156 = arith.constant dense<0.000000e+00> : vector<8x32xf32>
    %248 = tpu.matmul %241, %6, %cst_156 {dimension_numbers = #tpu.dot_dimension_numbers<[1], [0], [0], [1], [0, 0, 1, 1], [], []>} : vector<8x32xbf16>, vector<32x32xbf16>, vector<8x32xf32> -> vector<8x32xf32>
    %249 = arith.addf %247, %248 : vector<8x32xf32>
    %c2_157 = arith.constant 2 : index
    %c6_158 = arith.constant 6 : index
    %c0_159 = arith.constant 0 : index
    %c0_160 = arith.constant 0 : index
    %250 = vector.load %arg2[%c2_157, %c6_158, %c0_159, %c0_160] : memref<4x8x8x32xf32, #tpu.memory_space<vmem>>, vector<1x1x8x32xf32>
    %251 = vector.shape_cast %250 : vector<1x1x8x32xf32> to vector<8x32xf32>
    %cst_161 = arith.constant dense<0.000000e+00> : vector<8x32xf32>
    %252 = tpu.matmul %241, %8, %cst_161 {dimension_numbers = #tpu.dot_dimension_numbers<[1], [0], [0], [1], [0, 0, 1, 1], [], []>} : vector<8x32xbf16>, vector<32x32xbf16>, vector<8x32xf32> -> vector<8x32xf32>
    %253 = arith.addf %251, %252 : vector<8x32xf32>
    %c3_162 = arith.constant 3 : index
    %c6_163 = arith.constant 6 : index
    %c0_164 = arith.constant 0 : index
    %c0_165 = arith.constant 0 : index
    %254 = vector.load %arg2[%c3_162, %c6_163, %c0_164, %c0_165] : memref<4x8x8x32xf32, #tpu.memory_space<vmem>>, vector<1x1x8x32xf32>
    %255 = vector.shape_cast %254 : vector<1x1x8x32xf32> to vector<8x32xf32>
    %cst_166 = arith.constant dense<0.000000e+00> : vector<8x32xf32>
    %256 = tpu.matmul %241, %10, %cst_166 {dimension_numbers = #tpu.dot_dimension_numbers<[1], [0], [0], [1], [0, 0, 1, 1], [], []>} : vector<8x32xbf16>, vector<32x32xbf16>, vector<8x32xf32> -> vector<8x32xf32>
    %257 = arith.addf %255, %256 : vector<8x32xf32>
    %258 = arith.negf %245 : vector<8x32xf32>
    %259 = math.exp %258 : vector<8x32xf32>
    %cst_167 = arith.constant 1.000000e+00 : f32
    %260 = vector.broadcast %cst_167 : f32 to vector<8x32xf32>
    %261 = arith.addf %260, %259 : vector<8x32xf32>
    %262 = arith.divf %260, %261 : vector<8x32xf32>
    %263 = arith.negf %249 : vector<8x32xf32>
    %264 = math.exp %263 : vector<8x32xf32>
    %cst_168 = arith.constant 1.000000e+00 : f32
    %265 = vector.broadcast %cst_168 : f32 to vector<8x32xf32>
    %266 = arith.addf %265, %264 : vector<8x32xf32>
    %267 = arith.divf %265, %266 : vector<8x32xf32>
    %268 = math.tanh %253 : vector<8x32xf32>
    %269 = arith.negf %257 : vector<8x32xf32>
    %270 = math.exp %269 : vector<8x32xf32>
    %cst_169 = arith.constant 1.000000e+00 : f32
    %271 = vector.broadcast %cst_169 : f32 to vector<8x32xf32>
    %272 = arith.addf %271, %270 : vector<8x32xf32>
    %273 = arith.divf %271, %272 : vector<8x32xf32>
    %274 = arith.mulf %267, %238 : vector<8x32xf32>
    %275 = arith.mulf %262, %268 : vector<8x32xf32>
    %276 = arith.addf %274, %275 : vector<8x32xf32>
    %277 = math.tanh %276 : vector<8x32xf32>
    %278 = arith.mulf %273, %277 : vector<8x32xf32>
    %279 = arith.truncf %278 : vector<8x32xf32> to vector<8x32xbf16>
    %c0_170 = arith.constant 0 : index
    %c7 = arith.constant 7 : index
    %c0_171 = arith.constant 0 : index
    %c0_172 = arith.constant 0 : index
    %280 = vector.load %arg2[%c0_170, %c7, %c0_171, %c0_172] : memref<4x8x8x32xf32, #tpu.memory_space<vmem>>, vector<1x1x8x32xf32>
    %281 = vector.shape_cast %280 : vector<1x1x8x32xf32> to vector<8x32xf32>
    %cst_173 = arith.constant dense<0.000000e+00> : vector<8x32xf32>
    %282 = tpu.matmul %279, %4, %cst_173 {dimension_numbers = #tpu.dot_dimension_numbers<[1], [0], [0], [1], [0, 0, 1, 1], [], []>} : vector<8x32xbf16>, vector<32x32xbf16>, vector<8x32xf32> -> vector<8x32xf32>
    %283 = arith.addf %281, %282 : vector<8x32xf32>
    %c1_174 = arith.constant 1 : index
    %c7_175 = arith.constant 7 : index
    %c0_176 = arith.constant 0 : index
    %c0_177 = arith.constant 0 : index
    %284 = vector.load %arg2[%c1_174, %c7_175, %c0_176, %c0_177] : memref<4x8x8x32xf32, #tpu.memory_space<vmem>>, vector<1x1x8x32xf32>
    %285 = vector.shape_cast %284 : vector<1x1x8x32xf32> to vector<8x32xf32>
    %cst_178 = arith.constant dense<0.000000e+00> : vector<8x32xf32>
    %286 = tpu.matmul %279, %6, %cst_178 {dimension_numbers = #tpu.dot_dimension_numbers<[1], [0], [0], [1], [0, 0, 1, 1], [], []>} : vector<8x32xbf16>, vector<32x32xbf16>, vector<8x32xf32> -> vector<8x32xf32>
    %287 = arith.addf %285, %286 : vector<8x32xf32>
    %c2_179 = arith.constant 2 : index
    %c7_180 = arith.constant 7 : index
    %c0_181 = arith.constant 0 : index
    %c0_182 = arith.constant 0 : index
    %288 = vector.load %arg2[%c2_179, %c7_180, %c0_181, %c0_182] : memref<4x8x8x32xf32, #tpu.memory_space<vmem>>, vector<1x1x8x32xf32>
    %289 = vector.shape_cast %288 : vector<1x1x8x32xf32> to vector<8x32xf32>
    %cst_183 = arith.constant dense<0.000000e+00> : vector<8x32xf32>
    %290 = tpu.matmul %279, %8, %cst_183 {dimension_numbers = #tpu.dot_dimension_numbers<[1], [0], [0], [1], [0, 0, 1, 1], [], []>} : vector<8x32xbf16>, vector<32x32xbf16>, vector<8x32xf32> -> vector<8x32xf32>
    %291 = arith.addf %289, %290 : vector<8x32xf32>
    %c3_184 = arith.constant 3 : index
    %c7_185 = arith.constant 7 : index
    %c0_186 = arith.constant 0 : index
    %c0_187 = arith.constant 0 : index
    %292 = vector.load %arg2[%c3_184, %c7_185, %c0_186, %c0_187] : memref<4x8x8x32xf32, #tpu.memory_space<vmem>>, vector<1x1x8x32xf32>
    %293 = vector.shape_cast %292 : vector<1x1x8x32xf32> to vector<8x32xf32>
    %cst_188 = arith.constant dense<0.000000e+00> : vector<8x32xf32>
    %294 = tpu.matmul %279, %10, %cst_188 {dimension_numbers = #tpu.dot_dimension_numbers<[1], [0], [0], [1], [0, 0, 1, 1], [], []>} : vector<8x32xbf16>, vector<32x32xbf16>, vector<8x32xf32> -> vector<8x32xf32>
    %295 = arith.addf %293, %294 : vector<8x32xf32>
    %296 = arith.negf %283 : vector<8x32xf32>
    %297 = math.exp %296 : vector<8x32xf32>
    %cst_189 = arith.constant 1.000000e+00 : f32
    %298 = vector.broadcast %cst_189 : f32 to vector<8x32xf32>
    %299 = arith.addf %298, %297 : vector<8x32xf32>
    %300 = arith.divf %298, %299 : vector<8x32xf32>
    %301 = arith.negf %287 : vector<8x32xf32>
    %302 = math.exp %301 : vector<8x32xf32>
    %cst_190 = arith.constant 1.000000e+00 : f32
    %303 = vector.broadcast %cst_190 : f32 to vector<8x32xf32>
    %304 = arith.addf %303, %302 : vector<8x32xf32>
    %305 = arith.divf %303, %304 : vector<8x32xf32>
    %306 = math.tanh %291 : vector<8x32xf32>
    %307 = arith.negf %295 : vector<8x32xf32>
    %308 = math.exp %307 : vector<8x32xf32>
    %cst_191 = arith.constant 1.000000e+00 : f32
    %309 = vector.broadcast %cst_191 : f32 to vector<8x32xf32>
    %310 = arith.addf %309, %308 : vector<8x32xf32>
    %311 = arith.divf %309, %310 : vector<8x32xf32>
    %312 = arith.mulf %305, %276 : vector<8x32xf32>
    %313 = arith.mulf %300, %306 : vector<8x32xf32>
    %314 = arith.addf %312, %313 : vector<8x32xf32>
    %315 = math.tanh %314 : vector<8x32xf32>
    %316 = arith.mulf %311, %315 : vector<8x32xf32>
    %c0_192 = arith.constant 0 : index
    %c0_193 = arith.constant 0 : index
    %317 = vector.load %arg5[%c0_192, %c0_193] : memref<8x32xf32, #tpu.memory_space<vmem>>, vector<8x32xf32>
    tpu.vector_store %arg5[%c0_192, %c0_193], %316 {strides = array<i32>} : memref<8x32xf32, #tpu.memory_space<vmem>>, vector<8x32xf32>,
    %c0_194 = arith.constant 0 : index
    %c0_195 = arith.constant 0 : index
    %318 = vector.load %arg6[%c0_194, %c0_195] : memref<8x32xf32, #tpu.memory_space<vmem>>, vector<8x32xf32>
    tpu.vector_store %arg6[%c0_194, %c0_195], %314 {strides = array<i32>} : memref<8x32xf32, #tpu.memory_space<vmem>>, vector<8x32xf32>,
    %c0_196 = arith.constant 0 : index
    %c0_197 = arith.constant 0 : index
    %319 = vector.load %arg4[%c0_196, %c0_197] : memref<8x32xf32, #tpu.memory_space<vmem>>, vector<8x32xf32>
    tpu.vector_store %arg4[%c0_196, %c0_197], %316 {strides = array<i32>} : memref<8x32xf32, #tpu.memory_space<vmem>>, vector<8x32xf32>,
    return
  }
  func.func @transform_0(%arg0: i32, %arg1: i32) -> (i32, i32, i32, i32) {
    %c0_i32 = arith.constant 0 : i32
    %c0_i32_0 = arith.constant 0 : i32
    %c0_i32_1 = arith.constant 0 : i32
    return %c0_i32, %arg1, %arg0, %c0_i32_0 : i32, i32, i32, i32
  }
  func.func @transform_1(%arg0: i32, %arg1: i32) -> (i32, i32, i32) {
    %c0_i32 = arith.constant 0 : i32
    %c0_i32_0 = arith.constant 0 : i32
    %c0_i32_1 = arith.constant 0 : i32
    %c0_i32_2 = arith.constant 0 : i32
    return %c0_i32, %c0_i32_0, %c0_i32_1 : i32, i32, i32
  }
  func.func @transform_2(%arg0: i32, %arg1: i32) -> (i32, i32) {
    %c0_i32 = arith.constant 0 : i32
    %c0_i32_0 = arith.constant 0 : i32
    return %arg0, %c0_i32 : i32, i32
  }
}

module attributes {stable_mosaic.version = 11 : i64} {
  func.func @_reverse_step_and_linear_kernel(%arg0: memref<8x32xf32, #tpu.memory_space<vmem>>, %arg1: memref<8x32xf32, #tpu.memory_space<vmem>>, %arg2: memref<32x128xbf16, #tpu.memory_space<vmem>>, %arg3: memref<1x128xf32, #tpu.memory_space<vmem>>, %arg4: memref<32x30xbf16, #tpu.memory_space<vmem>>, %arg5: memref<32x30xbf16, #tpu.memory_space<vmem>>, %arg6: memref<1x30xf32, #tpu.memory_space<vmem>>, %arg7: memref<8x30xf32, #tpu.memory_space<vmem>>) attributes {dimension_semantics = [], scalar_prefetch = 0 : i64, scratch_operands = 0 : i64, tpu.core_type = #tpu.core_type<tc>} {
    %c0 = arith.constant 0 : index
    %c0_0 = arith.constant 0 : index
    %0 = vector.load %arg1[%c0, %c0_0] : memref<8x32xf32, #tpu.memory_space<vmem>>, vector<8x32xf32>
    %1 = arith.truncf %0 : vector<8x32xf32> to vector<8x32xbf16>
    %c0_1 = arith.constant 0 : index
    %c0_2 = arith.constant 0 : index
    %2 = vector.load %arg2[%c0_1, %c0_2] : memref<32x128xbf16, #tpu.memory_space<vmem>>, vector<32x128xbf16>
    %cst = arith.constant dense<0.000000e+00> : vector<8x128xf32>
    %3 = tpu.matmul %1, %2, %cst {dimension_numbers = #tpu.dot_dimension_numbers<[1], [0], [0], [1], [0, 0, 1, 1], [], []>} : vector<8x32xbf16>, vector<32x128xbf16>, vector<8x128xf32> -> vector<8x128xf32>
    %c0_3 = arith.constant 0 : index
    %c0_4 = arith.constant 0 : index
    %4 = vector.load %arg3[%c0_3, %c0_4] : memref<1x128xf32, #tpu.memory_space<vmem>>, vector<1x128xf32>
    %5 = vector.broadcast %4 : vector<1x128xf32> to vector<8x128xf32>
    %6 = arith.addf %3, %5 : vector<8x128xf32>
    %7 = vector.extract_strided_slice %6 {offsets = [0, 0], sizes = [8, 32], strides = [1, 1]} : vector<8x128xf32> to vector<8x32xf32>
    %8 = arith.negf %7 : vector<8x32xf32>
    %9 = math.exp %8 : vector<8x32xf32>
    %cst_5 = arith.constant 1.000000e+00 : f32
    %10 = vector.broadcast %cst_5 : f32 to vector<8x32xf32>
    %11 = arith.addf %10, %9 : vector<8x32xf32>
    %12 = arith.divf %10, %11 : vector<8x32xf32>
    %13 = vector.extract_strided_slice %6 {offsets = [0, 64], sizes = [8, 32], strides = [1, 1]} : vector<8x128xf32> to vector<8x32xf32>
    %14 = math.tanh %13 : vector<8x32xf32>
    %15 = vector.extract_strided_slice %6 {offsets = [0, 96], sizes = [8, 32], strides = [1, 1]} : vector<8x128xf32> to vector<8x32xf32>
    %16 = arith.negf %15 : vector<8x32xf32>
    %17 = math.exp %16 : vector<8x32xf32>
    %cst_6 = arith.constant 1.000000e+00 : f32
    %18 = vector.broadcast %cst_6 : f32 to vector<8x32xf32>
    %19 = arith.addf %18, %17 : vector<8x32xf32>
    %20 = arith.divf %18, %19 : vector<8x32xf32>
    %21 = arith.mulf %12, %14 : vector<8x32xf32>
    %22 = math.tanh %21 : vector<8x32xf32>
    %23 = arith.mulf %20, %22 : vector<8x32xf32>
    %c0_7 = arith.constant 0 : index
    %c0_8 = arith.constant 0 : index
    %24 = vector.load %arg0[%c0_7, %c0_8] : memref<8x32xf32, #tpu.memory_space<vmem>>, vector<8x32xf32>
    %25 = arith.truncf %24 : vector<8x32xf32> to vector<8x32xbf16>
    %c0_9 = arith.constant 0 : index
    %c0_10 = arith.constant 0 : index
    %26 = vector.load %arg4[%c0_9, %c0_10] : memref<32x30xbf16, #tpu.memory_space<vmem>>, vector<32x30xbf16>
    %cst_11 = arith.constant dense<0.000000e+00> : vector<8x30xf32>
    %27 = tpu.matmul %25, %26, %cst_11 {dimension_numbers = #tpu.dot_dimension_numbers<[1], [0], [0], [1], [0, 0, 1, 1], [], []>} : vector<8x32xbf16>, vector<32x30xbf16>, vector<8x30xf32> -> vector<8x30xf32>
    %28 = arith.truncf %23 : vector<8x32xf32> to vector<8x32xbf16>
    %c0_12 = arith.constant 0 : index
    %c0_13 = arith.constant 0 : index
    %29 = vector.load %arg5[%c0_12, %c0_13] : memref<32x30xbf16, #tpu.memory_space<vmem>>, vector<32x30xbf16>
    %cst_14 = arith.constant dense<0.000000e+00> : vector<8x30xf32>
    %30 = tpu.matmul %28, %29, %cst_14 {dimension_numbers = #tpu.dot_dimension_numbers<[1], [0], [0], [1], [0, 0, 1, 1], [], []>} : vector<8x32xbf16>, vector<32x30xbf16>, vector<8x30xf32> -> vector<8x30xf32>
    %31 = arith.addf %27, %30 : vector<8x30xf32>
    %c0_15 = arith.constant 0 : index
    %c0_16 = arith.constant 0 : index
    %32 = vector.load %arg6[%c0_15, %c0_16] : memref<1x30xf32, #tpu.memory_space<vmem>>, vector<1x30xf32>
    %33 = vector.broadcast %32 : vector<1x30xf32> to vector<8x30xf32>
    %34 = arith.addf %31, %33 : vector<8x30xf32>
    %c0_17 = arith.constant 0 : index
    %c0_18 = arith.constant 0 : index
    %35 = vector.load %arg7[%c0_17, %c0_18] : memref<8x30xf32, #tpu.memory_space<vmem>>, vector<8x30xf32>
    tpu.vector_store %arg7[%c0_17, %c0_18], %34 {strides = array<i32>} : memref<8x30xf32, #tpu.memory_space<vmem>>, vector<8x30xf32>,
    return
  }
}

module attributes {stable_mosaic.version = 11 : i64} {
  func.func @_lstm_recurrence_kernel(%arg0: i32, %arg1: i32, %arg2: memref<4x8x8x32xf32, #tpu.memory_space<vmem>>, %arg3: memref<4x32x32xbf16, #tpu.memory_space<vmem>>, %arg4: memref<8x32xf32, #tpu.memory_space<vmem>>, %arg5: memref<8x32xf32, #tpu.memory_space<vmem>>, %arg6: memref<8x32xf32, #tpu.memory_space<vmem>>) attributes {dimension_semantics = [#tpu.dimension_semantics<parallel>, #tpu.dimension_semantics<arbitrary>], iteration_bounds = array<i64: 1, 1>, scalar_prefetch = 0 : i64, scratch_operands = 2 : i64, tpu.core_type = #tpu.core_type<tc>, window_params = [{transform_indices = @transform_0, window_bounds = array<i64: 4, 8, 8, 32>}, {pipeline_mode = #tpu.pipeline_mode<synchronous>, transform_indices = @transform_1, window_bounds = array<i64: 4, 32, 32>}, {transform_indices = @transform_2, window_bounds = array<i64: 8, 32>}]} {
    %c0_i32 = arith.constant 0 : i32
    %0 = arith.cmpi eq, %arg1, %c0_i32 : i32
    %1 = arith.extui %0 : i1 to i32
    %c0_i32_0 = arith.constant 0 : i32
    %2 = arith.cmpi ne, %1, %c0_i32_0 : i32
    scf.if %2 {
      %cst_198 = arith.constant 0.000000e+00 : f32
      %320 = vector.broadcast %cst_198 : f32 to vector<8x32xf32>
      %c0_199 = arith.constant 0 : index
      %c0_200 = arith.constant 0 : index
      %321 = vector.load %arg5[%c0_199, %c0_200] : memref<8x32xf32, #tpu.memory_space<vmem>>, vector<8x32xf32>
      tpu.vector_store %arg5[%c0_199, %c0_200], %320 {strides = array<i32>} : memref<8x32xf32, #tpu.memory_space<vmem>>, vector<8x32xf32>,
      %cst_201 = arith.constant 0.000000e+00 : f32
      %322 = vector.broadcast %cst_201 : f32 to vector<8x32xf32>
      %c0_202 = arith.constant 0 : index
      %c0_203 = arith.constant 0 : index
      %323 = vector.load %arg6[%c0_202, %c0_203] : memref<8x32xf32, #tpu.memory_space<vmem>>, vector<8x32xf32>
      tpu.vector_store %arg6[%c0_202, %c0_203], %322 {strides = array<i32>} : memref<8x32xf32, #tpu.memory_space<vmem>>, vector<8x32xf32>,
    } else {
    }
    %c0 = arith.constant 0 : index
    %c0_1 = arith.constant 0 : index
    %c0_2 = arith.constant 0 : index
    %3 = vector.load %arg3[%c0, %c0_1, %c0_2] : memref<4x32x32xbf16, #tpu.memory_space<vmem>>, vector<1x32x32xbf16>
    %4 = vector.shape_cast %3 : vector<1x32x32xbf16> to vector<32x32xbf16>
    %c1 = arith.constant 1 : index
    %c0_3 = arith.constant 0 : index
    %c0_4 = arith.constant 0 : index
    %5 = vector.load %arg3[%c1, %c0_3, %c0_4] : memref<4x32x32xbf16, #tpu.memory_space<vmem>>, vector<1x32x32xbf16>
    %6 = vector.shape_cast %5 : vector<1x32x32xbf16> to vector<32x32xbf16>
    %c2 = arith.constant 2 : index
    %c0_5 = arith.constant 0 : index
    %c0_6 = arith.constant 0 : index
    %7 = vector.load %arg3[%c2, %c0_5, %c0_6] : memref<4x32x32xbf16, #tpu.memory_space<vmem>>, vector<1x32x32xbf16>
    %8 = vector.shape_cast %7 : vector<1x32x32xbf16> to vector<32x32xbf16>
    %c3 = arith.constant 3 : index
    %c0_7 = arith.constant 0 : index
    %c0_8 = arith.constant 0 : index
    %9 = vector.load %arg3[%c3, %c0_7, %c0_8] : memref<4x32x32xbf16, #tpu.memory_space<vmem>>, vector<1x32x32xbf16>
    %10 = vector.shape_cast %9 : vector<1x32x32xbf16> to vector<32x32xbf16>
    %c0_9 = arith.constant 0 : index
    %c0_10 = arith.constant 0 : index
    %11 = vector.load %arg5[%c0_9, %c0_10] : memref<8x32xf32, #tpu.memory_space<vmem>>, vector<8x32xf32>
    %c0_11 = arith.constant 0 : index
    %c0_12 = arith.constant 0 : index
    %12 = vector.load %arg6[%c0_11, %c0_12] : memref<8x32xf32, #tpu.memory_space<vmem>>, vector<8x32xf32>
    %13 = arith.truncf %11 : vector<8x32xf32> to vector<8x32xbf16>
    %c0_13 = arith.constant 0 : index
    %c0_14 = arith.constant 0 : index
    %c0_15 = arith.constant 0 : index
    %c0_16 = arith.constant 0 : index
    %14 = vector.load %arg2[%c0_13, %c0_14, %c0_15, %c0_16] : memref<4x8x8x32xf32, #tpu.memory_space<vmem>>, vector<1x1x8x32xf32>
    %15 = vector.shape_cast %14 : vector<1x1x8x32xf32> to vector<8x32xf32>
    %cst = arith.constant dense<0.000000e+00> : vector<8x32xf32>
    %16 = tpu.matmul %13, %4, %cst {dimension_numbers = #tpu.dot_dimension_numbers<[1], [0], [0], [1], [0, 0, 1, 1], [], []>} : vector<8x32xbf16>, vector<32x32xbf16>, vector<8x32xf32> -> vector<8x32xf32>
    %17 = arith.addf %15, %16 : vector<8x32xf32>
    %c1_17 = arith.constant 1 : index
    %c0_18 = arith.constant 0 : index
    %c0_19 = arith.constant 0 : index
    %c0_20 = arith.constant 0 : index
    %18 = vector.load %arg2[%c1_17, %c0_18, %c0_19, %c0_20] : memref<4x8x8x32xf32, #tpu.memory_space<vmem>>, vector<1x1x8x32xf32>
    %19 = vector.shape_cast %18 : vector<1x1x8x32xf32> to vector<8x32xf32>
    %cst_21 = arith.constant dense<0.000000e+00> : vector<8x32xf32>
    %20 = tpu.matmul %13, %6, %cst_21 {dimension_numbers = #tpu.dot_dimension_numbers<[1], [0], [0], [1], [0, 0, 1, 1], [], []>} : vector<8x32xbf16>, vector<32x32xbf16>, vector<8x32xf32> -> vector<8x32xf32>
    %21 = arith.addf %19, %20 : vector<8x32xf32>
    %c2_22 = arith.constant 2 : index
    %c0_23 = arith.constant 0 : index
    %c0_24 = arith.constant 0 : index
    %c0_25 = arith.constant 0 : index
    %22 = vector.load %arg2[%c2_22, %c0_23, %c0_24, %c0_25] : memref<4x8x8x32xf32, #tpu.memory_space<vmem>>, vector<1x1x8x32xf32>
    %23 = vector.shape_cast %22 : vector<1x1x8x32xf32> to vector<8x32xf32>
    %cst_26 = arith.constant dense<0.000000e+00> : vector<8x32xf32>
    %24 = tpu.matmul %13, %8, %cst_26 {dimension_numbers = #tpu.dot_dimension_numbers<[1], [0], [0], [1], [0, 0, 1, 1], [], []>} : vector<8x32xbf16>, vector<32x32xbf16>, vector<8x32xf32> -> vector<8x32xf32>
    %25 = arith.addf %23, %24 : vector<8x32xf32>
    %c3_27 = arith.constant 3 : index
    %c0_28 = arith.constant 0 : index
    %c0_29 = arith.constant 0 : index
    %c0_30 = arith.constant 0 : index
    %26 = vector.load %arg2[%c3_27, %c0_28, %c0_29, %c0_30] : memref<4x8x8x32xf32, #tpu.memory_space<vmem>>, vector<1x1x8x32xf32>
    %27 = vector.shape_cast %26 : vector<1x1x8x32xf32> to vector<8x32xf32>
    %cst_31 = arith.constant dense<0.000000e+00> : vector<8x32xf32>
    %28 = tpu.matmul %13, %10, %cst_31 {dimension_numbers = #tpu.dot_dimension_numbers<[1], [0], [0], [1], [0, 0, 1, 1], [], []>} : vector<8x32xbf16>, vector<32x32xbf16>, vector<8x32xf32> -> vector<8x32xf32>
    %29 = arith.addf %27, %28 : vector<8x32xf32>
    %30 = arith.negf %17 : vector<8x32xf32>
    %31 = math.exp %30 : vector<8x32xf32>
    %cst_32 = arith.constant 1.000000e+00 : f32
    %32 = vector.broadcast %cst_32 : f32 to vector<8x32xf32>
    %33 = arith.addf %32, %31 : vector<8x32xf32>
    %34 = arith.divf %32, %33 : vector<8x32xf32>
    %35 = arith.negf %21 : vector<8x32xf32>
    %36 = math.exp %35 : vector<8x32xf32>
    %cst_33 = arith.constant 1.000000e+00 : f32
    %37 = vector.broadcast %cst_33 : f32 to vector<8x32xf32>
    %38 = arith.addf %37, %36 : vector<8x32xf32>
    %39 = arith.divf %37, %38 : vector<8x32xf32>
    %40 = math.tanh %25 : vector<8x32xf32>
    %41 = arith.negf %29 : vector<8x32xf32>
    %42 = math.exp %41 : vector<8x32xf32>
    %cst_34 = arith.constant 1.000000e+00 : f32
    %43 = vector.broadcast %cst_34 : f32 to vector<8x32xf32>
    %44 = arith.addf %43, %42 : vector<8x32xf32>
    %45 = arith.divf %43, %44 : vector<8x32xf32>
    %46 = arith.mulf %39, %12 : vector<8x32xf32>
    %47 = arith.mulf %34, %40 : vector<8x32xf32>
    %48 = arith.addf %46, %47 : vector<8x32xf32>
    %49 = math.tanh %48 : vector<8x32xf32>
    %50 = arith.mulf %45, %49 : vector<8x32xf32>
    %51 = arith.truncf %50 : vector<8x32xf32> to vector<8x32xbf16>
    %c0_35 = arith.constant 0 : index
    %c1_36 = arith.constant 1 : index
    %c0_37 = arith.constant 0 : index
    %c0_38 = arith.constant 0 : index
    %52 = vector.load %arg2[%c0_35, %c1_36, %c0_37, %c0_38] : memref<4x8x8x32xf32, #tpu.memory_space<vmem>>, vector<1x1x8x32xf32>
    %53 = vector.shape_cast %52 : vector<1x1x8x32xf32> to vector<8x32xf32>
    %cst_39 = arith.constant dense<0.000000e+00> : vector<8x32xf32>
    %54 = tpu.matmul %51, %4, %cst_39 {dimension_numbers = #tpu.dot_dimension_numbers<[1], [0], [0], [1], [0, 0, 1, 1], [], []>} : vector<8x32xbf16>, vector<32x32xbf16>, vector<8x32xf32> -> vector<8x32xf32>
    %55 = arith.addf %53, %54 : vector<8x32xf32>
    %c1_40 = arith.constant 1 : index
    %c1_41 = arith.constant 1 : index
    %c0_42 = arith.constant 0 : index
    %c0_43 = arith.constant 0 : index
    %56 = vector.load %arg2[%c1_40, %c1_41, %c0_42, %c0_43] : memref<4x8x8x32xf32, #tpu.memory_space<vmem>>, vector<1x1x8x32xf32>
    %57 = vector.shape_cast %56 : vector<1x1x8x32xf32> to vector<8x32xf32>
    %cst_44 = arith.constant dense<0.000000e+00> : vector<8x32xf32>
    %58 = tpu.matmul %51, %6, %cst_44 {dimension_numbers = #tpu.dot_dimension_numbers<[1], [0], [0], [1], [0, 0, 1, 1], [], []>} : vector<8x32xbf16>, vector<32x32xbf16>, vector<8x32xf32> -> vector<8x32xf32>
    %59 = arith.addf %57, %58 : vector<8x32xf32>
    %c2_45 = arith.constant 2 : index
    %c1_46 = arith.constant 1 : index
    %c0_47 = arith.constant 0 : index
    %c0_48 = arith.constant 0 : index
    %60 = vector.load %arg2[%c2_45, %c1_46, %c0_47, %c0_48] : memref<4x8x8x32xf32, #tpu.memory_space<vmem>>, vector<1x1x8x32xf32>
    %61 = vector.shape_cast %60 : vector<1x1x8x32xf32> to vector<8x32xf32>
    %cst_49 = arith.constant dense<0.000000e+00> : vector<8x32xf32>
    %62 = tpu.matmul %51, %8, %cst_49 {dimension_numbers = #tpu.dot_dimension_numbers<[1], [0], [0], [1], [0, 0, 1, 1], [], []>} : vector<8x32xbf16>, vector<32x32xbf16>, vector<8x32xf32> -> vector<8x32xf32>
    %63 = arith.addf %61, %62 : vector<8x32xf32>
    %c3_50 = arith.constant 3 : index
    %c1_51 = arith.constant 1 : index
    %c0_52 = arith.constant 0 : index
    %c0_53 = arith.constant 0 : index
    %64 = vector.load %arg2[%c3_50, %c1_51, %c0_52, %c0_53] : memref<4x8x8x32xf32, #tpu.memory_space<vmem>>, vector<1x1x8x32xf32>
    %65 = vector.shape_cast %64 : vector<1x1x8x32xf32> to vector<8x32xf32>
    %cst_54 = arith.constant dense<0.000000e+00> : vector<8x32xf32>
    %66 = tpu.matmul %51, %10, %cst_54 {dimension_numbers = #tpu.dot_dimension_numbers<[1], [0], [0], [1], [0, 0, 1, 1], [], []>} : vector<8x32xbf16>, vector<32x32xbf16>, vector<8x32xf32> -> vector<8x32xf32>
    %67 = arith.addf %65, %66 : vector<8x32xf32>
    %68 = arith.negf %55 : vector<8x32xf32>
    %69 = math.exp %68 : vector<8x32xf32>
    %cst_55 = arith.constant 1.000000e+00 : f32
    %70 = vector.broadcast %cst_55 : f32 to vector<8x32xf32>
    %71 = arith.addf %70, %69 : vector<8x32xf32>
    %72 = arith.divf %70, %71 : vector<8x32xf32>
    %73 = arith.negf %59 : vector<8x32xf32>
    %74 = math.exp %73 : vector<8x32xf32>
    %cst_56 = arith.constant 1.000000e+00 : f32
    %75 = vector.broadcast %cst_56 : f32 to vector<8x32xf32>
    %76 = arith.addf %75, %74 : vector<8x32xf32>
    %77 = arith.divf %75, %76 : vector<8x32xf32>
    %78 = math.tanh %63 : vector<8x32xf32>
    %79 = arith.negf %67 : vector<8x32xf32>
    %80 = math.exp %79 : vector<8x32xf32>
    %cst_57 = arith.constant 1.000000e+00 : f32
    %81 = vector.broadcast %cst_57 : f32 to vector<8x32xf32>
    %82 = arith.addf %81, %80 : vector<8x32xf32>
    %83 = arith.divf %81, %82 : vector<8x32xf32>
    %84 = arith.mulf %77, %48 : vector<8x32xf32>
    %85 = arith.mulf %72, %78 : vector<8x32xf32>
    %86 = arith.addf %84, %85 : vector<8x32xf32>
    %87 = math.tanh %86 : vector<8x32xf32>
    %88 = arith.mulf %83, %87 : vector<8x32xf32>
    %89 = arith.truncf %88 : vector<8x32xf32> to vector<8x32xbf16>
    %c0_58 = arith.constant 0 : index
    %c2_59 = arith.constant 2 : index
    %c0_60 = arith.constant 0 : index
    %c0_61 = arith.constant 0 : index
    %90 = vector.load %arg2[%c0_58, %c2_59, %c0_60, %c0_61] : memref<4x8x8x32xf32, #tpu.memory_space<vmem>>, vector<1x1x8x32xf32>
    %91 = vector.shape_cast %90 : vector<1x1x8x32xf32> to vector<8x32xf32>
    %cst_62 = arith.constant dense<0.000000e+00> : vector<8x32xf32>
    %92 = tpu.matmul %89, %4, %cst_62 {dimension_numbers = #tpu.dot_dimension_numbers<[1], [0], [0], [1], [0, 0, 1, 1], [], []>} : vector<8x32xbf16>, vector<32x32xbf16>, vector<8x32xf32> -> vector<8x32xf32>
    %93 = arith.addf %91, %92 : vector<8x32xf32>
    %c1_63 = arith.constant 1 : index
    %c2_64 = arith.constant 2 : index
    %c0_65 = arith.constant 0 : index
    %c0_66 = arith.constant 0 : index
    %94 = vector.load %arg2[%c1_63, %c2_64, %c0_65, %c0_66] : memref<4x8x8x32xf32, #tpu.memory_space<vmem>>, vector<1x1x8x32xf32>
    %95 = vector.shape_cast %94 : vector<1x1x8x32xf32> to vector<8x32xf32>
    %cst_67 = arith.constant dense<0.000000e+00> : vector<8x32xf32>
    %96 = tpu.matmul %89, %6, %cst_67 {dimension_numbers = #tpu.dot_dimension_numbers<[1], [0], [0], [1], [0, 0, 1, 1], [], []>} : vector<8x32xbf16>, vector<32x32xbf16>, vector<8x32xf32> -> vector<8x32xf32>
    %97 = arith.addf %95, %96 : vector<8x32xf32>
    %c2_68 = arith.constant 2 : index
    %c2_69 = arith.constant 2 : index
    %c0_70 = arith.constant 0 : index
    %c0_71 = arith.constant 0 : index
    %98 = vector.load %arg2[%c2_68, %c2_69, %c0_70, %c0_71] : memref<4x8x8x32xf32, #tpu.memory_space<vmem>>, vector<1x1x8x32xf32>
    %99 = vector.shape_cast %98 : vector<1x1x8x32xf32> to vector<8x32xf32>
    %cst_72 = arith.constant dense<0.000000e+00> : vector<8x32xf32>
    %100 = tpu.matmul %89, %8, %cst_72 {dimension_numbers = #tpu.dot_dimension_numbers<[1], [0], [0], [1], [0, 0, 1, 1], [], []>} : vector<8x32xbf16>, vector<32x32xbf16>, vector<8x32xf32> -> vector<8x32xf32>
    %101 = arith.addf %99, %100 : vector<8x32xf32>
    %c3_73 = arith.constant 3 : index
    %c2_74 = arith.constant 2 : index
    %c0_75 = arith.constant 0 : index
    %c0_76 = arith.constant 0 : index
    %102 = vector.load %arg2[%c3_73, %c2_74, %c0_75, %c0_76] : memref<4x8x8x32xf32, #tpu.memory_space<vmem>>, vector<1x1x8x32xf32>
    %103 = vector.shape_cast %102 : vector<1x1x8x32xf32> to vector<8x32xf32>
    %cst_77 = arith.constant dense<0.000000e+00> : vector<8x32xf32>
    %104 = tpu.matmul %89, %10, %cst_77 {dimension_numbers = #tpu.dot_dimension_numbers<[1], [0], [0], [1], [0, 0, 1, 1], [], []>} : vector<8x32xbf16>, vector<32x32xbf16>, vector<8x32xf32> -> vector<8x32xf32>
    %105 = arith.addf %103, %104 : vector<8x32xf32>
    %106 = arith.negf %93 : vector<8x32xf32>
    %107 = math.exp %106 : vector<8x32xf32>
    %cst_78 = arith.constant 1.000000e+00 : f32
    %108 = vector.broadcast %cst_78 : f32 to vector<8x32xf32>
    %109 = arith.addf %108, %107 : vector<8x32xf32>
    %110 = arith.divf %108, %109 : vector<8x32xf32>
    %111 = arith.negf %97 : vector<8x32xf32>
    %112 = math.exp %111 : vector<8x32xf32>
    %cst_79 = arith.constant 1.000000e+00 : f32
    %113 = vector.broadcast %cst_79 : f32 to vector<8x32xf32>
    %114 = arith.addf %113, %112 : vector<8x32xf32>
    %115 = arith.divf %113, %114 : vector<8x32xf32>
    %116 = math.tanh %101 : vector<8x32xf32>
    %117 = arith.negf %105 : vector<8x32xf32>
    %118 = math.exp %117 : vector<8x32xf32>
    %cst_80 = arith.constant 1.000000e+00 : f32
    %119 = vector.broadcast %cst_80 : f32 to vector<8x32xf32>
    %120 = arith.addf %119, %118 : vector<8x32xf32>
    %121 = arith.divf %119, %120 : vector<8x32xf32>
    %122 = arith.mulf %115, %86 : vector<8x32xf32>
    %123 = arith.mulf %110, %116 : vector<8x32xf32>
    %124 = arith.addf %122, %123 : vector<8x32xf32>
    %125 = math.tanh %124 : vector<8x32xf32>
    %126 = arith.mulf %121, %125 : vector<8x32xf32>
    %127 = arith.truncf %126 : vector<8x32xf32> to vector<8x32xbf16>
    %c0_81 = arith.constant 0 : index
    %c3_82 = arith.constant 3 : index
    %c0_83 = arith.constant 0 : index
    %c0_84 = arith.constant 0 : index
    %128 = vector.load %arg2[%c0_81, %c3_82, %c0_83, %c0_84] : memref<4x8x8x32xf32, #tpu.memory_space<vmem>>, vector<1x1x8x32xf32>
    %129 = vector.shape_cast %128 : vector<1x1x8x32xf32> to vector<8x32xf32>
    %cst_85 = arith.constant dense<0.000000e+00> : vector<8x32xf32>
    %130 = tpu.matmul %127, %4, %cst_85 {dimension_numbers = #tpu.dot_dimension_numbers<[1], [0], [0], [1], [0, 0, 1, 1], [], []>} : vector<8x32xbf16>, vector<32x32xbf16>, vector<8x32xf32> -> vector<8x32xf32>
    %131 = arith.addf %129, %130 : vector<8x32xf32>
    %c1_86 = arith.constant 1 : index
    %c3_87 = arith.constant 3 : index
    %c0_88 = arith.constant 0 : index
    %c0_89 = arith.constant 0 : index
    %132 = vector.load %arg2[%c1_86, %c3_87, %c0_88, %c0_89] : memref<4x8x8x32xf32, #tpu.memory_space<vmem>>, vector<1x1x8x32xf32>
    %133 = vector.shape_cast %132 : vector<1x1x8x32xf32> to vector<8x32xf32>
    %cst_90 = arith.constant dense<0.000000e+00> : vector<8x32xf32>
    %134 = tpu.matmul %127, %6, %cst_90 {dimension_numbers = #tpu.dot_dimension_numbers<[1], [0], [0], [1], [0, 0, 1, 1], [], []>} : vector<8x32xbf16>, vector<32x32xbf16>, vector<8x32xf32> -> vector<8x32xf32>
    %135 = arith.addf %133, %134 : vector<8x32xf32>
    %c2_91 = arith.constant 2 : index
    %c3_92 = arith.constant 3 : index
    %c0_93 = arith.constant 0 : index
    %c0_94 = arith.constant 0 : index
    %136 = vector.load %arg2[%c2_91, %c3_92, %c0_93, %c0_94] : memref<4x8x8x32xf32, #tpu.memory_space<vmem>>, vector<1x1x8x32xf32>
    %137 = vector.shape_cast %136 : vector<1x1x8x32xf32> to vector<8x32xf32>
    %cst_95 = arith.constant dense<0.000000e+00> : vector<8x32xf32>
    %138 = tpu.matmul %127, %8, %cst_95 {dimension_numbers = #tpu.dot_dimension_numbers<[1], [0], [0], [1], [0, 0, 1, 1], [], []>} : vector<8x32xbf16>, vector<32x32xbf16>, vector<8x32xf32> -> vector<8x32xf32>
    %139 = arith.addf %137, %138 : vector<8x32xf32>
    %c3_96 = arith.constant 3 : index
    %c3_97 = arith.constant 3 : index
    %c0_98 = arith.constant 0 : index
    %c0_99 = arith.constant 0 : index
    %140 = vector.load %arg2[%c3_96, %c3_97, %c0_98, %c0_99] : memref<4x8x8x32xf32, #tpu.memory_space<vmem>>, vector<1x1x8x32xf32>
    %141 = vector.shape_cast %140 : vector<1x1x8x32xf32> to vector<8x32xf32>
    %cst_100 = arith.constant dense<0.000000e+00> : vector<8x32xf32>
    %142 = tpu.matmul %127, %10, %cst_100 {dimension_numbers = #tpu.dot_dimension_numbers<[1], [0], [0], [1], [0, 0, 1, 1], [], []>} : vector<8x32xbf16>, vector<32x32xbf16>, vector<8x32xf32> -> vector<8x32xf32>
    %143 = arith.addf %141, %142 : vector<8x32xf32>
    %144 = arith.negf %131 : vector<8x32xf32>
    %145 = math.exp %144 : vector<8x32xf32>
    %cst_101 = arith.constant 1.000000e+00 : f32
    %146 = vector.broadcast %cst_101 : f32 to vector<8x32xf32>
    %147 = arith.addf %146, %145 : vector<8x32xf32>
    %148 = arith.divf %146, %147 : vector<8x32xf32>
    %149 = arith.negf %135 : vector<8x32xf32>
    %150 = math.exp %149 : vector<8x32xf32>
    %cst_102 = arith.constant 1.000000e+00 : f32
    %151 = vector.broadcast %cst_102 : f32 to vector<8x32xf32>
    %152 = arith.addf %151, %150 : vector<8x32xf32>
    %153 = arith.divf %151, %152 : vector<8x32xf32>
    %154 = math.tanh %139 : vector<8x32xf32>
    %155 = arith.negf %143 : vector<8x32xf32>
    %156 = math.exp %155 : vector<8x32xf32>
    %cst_103 = arith.constant 1.000000e+00 : f32
    %157 = vector.broadcast %cst_103 : f32 to vector<8x32xf32>
    %158 = arith.addf %157, %156 : vector<8x32xf32>
    %159 = arith.divf %157, %158 : vector<8x32xf32>
    %160 = arith.mulf %153, %124 : vector<8x32xf32>
    %161 = arith.mulf %148, %154 : vector<8x32xf32>
    %162 = arith.addf %160, %161 : vector<8x32xf32>
    %163 = math.tanh %162 : vector<8x32xf32>
    %164 = arith.mulf %159, %163 : vector<8x32xf32>
    %165 = arith.truncf %164 : vector<8x32xf32> to vector<8x32xbf16>
    %c0_104 = arith.constant 0 : index
    %c4 = arith.constant 4 : index
    %c0_105 = arith.constant 0 : index
    %c0_106 = arith.constant 0 : index
    %166 = vector.load %arg2[%c0_104, %c4, %c0_105, %c0_106] : memref<4x8x8x32xf32, #tpu.memory_space<vmem>>, vector<1x1x8x32xf32>
    %167 = vector.shape_cast %166 : vector<1x1x8x32xf32> to vector<8x32xf32>
    %cst_107 = arith.constant dense<0.000000e+00> : vector<8x32xf32>
    %168 = tpu.matmul %165, %4, %cst_107 {dimension_numbers = #tpu.dot_dimension_numbers<[1], [0], [0], [1], [0, 0, 1, 1], [], []>} : vector<8x32xbf16>, vector<32x32xbf16>, vector<8x32xf32> -> vector<8x32xf32>
    %169 = arith.addf %167, %168 : vector<8x32xf32>
    %c1_108 = arith.constant 1 : index
    %c4_109 = arith.constant 4 : index
    %c0_110 = arith.constant 0 : index
    %c0_111 = arith.constant 0 : index
    %170 = vector.load %arg2[%c1_108, %c4_109, %c0_110, %c0_111] : memref<4x8x8x32xf32, #tpu.memory_space<vmem>>, vector<1x1x8x32xf32>
    %171 = vector.shape_cast %170 : vector<1x1x8x32xf32> to vector<8x32xf32>
    %cst_112 = arith.constant dense<0.000000e+00> : vector<8x32xf32>
    %172 = tpu.matmul %165, %6, %cst_112 {dimension_numbers = #tpu.dot_dimension_numbers<[1], [0], [0], [1], [0, 0, 1, 1], [], []>} : vector<8x32xbf16>, vector<32x32xbf16>, vector<8x32xf32> -> vector<8x32xf32>
    %173 = arith.addf %171, %172 : vector<8x32xf32>
    %c2_113 = arith.constant 2 : index
    %c4_114 = arith.constant 4 : index
    %c0_115 = arith.constant 0 : index
    %c0_116 = arith.constant 0 : index
    %174 = vector.load %arg2[%c2_113, %c4_114, %c0_115, %c0_116] : memref<4x8x8x32xf32, #tpu.memory_space<vmem>>, vector<1x1x8x32xf32>
    %175 = vector.shape_cast %174 : vector<1x1x8x32xf32> to vector<8x32xf32>
    %cst_117 = arith.constant dense<0.000000e+00> : vector<8x32xf32>
    %176 = tpu.matmul %165, %8, %cst_117 {dimension_numbers = #tpu.dot_dimension_numbers<[1], [0], [0], [1], [0, 0, 1, 1], [], []>} : vector<8x32xbf16>, vector<32x32xbf16>, vector<8x32xf32> -> vector<8x32xf32>
    %177 = arith.addf %175, %176 : vector<8x32xf32>
    %c3_118 = arith.constant 3 : index
    %c4_119 = arith.constant 4 : index
    %c0_120 = arith.constant 0 : index
    %c0_121 = arith.constant 0 : index
    %178 = vector.load %arg2[%c3_118, %c4_119, %c0_120, %c0_121] : memref<4x8x8x32xf32, #tpu.memory_space<vmem>>, vector<1x1x8x32xf32>
    %179 = vector.shape_cast %178 : vector<1x1x8x32xf32> to vector<8x32xf32>
    %cst_122 = arith.constant dense<0.000000e+00> : vector<8x32xf32>
    %180 = tpu.matmul %165, %10, %cst_122 {dimension_numbers = #tpu.dot_dimension_numbers<[1], [0], [0], [1], [0, 0, 1, 1], [], []>} : vector<8x32xbf16>, vector<32x32xbf16>, vector<8x32xf32> -> vector<8x32xf32>
    %181 = arith.addf %179, %180 : vector<8x32xf32>
    %182 = arith.negf %169 : vector<8x32xf32>
    %183 = math.exp %182 : vector<8x32xf32>
    %cst_123 = arith.constant 1.000000e+00 : f32
    %184 = vector.broadcast %cst_123 : f32 to vector<8x32xf32>
    %185 = arith.addf %184, %183 : vector<8x32xf32>
    %186 = arith.divf %184, %185 : vector<8x32xf32>
    %187 = arith.negf %173 : vector<8x32xf32>
    %188 = math.exp %187 : vector<8x32xf32>
    %cst_124 = arith.constant 1.000000e+00 : f32
    %189 = vector.broadcast %cst_124 : f32 to vector<8x32xf32>
    %190 = arith.addf %189, %188 : vector<8x32xf32>
    %191 = arith.divf %189, %190 : vector<8x32xf32>
    %192 = math.tanh %177 : vector<8x32xf32>
    %193 = arith.negf %181 : vector<8x32xf32>
    %194 = math.exp %193 : vector<8x32xf32>
    %cst_125 = arith.constant 1.000000e+00 : f32
    %195 = vector.broadcast %cst_125 : f32 to vector<8x32xf32>
    %196 = arith.addf %195, %194 : vector<8x32xf32>
    %197 = arith.divf %195, %196 : vector<8x32xf32>
    %198 = arith.mulf %191, %162 : vector<8x32xf32>
    %199 = arith.mulf %186, %192 : vector<8x32xf32>
    %200 = arith.addf %198, %199 : vector<8x32xf32>
    %201 = math.tanh %200 : vector<8x32xf32>
    %202 = arith.mulf %197, %201 : vector<8x32xf32>
    %203 = arith.truncf %202 : vector<8x32xf32> to vector<8x32xbf16>
    %c0_126 = arith.constant 0 : index
    %c5 = arith.constant 5 : index
    %c0_127 = arith.constant 0 : index
    %c0_128 = arith.constant 0 : index
    %204 = vector.load %arg2[%c0_126, %c5, %c0_127, %c0_128] : memref<4x8x8x32xf32, #tpu.memory_space<vmem>>, vector<1x1x8x32xf32>
    %205 = vector.shape_cast %204 : vector<1x1x8x32xf32> to vector<8x32xf32>
    %cst_129 = arith.constant dense<0.000000e+00> : vector<8x32xf32>
    %206 = tpu.matmul %203, %4, %cst_129 {dimension_numbers = #tpu.dot_dimension_numbers<[1], [0], [0], [1], [0, 0, 1, 1], [], []>} : vector<8x32xbf16>, vector<32x32xbf16>, vector<8x32xf32> -> vector<8x32xf32>
    %207 = arith.addf %205, %206 : vector<8x32xf32>
    %c1_130 = arith.constant 1 : index
    %c5_131 = arith.constant 5 : index
    %c0_132 = arith.constant 0 : index
    %c0_133 = arith.constant 0 : index
    %208 = vector.load %arg2[%c1_130, %c5_131, %c0_132, %c0_133] : memref<4x8x8x32xf32, #tpu.memory_space<vmem>>, vector<1x1x8x32xf32>
    %209 = vector.shape_cast %208 : vector<1x1x8x32xf32> to vector<8x32xf32>
    %cst_134 = arith.constant dense<0.000000e+00> : vector<8x32xf32>
    %210 = tpu.matmul %203, %6, %cst_134 {dimension_numbers = #tpu.dot_dimension_numbers<[1], [0], [0], [1], [0, 0, 1, 1], [], []>} : vector<8x32xbf16>, vector<32x32xbf16>, vector<8x32xf32> -> vector<8x32xf32>
    %211 = arith.addf %209, %210 : vector<8x32xf32>
    %c2_135 = arith.constant 2 : index
    %c5_136 = arith.constant 5 : index
    %c0_137 = arith.constant 0 : index
    %c0_138 = arith.constant 0 : index
    %212 = vector.load %arg2[%c2_135, %c5_136, %c0_137, %c0_138] : memref<4x8x8x32xf32, #tpu.memory_space<vmem>>, vector<1x1x8x32xf32>
    %213 = vector.shape_cast %212 : vector<1x1x8x32xf32> to vector<8x32xf32>
    %cst_139 = arith.constant dense<0.000000e+00> : vector<8x32xf32>
    %214 = tpu.matmul %203, %8, %cst_139 {dimension_numbers = #tpu.dot_dimension_numbers<[1], [0], [0], [1], [0, 0, 1, 1], [], []>} : vector<8x32xbf16>, vector<32x32xbf16>, vector<8x32xf32> -> vector<8x32xf32>
    %215 = arith.addf %213, %214 : vector<8x32xf32>
    %c3_140 = arith.constant 3 : index
    %c5_141 = arith.constant 5 : index
    %c0_142 = arith.constant 0 : index
    %c0_143 = arith.constant 0 : index
    %216 = vector.load %arg2[%c3_140, %c5_141, %c0_142, %c0_143] : memref<4x8x8x32xf32, #tpu.memory_space<vmem>>, vector<1x1x8x32xf32>
    %217 = vector.shape_cast %216 : vector<1x1x8x32xf32> to vector<8x32xf32>
    %cst_144 = arith.constant dense<0.000000e+00> : vector<8x32xf32>
    %218 = tpu.matmul %203, %10, %cst_144 {dimension_numbers = #tpu.dot_dimension_numbers<[1], [0], [0], [1], [0, 0, 1, 1], [], []>} : vector<8x32xbf16>, vector<32x32xbf16>, vector<8x32xf32> -> vector<8x32xf32>
    %219 = arith.addf %217, %218 : vector<8x32xf32>
    %220 = arith.negf %207 : vector<8x32xf32>
    %221 = math.exp %220 : vector<8x32xf32>
    %cst_145 = arith.constant 1.000000e+00 : f32
    %222 = vector.broadcast %cst_145 : f32 to vector<8x32xf32>
    %223 = arith.addf %222, %221 : vector<8x32xf32>
    %224 = arith.divf %222, %223 : vector<8x32xf32>
    %225 = arith.negf %211 : vector<8x32xf32>
    %226 = math.exp %225 : vector<8x32xf32>
    %cst_146 = arith.constant 1.000000e+00 : f32
    %227 = vector.broadcast %cst_146 : f32 to vector<8x32xf32>
    %228 = arith.addf %227, %226 : vector<8x32xf32>
    %229 = arith.divf %227, %228 : vector<8x32xf32>
    %230 = math.tanh %215 : vector<8x32xf32>
    %231 = arith.negf %219 : vector<8x32xf32>
    %232 = math.exp %231 : vector<8x32xf32>
    %cst_147 = arith.constant 1.000000e+00 : f32
    %233 = vector.broadcast %cst_147 : f32 to vector<8x32xf32>
    %234 = arith.addf %233, %232 : vector<8x32xf32>
    %235 = arith.divf %233, %234 : vector<8x32xf32>
    %236 = arith.mulf %229, %200 : vector<8x32xf32>
    %237 = arith.mulf %224, %230 : vector<8x32xf32>
    %238 = arith.addf %236, %237 : vector<8x32xf32>
    %239 = math.tanh %238 : vector<8x32xf32>
    %240 = arith.mulf %235, %239 : vector<8x32xf32>
    %241 = arith.truncf %240 : vector<8x32xf32> to vector<8x32xbf16>
    %c0_148 = arith.constant 0 : index
    %c6 = arith.constant 6 : index
    %c0_149 = arith.constant 0 : index
    %c0_150 = arith.constant 0 : index
    %242 = vector.load %arg2[%c0_148, %c6, %c0_149, %c0_150] : memref<4x8x8x32xf32, #tpu.memory_space<vmem>>, vector<1x1x8x32xf32>
    %243 = vector.shape_cast %242 : vector<1x1x8x32xf32> to vector<8x32xf32>
    %cst_151 = arith.constant dense<0.000000e+00> : vector<8x32xf32>
    %244 = tpu.matmul %241, %4, %cst_151 {dimension_numbers = #tpu.dot_dimension_numbers<[1], [0], [0], [1], [0, 0, 1, 1], [], []>} : vector<8x32xbf16>, vector<32x32xbf16>, vector<8x32xf32> -> vector<8x32xf32>
    %245 = arith.addf %243, %244 : vector<8x32xf32>
    %c1_152 = arith.constant 1 : index
    %c6_153 = arith.constant 6 : index
    %c0_154 = arith.constant 0 : index
    %c0_155 = arith.constant 0 : index
    %246 = vector.load %arg2[%c1_152, %c6_153, %c0_154, %c0_155] : memref<4x8x8x32xf32, #tpu.memory_space<vmem>>, vector<1x1x8x32xf32>
    %247 = vector.shape_cast %246 : vector<1x1x8x32xf32> to vector<8x32xf32>
    %cst_156 = arith.constant dense<0.000000e+00> : vector<8x32xf32>
    %248 = tpu.matmul %241, %6, %cst_156 {dimension_numbers = #tpu.dot_dimension_numbers<[1], [0], [0], [1], [0, 0, 1, 1], [], []>} : vector<8x32xbf16>, vector<32x32xbf16>, vector<8x32xf32> -> vector<8x32xf32>
    %249 = arith.addf %247, %248 : vector<8x32xf32>
    %c2_157 = arith.constant 2 : index
    %c6_158 = arith.constant 6 : index
    %c0_159 = arith.constant 0 : index
    %c0_160 = arith.constant 0 : index
    %250 = vector.load %arg2[%c2_157, %c6_158, %c0_159, %c0_160] : memref<4x8x8x32xf32, #tpu.memory_space<vmem>>, vector<1x1x8x32xf32>
    %251 = vector.shape_cast %250 : vector<1x1x8x32xf32> to vector<8x32xf32>
    %cst_161 = arith.constant dense<0.000000e+00> : vector<8x32xf32>
    %252 = tpu.matmul %241, %8, %cst_161 {dimension_numbers = #tpu.dot_dimension_numbers<[1], [0], [0], [1], [0, 0, 1, 1], [], []>} : vector<8x32xbf16>, vector<32x32xbf16>, vector<8x32xf32> -> vector<8x32xf32>
    %253 = arith.addf %251, %252 : vector<8x32xf32>
    %c3_162 = arith.constant 3 : index
    %c6_163 = arith.constant 6 : index
    %c0_164 = arith.constant 0 : index
    %c0_165 = arith.constant 0 : index
    %254 = vector.load %arg2[%c3_162, %c6_163, %c0_164, %c0_165] : memref<4x8x8x32xf32, #tpu.memory_space<vmem>>, vector<1x1x8x32xf32>
    %255 = vector.shape_cast %254 : vector<1x1x8x32xf32> to vector<8x32xf32>
    %cst_166 = arith.constant dense<0.000000e+00> : vector<8x32xf32>
    %256 = tpu.matmul %241, %10, %cst_166 {dimension_numbers = #tpu.dot_dimension_numbers<[1], [0], [0], [1], [0, 0, 1, 1], [], []>} : vector<8x32xbf16>, vector<32x32xbf16>, vector<8x32xf32> -> vector<8x32xf32>
    %257 = arith.addf %255, %256 : vector<8x32xf32>
    %258 = arith.negf %245 : vector<8x32xf32>
    %259 = math.exp %258 : vector<8x32xf32>
    %cst_167 = arith.constant 1.000000e+00 : f32
    %260 = vector.broadcast %cst_167 : f32 to vector<8x32xf32>
    %261 = arith.addf %260, %259 : vector<8x32xf32>
    %262 = arith.divf %260, %261 : vector<8x32xf32>
    %263 = arith.negf %249 : vector<8x32xf32>
    %264 = math.exp %263 : vector<8x32xf32>
    %cst_168 = arith.constant 1.000000e+00 : f32
    %265 = vector.broadcast %cst_168 : f32 to vector<8x32xf32>
    %266 = arith.addf %265, %264 : vector<8x32xf32>
    %267 = arith.divf %265, %266 : vector<8x32xf32>
    %268 = math.tanh %253 : vector<8x32xf32>
    %269 = arith.negf %257 : vector<8x32xf32>
    %270 = math.exp %269 : vector<8x32xf32>
    %cst_169 = arith.constant 1.000000e+00 : f32
    %271 = vector.broadcast %cst_169 : f32 to vector<8x32xf32>
    %272 = arith.addf %271, %270 : vector<8x32xf32>
    %273 = arith.divf %271, %272 : vector<8x32xf32>
    %274 = arith.mulf %267, %238 : vector<8x32xf32>
    %275 = arith.mulf %262, %268 : vector<8x32xf32>
    %276 = arith.addf %274, %275 : vector<8x32xf32>
    %277 = math.tanh %276 : vector<8x32xf32>
    %278 = arith.mulf %273, %277 : vector<8x32xf32>
    %279 = arith.truncf %278 : vector<8x32xf32> to vector<8x32xbf16>
    %c0_170 = arith.constant 0 : index
    %c7 = arith.constant 7 : index
    %c0_171 = arith.constant 0 : index
    %c0_172 = arith.constant 0 : index
    %280 = vector.load %arg2[%c0_170, %c7, %c0_171, %c0_172] : memref<4x8x8x32xf32, #tpu.memory_space<vmem>>, vector<1x1x8x32xf32>
    %281 = vector.shape_cast %280 : vector<1x1x8x32xf32> to vector<8x32xf32>
    %cst_173 = arith.constant dense<0.000000e+00> : vector<8x32xf32>
    %282 = tpu.matmul %279, %4, %cst_173 {dimension_numbers = #tpu.dot_dimension_numbers<[1], [0], [0], [1], [0, 0, 1, 1], [], []>} : vector<8x32xbf16>, vector<32x32xbf16>, vector<8x32xf32> -> vector<8x32xf32>
    %283 = arith.addf %281, %282 : vector<8x32xf32>
    %c1_174 = arith.constant 1 : index
    %c7_175 = arith.constant 7 : index
    %c0_176 = arith.constant 0 : index
    %c0_177 = arith.constant 0 : index
    %284 = vector.load %arg2[%c1_174, %c7_175, %c0_176, %c0_177] : memref<4x8x8x32xf32, #tpu.memory_space<vmem>>, vector<1x1x8x32xf32>
    %285 = vector.shape_cast %284 : vector<1x1x8x32xf32> to vector<8x32xf32>
    %cst_178 = arith.constant dense<0.000000e+00> : vector<8x32xf32>
    %286 = tpu.matmul %279, %6, %cst_178 {dimension_numbers = #tpu.dot_dimension_numbers<[1], [0], [0], [1], [0, 0, 1, 1], [], []>} : vector<8x32xbf16>, vector<32x32xbf16>, vector<8x32xf32> -> vector<8x32xf32>
    %287 = arith.addf %285, %286 : vector<8x32xf32>
    %c2_179 = arith.constant 2 : index
    %c7_180 = arith.constant 7 : index
    %c0_181 = arith.constant 0 : index
    %c0_182 = arith.constant 0 : index
    %288 = vector.load %arg2[%c2_179, %c7_180, %c0_181, %c0_182] : memref<4x8x8x32xf32, #tpu.memory_space<vmem>>, vector<1x1x8x32xf32>
    %289 = vector.shape_cast %288 : vector<1x1x8x32xf32> to vector<8x32xf32>
    %cst_183 = arith.constant dense<0.000000e+00> : vector<8x32xf32>
    %290 = tpu.matmul %279, %8, %cst_183 {dimension_numbers = #tpu.dot_dimension_numbers<[1], [0], [0], [1], [0, 0, 1, 1], [], []>} : vector<8x32xbf16>, vector<32x32xbf16>, vector<8x32xf32> -> vector<8x32xf32>
    %291 = arith.addf %289, %290 : vector<8x32xf32>
    %c3_184 = arith.constant 3 : index
    %c7_185 = arith.constant 7 : index
    %c0_186 = arith.constant 0 : index
    %c0_187 = arith.constant 0 : index
    %292 = vector.load %arg2[%c3_184, %c7_185, %c0_186, %c0_187] : memref<4x8x8x32xf32, #tpu.memory_space<vmem>>, vector<1x1x8x32xf32>
    %293 = vector.shape_cast %292 : vector<1x1x8x32xf32> to vector<8x32xf32>
    %cst_188 = arith.constant dense<0.000000e+00> : vector<8x32xf32>
    %294 = tpu.matmul %279, %10, %cst_188 {dimension_numbers = #tpu.dot_dimension_numbers<[1], [0], [0], [1], [0, 0, 1, 1], [], []>} : vector<8x32xbf16>, vector<32x32xbf16>, vector<8x32xf32> -> vector<8x32xf32>
    %295 = arith.addf %293, %294 : vector<8x32xf32>
    %296 = arith.negf %283 : vector<8x32xf32>
    %297 = math.exp %296 : vector<8x32xf32>
    %cst_189 = arith.constant 1.000000e+00 : f32
    %298 = vector.broadcast %cst_189 : f32 to vector<8x32xf32>
    %299 = arith.addf %298, %297 : vector<8x32xf32>
    %300 = arith.divf %298, %299 : vector<8x32xf32>
    %301 = arith.negf %287 : vector<8x32xf32>
    %302 = math.exp %301 : vector<8x32xf32>
    %cst_190 = arith.constant 1.000000e+00 : f32
    %303 = vector.broadcast %cst_190 : f32 to vector<8x32xf32>
    %304 = arith.addf %303, %302 : vector<8x32xf32>
    %305 = arith.divf %303, %304 : vector<8x32xf32>
    %306 = math.tanh %291 : vector<8x32xf32>
    %307 = arith.negf %295 : vector<8x32xf32>
    %308 = math.exp %307 : vector<8x32xf32>
    %cst_191 = arith.constant 1.000000e+00 : f32
    %309 = vector.broadcast %cst_191 : f32 to vector<8x32xf32>
    %310 = arith.addf %309, %308 : vector<8x32xf32>
    %311 = arith.divf %309, %310 : vector<8x32xf32>
    %312 = arith.mulf %305, %276 : vector<8x32xf32>
    %313 = arith.mulf %300, %306 : vector<8x32xf32>
    %314 = arith.addf %312, %313 : vector<8x32xf32>
    %315 = math.tanh %314 : vector<8x32xf32>
    %316 = arith.mulf %311, %315 : vector<8x32xf32>
    %c0_192 = arith.constant 0 : index
    %c0_193 = arith.constant 0 : index
    %317 = vector.load %arg5[%c0_192, %c0_193] : memref<8x32xf32, #tpu.memory_space<vmem>>, vector<8x32xf32>
    tpu.vector_store %arg5[%c0_192, %c0_193], %316 {strides = array<i32>} : memref<8x32xf32, #tpu.memory_space<vmem>>, vector<8x32xf32>,
    %c0_194 = arith.constant 0 : index
    %c0_195 = arith.constant 0 : index
    %318 = vector.load %arg6[%c0_194, %c0_195] : memref<8x32xf32, #tpu.memory_space<vmem>>, vector<8x32xf32>
    tpu.vector_store %arg6[%c0_194, %c0_195], %314 {strides = array<i32>} : memref<8x32xf32, #tpu.memory_space<vmem>>, vector<8x32xf32>,
    %c0_196 = arith.constant 0 : index
    %c0_197 = arith.constant 0 : index
    %319 = vector.load %arg4[%c0_196, %c0_197] : memref<8x32xf32, #tpu.memory_space<vmem>>, vector<8x32xf32>
    tpu.vector_store %arg4[%c0_196, %c0_197], %316 {strides = array<i32>} : memref<8x32xf32, #tpu.memory_space<vmem>>, vector<8x32xf32>,
    return
  }
  func.func @transform_0(%arg0: i32, %arg1: i32) -> (i32, i32, i32, i32) {
    %c0_i32 = arith.constant 0 : i32
    %c0_i32_0 = arith.constant 0 : i32
    %c0_i32_1 = arith.constant 0 : i32
    return %c0_i32, %arg1, %arg0, %c0_i32_0 : i32, i32, i32, i32
  }
  func.func @transform_1(%arg0: i32, %arg1: i32) -> (i32, i32, i32) {
    %c0_i32 = arith.constant 0 : i32
    %c0_i32_0 = arith.constant 0 : i32
    %c0_i32_1 = arith.constant 0 : i32
    %c0_i32_2 = arith.constant 0 : i32
    return %c0_i32, %c0_i32_0, %c0_i32_1 : i32, i32, i32
  }
  func.func @transform_2(%arg0: i32, %arg1: i32) -> (i32, i32) {
    %c0_i32 = arith.constant 0 : i32
    %c0_i32_0 = arith.constant 0 : i32
    return %arg0, %c0_i32 : i32, i32
  }
}

</mosaic_0001>

<llo_original>
// kernel: lstm_classifier_head.3
$region0: #{lstm_classifier_head.3}
  #allocation0 [shape = 'u32[]', space=smem, size = 0x4, offset = 0x4, fixed_abs, tag = 'smem constant byte address 0x4 - core index']
  #allocation1 [shape = 'u32[72,128]{1,0:T(1,128)}', space=vmem, size = 0x9000, scoped, tag = 'internal scratch']
  %s0 = inlined_call_operand.vmem [shape: f32[8,32], index: 0, kind: input, shape index: {}]
  %s1 = inlined_call_operand.vmem [shape: f32[8,32], index: 1, kind: input, shape index: {}]
  %s2 = inlined_call_operand.vmem [shape: bf16[32,128], index: 2, kind: input, shape index: {}]
  %s3 = inlined_call_operand.vmem [shape: f32[1,128], index: 3, kind: input, shape index: {}]
  %s4 = inlined_call_operand.vmem [shape: bf16[32,30], index: 4, kind: input, shape index: {}]
  %s5 = inlined_call_operand.vmem [shape: bf16[32,30], index: 5, kind: input, shape index: {}]
  %s6 = inlined_call_operand.vmem [shape: f32[1,30], index: 6, kind: input, shape index: {}]
  %s7 = inlined_call_operand.vmem [shape: f32[8,30], index: 7, kind: output, shape index: {}]
  %s8 = sld [smem:[#allocation0]]
  $region38: #{lstm_classifier_head.3} parent=0
    _
  %s10 = ssub.s32 1, %s8
  %s11 = scalar_select 0, %s10, %s8
  // Predicated region
  $region2: #{lstm_classifier_head.3} parent=0 // pred_check
    _
  $region3: #{lstm_classifier_head.3} parent=0 // pred_check_branch
    %13 = sbr.rel (0) target = $region5
  $region4: #{lstm_classifier_head.3} parent=0 // pred_region
    _
  $region5: #{lstm_classifier_head.3} parent=0 // pred_fallthru
    _
  // Predicated region
  $region6: #{lstm_classifier_head.3} parent=0 // pred_check
    _
  $region7: #{lstm_classifier_head.3} parent=0 // pred_check_branch
    %15 = sbr.rel (0) target = $region9
  $region8: #{lstm_classifier_head.3} parent=0 // pred_region
    _
  $region9: #{lstm_classifier_head.3} parent=0 // pred_fallthru
    _
  // Predicated region
  $region10: #{lstm_classifier_head.3} parent=0 // pred_check
    _
  $region11: #{lstm_classifier_head.3} parent=0 // pred_check_branch
    %17 = sbr.rel (0) target = $region13
  $region12: #{lstm_classifier_head.3} parent=0 // pred_region
    _
  $region13: #{lstm_classifier_head.3} parent=0 // pred_fallthru
    _
  // Predicated region
  $region14: #{lstm_classifier_head.3} parent=0 // pred_check
    _
  $region15: #{lstm_classifier_head.3} parent=0 // pred_check_branch
    %19 = sbr.rel (0) target = $region17
  $region16: #{lstm_classifier_head.3} parent=0 // pred_region
    _
  $region17: #{lstm_classifier_head.3} parent=0 // pred_fallthru
    _
  // Predicated region
  $region18: #{lstm_classifier_head.3} parent=0 // pred_check
    _
  $region19: #{lstm_classifier_head.3} parent=0 // pred_check_branch
    %21 = sbr.rel (0) target = $region21
  $region20: #{lstm_classifier_head.3} parent=0 // pred_region
    _
  $region21: #{lstm_classifier_head.3} parent=0 // pred_fallthru
    _
  // Predicated region
  $region22: #{lstm_classifier_head.3} parent=0 // pred_check
    _
  $region23: #{lstm_classifier_head.3} parent=0 // pred_check_branch
    %23 = sbr.rel (0) target = $region25
  $region24: #{lstm_classifier_head.3} parent=0 // pred_region
    _
  $region25: #{lstm_classifier_head.3} parent=0 // pred_fallthru
    _
  // Predicated region
  $region26: #{lstm_classifier_head.3} parent=0 // pred_check
    _
  $region27: #{lstm_classifier_head.3} parent=0 // pred_check_branch
    %25 = sbr.rel (0) target = $region29
  $region28: #{lstm_classifier_head.3} parent=0 // pred_region
    _
  $region29: #{lstm_classifier_head.3} parent=0 // pred_fallthru
    _
  %v27 = vld [vmem:[%s1] sm:$0xff]
  %v28 = vpack.c.bf16 %v27, %v27
  %v29 = vld [vmem:[%s2] sm:$0xf]
  %v30 = vld [vmem:[%s2 + $0x4] sm:$0xf]
  %v31 = vld [vmem:[%s2 + $0x8] sm:$0xf]
  %v32 = vld [vmem:[%s2 + $0xc] sm:$0xf]
  %v33 = vld [vmem:[%s3] sm:$0x1]
  %v35 = vperm.slane %v33, 0
  %v41 = vunpack.c.l.b16 %v29
  %v42 = vunpack.c.l.b16 %v30
  %v43 = vunpack.c.l.b16 %v31
  %v44 = vunpack.c.l.b16 %v32
  %v45 = vpack.c.b16 %v42, %v41
  %v46 = vpack.c.b16 %v44, %v43
  %vm49 = vcmask 261120
  %v51 = vsel %vm49, %v28, 0
  %53 = vmatpush.bf16.msra.mxu0 0
  %54 = vmatpush.bf16.msra.mxu0 0
  %55 = vmatpush.bf16.msra.mxu0 0
  %56 = vmatpush.bf16.msra.mxu0 0
  %57 = vmatpush.bf16.msra.mxu0 0
  %58 = vmatpush.bf16.msra.mxu0 0
  %59 = vmatpush.bf16.msra.mxu0 %v46
  %60 = vmatpush.bf16.msra.mxu0 %v45
  %61 = vmatmul.bf16.gmra.mxu0 %v51
  %v62 = vpop.f32.mrf.mxu0
  %v63 = vadd.f32 %v35, %v62
  %v64 = vpop.f32.mrf.mxu0
  %65 = vdwg.mxu0
  %v66 = vxor.u32 %v63, 2147483648
  %v67 = vmul.f32 %v66, 1.442695
  %v68 = vpow.pop %v67
  %v69 = vadd.f32 %v68, 1.0
  %v70 = vrcp.pop %v69
  %v71 = vmul.f32 %v69, %v70
  %v72 = vsub.f32 1.0, %v71
  %v73 = vmul.f32 %v70, %v72
  %v74 = vadd.f32 %v70, %v73
  %vm75 = vweird.f32 %v69
  %vm76 = vweird.f32 %v70
  %vm77 = vmor %vm75, %vm76
  %v78 = vsel %vm77, %v70, %v74
  %v79 = vand.u32 2147483647, %v69
  %vm80 = vcmp.eq.f32.partialorder %v79, 8.507059e+37
  %v81 = vand.u32 %v69, 2147483648
  %v82 = vor.u32 1.1754944e-38, %v81
  %v83 = vsel %vm80, %v82, %v78
  %v84 = vmul.f32 1.0, %v83
  %v85 = vtanh.pop %v63
  %87 = vrot.lane.b32.xlu0 %v85, 64
  %v88 = vpop.permute.xlu0 %87
  %v90 = vmul.f32 %v84, %v88
  %v91 = vtanh.pop %v90
  %93 = vrot.lane.b32.xlu0 %v91, 96
  %v94 = vpop.permute.xlu0 %93
  %v96 = vmul.f32 %v84, %v94
  %v97 = vld [vmem:[%s0] sm:$0xff]
  %v98 = vpack.c.bf16 %v97, %v97
  %v99 = vld [vmem:[%s4] sm:$0xf]
  %v100 = vld [vmem:[%s4 + $0x4] sm:$0xf]
  %v101 = vld [vmem:[%s4 + $0x8] sm:$0xf]
  %v102 = vld [vmem:[%s4 + $0xc] sm:$0xf]
  %v103 = vpack.c.bf16 %v96, %v96
  %v104 = vld [vmem:[%s5] sm:$0xf]
  %v105 = vld [vmem:[%s5 + $0x4] sm:$0xf]
  %v106 = vld [vmem:[%s5 + $0x8] sm:$0xf]
  %v107 = vld [vmem:[%s5 + $0xc] sm:$0xf]
  %109 = vrot.lane.b32.xlu0 %v103, 32
  %v110 = vpop.permute.xlu0 %109
  %v115 = vunpack.c.l.b16 %v104
  %v116 = vunpack.c.l.b16 %v105
  %v117 = vunpack.c.l.b16 %v106
  %v118 = vunpack.c.l.b16 %v107
  %v119 = vpack.c.b16 %v116, %v115
  %v120 = vpack.c.b16 %v118, %v117
  %v124 = vsel %vm49, %v110, 0
  %126 = vmatpush.bf16.msra.mxu0 0
  %127 = vmatpush.bf16.msra.mxu0 0
  %128 = vmatpush.bf16.msra.mxu0 0
  %129 = vmatpush.bf16.msra.mxu0 0
  %130 = vmatpush.bf16.msra.mxu0 0
  %131 = vmatpush.bf16.msra.mxu0 0
  %132 = vmatpush.bf16.msra.mxu0 %v120
  %133 = vmatpush.bf16.msra.mxu0 %v119
  %134 = vmatmul.bf16.gmra.mxu0 %v124
  %v135 = vpop.f32.mrf.mxu0
  %v136 = vadd.f32 0.0, %v135
  %v137 = vpop.f32.mrf.mxu0
  %138 = vdwg.mxu0
  %v143 = vunpack.c.l.b16 %v99
  %v144 = vunpack.c.l.b16 %v100
  %v145 = vunpack.c.l.b16 %v101
  %v146 = vunpack.c.l.b16 %v102
  %v147 = vpack.c.b16 %v144, %v143
  %v148 = vpack.c.b16 %v146, %v145
  %v152 = vsel %vm49, %v98, 0
  %154 = vmatpush.bf16.msra.mxu0 0
  %155 = vmatpush.bf16.msra.mxu0 0
  %156 = vmatpush.bf16.msra.mxu0 0
  %157 = vmatpush.bf16.msra.mxu0 0
  %158 = vmatpush.bf16.msra.mxu0 0
  %159 = vmatpush.bf16.msra.mxu0 0
  %160 = vmatpush.bf16.msra.mxu0 %v148
  %161 = vmatpush.bf16.msra.mxu0 %v147
  %162 = vmatmul.bf16.gmra.mxu0 %v152
  %v163 = vpop.f32.mrf.mxu0
  %v164 = vadd.f32 %v136, %v163
  %v165 = vpop.f32.mrf.mxu0
  %166 = vdwg.mxu0
  %v167 = vld [vmem:[%s6] sm:$0x1]
  %v169 = vperm.slane %v167, 0
  %v171 = vadd.f32 %v164, %v169
  %vm172 = vcmask 244736
  %173 = vst.msk [vmem:[%s7] sm:$0xff] %vm172, %v171
  // Predicated region
  $region30: #{lstm_classifier_head.3} parent=0 // pred_check
    _
  $region31: #{lstm_classifier_head.3} parent=0 // pred_check_branch
    %175 = sbr.rel (0) target = $region33
  $region32: #{lstm_classifier_head.3} parent=0 // pred_region
    _
  $region33: #{lstm_classifier_head.3} parent=0 // pred_fallthru
    _
  // Predicated region
  $region34: #{lstm_classifier_head.3} parent=0 // pred_check
    _
  $region35: #{lstm_classifier_head.3} parent=0 // pred_check_branch
    %177 = sbr.rel (0) target = $region37
  $region36: #{lstm_classifier_head.3} parent=0 // pred_region
    _
  $region37: #{lstm_classifier_head.3} parent=0 // pred_fallthru
    _

// kernel: lstm_classifier_head.2
$region0: #{lstm_classifier_head.2}
  #allocation0 [shape = 'u32[]', space=smem, size = 0x4, offset = 0x4, fixed_abs, tag = 'smem constant byte address 0x4 - core index']
  #allocation1 [shape = 'u32[72,128]{1,0:T(1,128)}', space=vmem, size = 0x9000, scoped, tag = 'internal scratch']
  #allocation2 [shape = 'f32[8,32]{1,0:T(8,128)}', space=vmem, size = 0x1000, scoped, tag = 'scratch operand']
  #allocation3 [shape = 'f32[8,32]{1,0:T(8,128)}', space=vmem, size = 0x1000, scoped, tag = 'scratch operand']
  %s0 = inlined_call_operand.vmem [shape: f32[4,8,8,32], index: 0, kind: input, shape index: {}]
  %s1 = inlined_call_operand.vmem [shape: bf16[4,32,32], index: 1, kind: input, shape index: {}]
  %s2 = inlined_call_operand.vmem [shape: f32[8,32], index: 2, kind: output, shape index: {}]
  %s3 = sld [smem:[#allocation0]]
  $region22: #{lstm_classifier_head.2} parent=0
    _
  %s5 = ssub.s32 1, %s3
  %s6 = scalar_select 0, %s5, %s3
  // Predicated region
  $region2: #{lstm_classifier_head.2} parent=0 // pred_check
    _
  $region3: #{lstm_classifier_head.2} parent=0 // pred_check_branch
    %8 = sbr.rel (0) target = $region5
  $region4: #{lstm_classifier_head.2} parent=0 // pred_region
    _
  $region5: #{lstm_classifier_head.2} parent=0 // pred_fallthru
    _
  // Predicated region
  $region6: #{lstm_classifier_head.2} parent=0 // pred_check
    _
  $region7: #{lstm_classifier_head.2} parent=0 // pred_check_branch
    %10 = sbr.rel (0) target = $region9
  $region8: #{lstm_classifier_head.2} parent=0 // pred_region
    _
  $region9: #{lstm_classifier_head.2} parent=0 // pred_fallthru
    _
  %p12 = scmp.eq.s32.totalorder 0, 0
  // Predicated region
  $region10: #{lstm_classifier_head.2} parent=0 // pred_check
    %p13 = pneg %p12
  $region11: #{lstm_classifier_head.2} parent=0 // pred_check_branch
    %15 = sbr.rel (%p13) target = $region13
  $region12: #{lstm_classifier_head.2} parent=0 // pred_region
    %vm16 = vcmask 261120
    %17 = vst.msk [vmem:[#allocation2] sm:$0xff] %vm16, 0.0
    %18 = vst.msk [vmem:[#allocation3] sm:$0xff] %vm16, 0.0
  $region13: #{lstm_classifier_head.2} parent=0 // pred_fallthru
    _
  %v19 = vld [vmem:[%s1] sm:$0xf]
  %v20 = vld [vmem:[%s1 + $0x4] sm:$0xf]
  %v21 = vld [vmem:[%s1 + $0x8] sm:$0xf]
  %v22 = vld [vmem:[%s1 + $0xc] sm:$0xf]
  %s23 = scalar_lea.vmem %s1, 16
  %v24 = vld [vmem:[%s23] sm:$0xf]
  %v25 = vld [vmem:[%s23 + $0x4] sm:$0xf]
  %v26 = vld [vmem:[%s23 + $0x8] sm:$0xf]
  %v27 = vld [vmem:[%s23 + $0xc] sm:$0xf]
  %s28 = scalar_lea.vmem %s1, 32
  %v29 = vld [vmem:[%s28] sm:$0xf]
  %v30 = vld [vmem:[%s28 + $0x4] sm:$0xf]
  %v31 = vld [vmem:[%s28 + $0x8] sm:$0xf]
  %v32 = vld [vmem:[%s28 + $0xc] sm:$0xf]
  %s33 = scalar_lea.vmem %s1, 48
  %v34 = vld [vmem:[%s33] sm:$0xf]
  %v35 = vld [vmem:[%s33 + $0x4] sm:$0xf]
  %v36 = vld [vmem:[%s33 + $0x8] sm:$0xf]
  %v37 = vld [vmem:[%s33 + $0xc] sm:$0xf]
  %v38 = vld [vmem:[#allocation2] sm:$0xff]
  %v39 = vld [vmem:[#allocation3] sm:$0xff]
  %v40 = vpack.c.bf16 %v38, %v38
  %v41 = vld [vmem:[%s0] sm:$0xff]
  %v46 = vunpack.c.l.b16 %v19
  %v47 = vunpack.c.l.b16 %v20
  %v48 = vunpack.c.l.b16 %v21
  %v49 = vunpack.c.l.b16 %v22
  %v50 = vpack.c.b16 %v47, %v46
  %v51 = vpack.c.b16 %v49, %v48
  %vm54 = vcmask 261120
  %v56 = vsel %vm54, %v40, 0
  %58 = vmatpush.bf16.msra.mxu0 0
  %59 = vmatpush.bf16.msra.mxu0 0
  %60 = vmatpush.bf16.msra.mxu0 0
  %61 = vmatpush.bf16.msra.mxu0 0
  %62 = vmatpush.bf16.msra.mxu0 0
  %63 = vmatpush.bf16.msra.mxu0 0
  %64 = vmatpush.bf16.msra.mxu0 %v51
  %65 = vmatpush.bf16.msra.mxu0 %v50
  %66 = vmatmul.bf16.gmra.mxu0 %v56
  %v67 = vpop.f32.mrf.mxu0
  %v68 = vadd.f32 0.0, %v67
  %v69 = vpop.f32.mrf.mxu0
  %70 = vdwg.mxu0
  %v71 = vadd.f32 %v41, %v68
  %s72 = scalar_lea.vmem %s0, 64
  %v73 = vld [vmem:[%s72] sm:$0xff]
  %v78 = vunpack.c.l.b16 %v24
  %v79 = vunpack.c.l.b16 %v25
  %v80 = vunpack.c.l.b16 %v26
  %v81 = vunpack.c.l.b16 %v27
  %v82 = vpack.c.b16 %v79, %v78
  %v83 = vpack.c.b16 %v81, %v80
  %86 = vmatpush.bf16.msra.mxu0 0
  %87 = vmatpush.bf16.msra.mxu0 0
  %88 = vmatpush.bf16.msra.mxu0 0
  %89 = vmatpush.bf16.msra.mxu0 0
  %90 = vmatpush.bf16.msra.mxu0 0
  %91 = vmatpush.bf16.msra.mxu0 0
  %92 = vmatpush.bf16.msra.mxu0 %v83
  %93 = vmatpush.bf16.msra.mxu0 %v82
  %94 = vmatmul.bf16.gmra.mxu0 %v56
  %v95 = vpop.f32.mrf.mxu0
  %v96 = vadd.f32 0.0, %v95
  %v97 = vpop.f32.mrf.mxu0
  %98 = vdwg.mxu0
  %v99 = vadd.f32 %v73, %v96
  %s100 = scalar_lea.vmem %s0, 128
  %v101 = vld [vmem:[%s100] sm:$0xff]
  %v106 = vunpack.c.l.b16 %v29
  %v107 = vunpack.c.l.b16 %v30
  %v108 = vunpack.c.l.b16 %v31
  %v109 = vunpack.c.l.b16 %v32
  %v110 = vpack.c.b16 %v107, %v106
  %v111 = vpack.c.b16 %v109, %v108
  %114 = vmatpush.bf16.msra.mxu0 0
  %115 = vmatpush.bf16.msra.mxu0 0
  %116 = vmatpush.bf16.msra.mxu0 0
  %117 = vmatpush.bf16.msra.mxu0 0
  %118 = vmatpush.bf16.msra.mxu0 0
  %119 = vmatpush.bf16.msra.mxu0 0
  %120 = vmatpush.bf16.msra.mxu0 %v111
  %121 = vmatpush.bf16.msra.mxu0 %v110
  %122 = vmatmul.bf16.gmra.mxu0 %v56
  %v123 = vpop.f32.mrf.mxu0
  %v124 = vadd.f32 0.0, %v123
  %v125 = vpop.f32.mrf.mxu0
  %126 = vdwg.mxu0
  %v127 = vadd.f32 %v101, %v124
  %s128 = scalar_lea.vmem %s0, 192
  %v129 = vld [vmem:[%s128] sm:$0xff]
  %v134 = vunpack.c.l.b16 %v34
  %v135 = vunpack.c.l.b16 %v35
  %v136 = vunpack.c.l.b16 %v36
  %v137 = vunpack.c.l.b16 %v37
  %v138 = vpack.c.b16 %v135, %v134
  %v139 = vpack.c.b16 %v137, %v136
  %142 = vmatpush.bf16.msra.mxu0 0
  %143 = vmatpush.bf16.msra.mxu0 0
  %144 = vmatpush.bf16.msra.mxu0 0
  %145 = vmatpush.bf16.msra.mxu0 0
  %146 = vmatpush.bf16.msra.mxu0 0
  %147 = vmatpush.bf16.msra.mxu0 0
  %148 = vmatpush.bf16.msra.mxu0 %v139
  %149 = vmatpush.bf16.msra.mxu0 %v138
  %150 = vmatmul.bf16.gmra.mxu0 %v56
  %v151 = vpop.f32.mrf.mxu0
  %v152 = vadd.f32 0.0, %v151
  %v153 = vpop.f32.mrf.mxu0
  %154 = vdwg.mxu0
  %v155 = vadd.f32 %v129, %v152
  %v156 = vxor.u32 %v71, 2147483648
  %v157 = vmul.f32 %v156, 1.442695
  %v158 = vpow.pop %v157
  %v159 = vadd.f32 %v158, 1.0
  %v160 = vrcp.pop %v159
  %v161 = vmul.f32 %v159, %v160
  %v162 = vsub.f32 1.0, %v161
  %v163 = vmul.f32 %v160, %v162
  %v164 = vadd.f32 %v160, %v163
  %vm165 = vweird.f32 %v159
  %vm166 = vweird.f32 %v160
  %vm167 = vmor %vm165, %vm166
  %v168 = vsel %vm167, %v160, %v164
  %v169 = vand.u32 2147483647, %v159
  %vm170 = vcmp.eq.f32.partialorder %v169, 8.507059e+37
  %v171 = vand.u32 %v159, 2147483648
  %v172 = vor.u32 1.1754944e-38, %v171
  %v173 = vsel %vm170, %v172, %v168
  %v174 = vmul.f32 1.0, %v173
  %v175 = vxor.u32 %v99, 2147483648
  %v176 = vmul.f32 %v175, 1.442695
  %v177 = vpow.pop %v176
  %v178 = vadd.f32 %v177, 1.0
  %v179 = vrcp.pop %v178
  %v180 = vmul.f32 %v178, %v179
  %v181 = vsub.f32 1.0, %v180
  %v182 = vmul.f32 %v179, %v181
  %v183 = vadd.f32 %v179, %v182
  %vm184 = vweird.f32 %v178
  %vm185 = vweird.f32 %v179
  %vm186 = vmor %vm184, %vm185
  %v187 = vsel %vm186, %v179, %v183
  %v188 = vand.u32 2147483647, %v178
  %vm189 = vcmp.eq.f32.partialorder %v188, 8.507059e+37
  %v190 = vand.u32 %v178, 2147483648
  %v191 = vor.u32 1.1754944e-38, %v190
  %v192 = vsel %vm189, %v191, %v187
  %v193 = vmul.f32 1.0, %v192
  %v194 = vtanh.pop %v127
  %v195 = vxor.u32 %v155, 2147483648
  %v196 = vmul.f32 %v195, 1.442695
  %v197 = vpow.pop %v196
  %v198 = vadd.f32 %v197, 1.0
  %v199 = vrcp.pop %v198
  %v200 = vmul.f32 %v198, %v199
  %v201 = vsub.f32 1.0, %v200
  %v202 = vmul.f32 %v199, %v201
  %v203 = vadd.f32 %v199, %v202
  %vm204 = vweird.f32 %v198
  %vm205 = vweird.f32 %v199
  %vm206 = vmor %vm204, %vm205
  %v207 = vsel %vm206, %v199, %v203
  %v208 = vand.u32 2147483647, %v198
  %vm209 = vcmp.eq.f32.partialorder %v208, 8.507059e+37
  %v210 = vand.u32 %v198, 2147483648
  %v211 = vor.u32 1.1754944e-38, %v210
  %v212 = vsel %vm209, %v211, %v207
  %v213 = vmul.f32 1.0, %v212
  %v214 = vmul.f32 %v193, %v39
  %v215 = vmul.f32 %v174, %v194
  %v216 = vadd.f32 %v214, %v215
  %v217 = vtanh.pop %v216
  %v218 = vmul.f32 %v213, %v217
  %v219 = vpack.c.bf16 %v218, %v218
  %s220 = scalar_lea.vmem %s0, 8
  %v221 = vld [vmem:[%s220] sm:$0xff]
  %v223 = vsel %vm54, %v219, 0
  %225 = vmatpush.bf16.msra.mxu0 0
  %226 = vmatpush.bf16.msra.mxu0 0
  %227 = vmatpush.bf16.msra.mxu0 0
  %228 = vmatpush.bf16.msra.mxu0 0
  %229 = vmatpush.bf16.msra.mxu0 0
  %230 = vmatpush.bf16.msra.mxu0 0
  %231 = vmatpush.bf16.msra.mxu0 %v51
  %232 = vmatpush.bf16.msra.mxu0 %v50
  %233 = vmatmul.bf16.gmra.mxu0 %v223
  %v234 = vpop.f32.mrf.mxu0
  %v235 = vadd.f32 0.0, %v234
  %v236 = vpop.f32.mrf.mxu0
  %237 = vdwg.mxu0
  %v238 = vadd.f32 %v221, %v235
  %s239 = scalar_lea.vmem %s0, 72
  %v240 = vld [vmem:[%s239] sm:$0xff]
  %241 = vmatpush.bf16.msra.mxu0 0
  %242 = vmatpush.bf16.msra.mxu0 0
  %243 = vmatpush.bf16.msra.mxu0 0
  %244 = vmatpush.bf16.msra.mxu0 0
  %245 = vmatpush.bf16.msra.mxu0 0
  %246 = vmatpush.bf16.msra.mxu0 0
  %247 = vmatpush.bf16.msra.mxu0 %v83
  %248 = vmatpush.bf16.msra.mxu0 %v82
  %249 = vmatmul.bf16.gmra.mxu0 %v223
  %v250 = vpop.f32.mrf.mxu0
  %v251 = vadd.f32 0.0, %v250
  %v252 = vpop.f32.mrf.mxu0
  %253 = vdwg.mxu0
  %v254 = vadd.f32 %v240, %v251
  %s255 = scalar_lea.vmem %s0, 136
  %v256 = vld [vmem:[%s255] sm:$0xff]
  %257 = vmatpush.bf16.msra.mxu0 0
  %258 = vmatpush.bf16.msra.mxu0 0
  %259 = vmatpush.bf16.msra.mxu0 0
  %260 = vmatpush.bf16.msra.mxu0 0
  %261 = vmatpush.bf16.msra.mxu0 0
  %262 = vmatpush.bf16.msra.mxu0 0
  %263 = vmatpush.bf16.msra.mxu0 %v111
  %264 = vmatpush.bf16.msra.mxu0 %v110
  %265 = vmatmul.bf16.gmra.mxu0 %v223
  %v266 = vpop.f32.mrf.mxu0
  %v267 = vadd.f32 0.0, %v266
  %v268 = vpop.f32.mrf.mxu0
  %269 = vdwg.mxu0
  %v270 = vadd.f32 %v256, %v267
  %s271 = scalar_lea.vmem %s0, 200
  %v272 = vld [vmem:[%s271] sm:$0xff]
  %273 = vmatpush.bf16.msra.mxu0 0
  %274 = vmatpush.bf16.msra.mxu0 0
  %275 = vmatpush.bf16.msra.mxu0 0
  %276 = vmatpush.bf16.msra.mxu0 0
  %277 = vmatpush.bf16.msra.mxu0 0
  %278 = vmatpush.bf16.msra.mxu0 0
  %279 = vmatpush.bf16.msra.mxu0 %v139
  %280 = vmatpush.bf16.msra.mxu0 %v138
  %281 = vmatmul.bf16.gmra.mxu0 %v223
  %v282 = vpop.f32.mrf.mxu0
  %v283 = vadd.f32 0.0, %v282
  %v284 = vpop.f32.mrf.mxu0
  %285 = vdwg.mxu0
  %v286 = vadd.f32 %v272, %v283
  %v287 = vxor.u32 %v238, 2147483648
  %v288 = vmul.f32 %v287, 1.442695
  %v289 = vpow.pop %v288
  %v290 = vadd.f32 %v289, 1.0
  %v291 = vrcp.pop %v290
  %v292 = vmul.f32 %v290, %v291
  %v293 = vsub.f32 1.0, %v292
  %v294 = vmul.f32 %v291, %v293
  %v295 = vadd.f32 %v291, %v294
  %vm296 = vweird.f32 %v290
  %vm297 = vweird.f32 %v291
  %vm298 = vmor %vm296, %vm297
  %v299 = vsel %vm298, %v291, %v295
  %v300 = vand.u32 2147483647, %v290
  %vm301 = vcmp.eq.f32.partialorder %v300, 8.507059e+37
  %v302 = vand.u32 %v290, 2147483648
  %v303 = vor.u32 1.1754944e-38, %v302
  %v304 = vsel %vm301, %v303, %v299
  %v305 = vmul.f32 1.0, %v304
  %v306 = vxor.u32 %v254, 2147483648
  %v307 = vmul.f32 %v306, 1.442695
  %v308 = vpow.pop %v307
  %v309 = vadd.f32 %v308, 1.0
  %v310 = vrcp.pop %v309
  %v311 = vmul.f32 %v309, %v310
  %v312 = vsub.f32 1.0, %v311
  %v313 = vmul.f32 %v310, %v312
  %v314 = vadd.f32 %v310, %v313
  %vm315 = vweird.f32 %v309
  %vm316 = vweird.f32 %v310
  %vm317 = vmor %vm315, %vm316
  %v318 = vsel %vm317, %v310, %v314
  %v319 = vand.u32 2147483647, %v309
  %vm320 = vcmp.eq.f32.partialorder %v319, 8.507059e+37
  %v321 = vand.u32 %v309, 2147483648
  %v322 = vor.u32 1.1754944e-38, %v321
  %v323 = vsel %vm320, %v322, %v318
  %v324 = vmul.f32 1.0, %v323
  %v325 = vtanh.pop %v270
  %v326 = vxor.u32 %v286, 2147483648
  %v327 = vmul.f32 %v326, 1.442695
  %v328 = vpow.pop %v327
  %v329 = vadd.f32 %v328, 1.0
  %v330 = vrcp.pop %v329
  %v331 = vmul.f32 %v329, %v330
  %v332 = vsub.f32 1.0, %v331
  %v333 = vmul.f32 %v330, %v332
  %v334 = vadd.f32 %v330, %v333
  %vm335 = vweird.f32 %v329
  %vm336 = vweird.f32 %v330
  %vm337 = vmor %vm335, %vm336
  %v338 = vsel %vm337, %v330, %v334
  %v339 = vand.u32 2147483647, %v329
  %vm340 = vcmp.eq.f32.partialorder %v339, 8.507059e+37
  %v341 = vand.u32 %v329, 2147483648
  %v342 = vor.u32 1.1754944e-38, %v341
  %v343 = vsel %vm340, %v342, %v338
  %v344 = vmul.f32 1.0, %v343
  %v345 = vmul.f32 %v324, %v216
  %v346 = vmul.f32 %v305, %v325
  %v347 = vadd.f32 %v345, %v346
  %v348 = vtanh.pop %v347
  %v349 = vmul.f32 %v344, %v348
  %v350 = vpack.c.bf16 %v349, %v349
  %s351 = scalar_lea.vmem %s0, 16
  %v352 = vld [vmem:[%s351] sm:$0xff]
  %v354 = vsel %vm54, %v350, 0
  %356 = vmatpush.bf16.msra.mxu0 0
  %357 = vmatpush.bf16.msra.mxu0 0
  %358 = vmatpush.bf16.msra.mxu0 0
  %359 = vmatpush.bf16.msra.mxu0 0
  %360 = vmatpush.bf16.msra.mxu0 0
  %361 = vmatpush.bf16.msra.mxu0 0
  %362 = vmatpush.bf16.msra.mxu0 %v51
  %363 = vmatpush.bf16.msra.mxu0 %v50
  %364 = vmatmul.bf16.gmra.mxu0 %v354
  %v365 = vpop.f32.mrf.mxu0
  %v366 = vadd.f32 0.0, %v365
  %v367 = vpop.f32.mrf.mxu0
  %368 = vdwg.mxu0
  %v369 = vadd.f32 %v352, %v366
  %s370 = scalar_lea.vmem %s0, 80
  %v371 = vld [vmem:[%s370] sm:$0xff]
  %372 = vmatpush.bf16.msra.mxu0 0
  %373 = vmatpush.bf16.msra.mxu0 0
  %374 = vmatpush.bf16.msra.mxu0 0
  %375 = vmatpush.bf16.msra.mxu0 0
  %376 = vmatpush.bf16.msra.mxu0 0
  %377 = vmatpush.bf16.msra.mxu0 0
  %378 = vmatpush.bf16.msra.mxu0 %v83
  %379 = vmatpush.bf16.msra.mxu0 %v82
  %380 = vmatmul.bf16.gmra.mxu0 %v354
  %v381 = vpop.f32.mrf.mxu0
  %v382 = vadd.f32 0.0, %v381
  %v383 = vpop.f32.mrf.mxu0
  %384 = vdwg.mxu0
  %v385 = vadd.f32 %v371, %v382
  %s386 = scalar_lea.vmem %s0, 144
  %v387 = vld [vmem:[%s386] sm:$0xff]
  %388 = vmatpush.bf16.msra.mxu0 0
  %389 = vmatpush.bf16.msra.mxu0 0
  %390 = vmatpush.bf16.msra.mxu0 0
  %391 = vmatpush.bf16.msra.mxu0 0
  %392 = vmatpush.bf16.msra.mxu0 0
  %393 = vmatpush.bf16.msra.mxu0 0
  %394 = vmatpush.bf16.msra.mxu0 %v111
  %395 = vmatpush.bf16.msra.mxu0 %v110
  %396 = vmatmul.bf16.gmra.mxu0 %v354
  %v397 = vpop.f32.mrf.mxu0
  %v398 = vadd.f32 0.0, %v397
  %v399 = vpop.f32.mrf.mxu0
  %400 = vdwg.mxu0
  %v401 = vadd.f32 %v387, %v398
  %s402 = scalar_lea.vmem %s0, 208
  %v403 = vld [vmem:[%s402] sm:$0xff]
  %404 = vmatpush.bf16.msra.mxu0 0
  %405 = vmatpush.bf16.msra.mxu0 0
  %406 = vmatpush.bf16.msra.mxu0 0
  %407 = vmatpush.bf16.msra.mxu0 0
  %408 = vmatpush.bf16.msra.mxu0 0
  %409 = vmatpush.bf16.msra.mxu0 0
  %410 = vmatpush.bf16.msra.mxu0 %v139
  %411 = vmatpush.bf16.msra.mxu0 %v138
  %412 = vmatmul.bf16.gmra.mxu0 %v354
  %v413 = vpop.f32.mrf.mxu0
  %v414 = vadd.f32 0.0, %v413
  %v415 = vpop.f32.mrf.mxu0
  %416 = vdwg.mxu0
  %v417 = vadd.f32 %v403, %v414
  %v418 = vxor.u32 %v369, 2147483648
  %v419 = vmul.f32 %v418, 1.442695
  %v420 = vpow.pop %v419
  %v421 = vadd.f32 %v420, 1.0
  %v422 = vrcp.pop %v421
  %v423 = vmul.f32 %v421, %v422
  %v424 = vsub.f32 1.0, %v423
  %v425 = vmul.f32 %v422, %v424
  %v426 = vadd.f32 %v422, %v425
  %vm427 = vweird.f32 %v421
  %vm428 = vweird.f32 %v422
  %vm429 = vmor %vm427, %vm428
  %v430 = vsel %vm429, %v422, %v426
  %v431 = vand.u32 2147483647, %v421
  %vm432 = vcmp.eq.f32.partialorder %v431, 8.507059e+37
  %v433 = vand.u32 %v421, 2147483648
  %v434 = vor.u32 1.1754944e-38, %v433
  %v435 = vsel %vm432, %v434, %v430
  %v436 = vmul.f32 1.0, %v435
  %v437 = vxor.u32 %v385, 2147483648
  %v438 = vmul.f32 %v437, 1.442695
  %v439 = vpow.pop %v438
  %v440 = vadd.f32 %v439, 1.0
  %v441 = vrcp.pop %v440
  %v442 = vmul.f32 %v440, %v441
  %v443 = vsub.f32 1.0, %v442
  %v444 = vmul.f32 %v441, %v443
  %v445 = vadd.f32 %v441, %v444
  %vm446 = vweird.f32 %v440
  %vm447 = vweird.f32 %v441
  %vm448 = vmor %vm446, %vm447
  %v449 = vsel %vm448, %v441, %v445
  %v450 = vand.u32 2147483647, %v440
  %vm451 = vcmp.eq.f32.partialorder %v450, 8.507059e+37
  %v452 = vand.u32 %v440, 2147483648
  %v453 = vor.u32 1.1754944e-38, %v452
  %v454 = vsel %vm451, %v453, %v449
  %v455 = vmul.f32 1.0, %v454
  %v456 = vtanh.pop %v401
  %v457 = vxor.u32 %v417, 2147483648
  %v458 = vmul.f32 %v457, 1.442695
  %v459 = vpow.pop %v458
  %v460 = vadd.f32 %v459, 1.0
  %v461 = vrcp.pop %v460
  %v462 = vmul.f32 %v460, %v461
  %v463 = vsub.f32 1.0, %v462
  %v464 = vmul.f32 %v461, %v463
  %v465 = vadd.f32 %v461, %v464
  %vm466 = vweird.f32 %v460
  %vm467 = vweird.f32 %v461
  %vm468 = vmor %vm466, %vm467
  %v469 = vsel %vm468, %v461, %v465
  %v470 = vand.u32 2147483647, %v460
  %vm471 = vcmp.eq.f32.partialorder %v470, 8.507059e+37
  %v472 = vand.u32 %v460, 2147483648
  %v473 = vor.u32 1.1754944e-38, %v472
  %v474 = vsel %vm471, %v473, %v469
  %v475 = vmul.f32 1.0, %v474
  %v476 = vmul.f32 %v455, %v347
  %v477 = vmul.f32 %v436, %v456
  %v478 = vadd.f32 %v476, %v477
  %v479 = vtanh.pop %v478
  %v480 = vmul.f32 %v475, %v479
  %v481 = vpack.c.bf16 %v480, %v480
  %s482 = scalar_lea.vmem %s0, 24
  %v483 = vld [vmem:[%s482] sm:$0xff]
  %v485 = vsel %vm54, %v481, 0
  %487 = vmatpush.bf16.msra.mxu0 0
  %488 = vmatpush.bf16.msra.mxu0 0
  %489 = vmatpush.bf16.msra.mxu0 0
  %490 = vmatpush.bf16.msra.mxu0 0
  %491 = vmatpush.bf16.msra.mxu0 0
  %492 = vmatpush.bf16.msra.mxu0 0
  %493 = vmatpush.bf16.msra.mxu0 %v51
  %494 = vmatpush.bf16.msra.mxu0 %v50
  %495 = vmatmul.bf16.gmra.mxu0 %v485
  %v496 = vpop.f32.mrf.mxu0
  %v497 = vadd.f32 0.0, %v496
  %v498 = vpop.f32.mrf.mxu0
  %499 = vdwg.mxu0
  %v500 = vadd.f32 %v483, %v497
  %s501 = scalar_lea.vmem %s0, 88
  %v502 = vld [vmem:[%s501] sm:$0xff]
  %503 = vmatpush.bf16.msra.mxu0 0
  %504 = vmatpush.bf16.msra.mxu0 0
  %505 = vmatpush.bf16.msra.mxu0 0
  %506 = vmatpush.bf16.msra.mxu0 0
  %507 = vmatpush.bf16.msra.mxu0 0
  %508 = vmatpush.bf16.msra.mxu0 0
  %509 = vmatpush.bf16.msra.mxu0 %v83
  %510 = vmatpush.bf16.msra.mxu0 %v82
  %511 = vmatmul.bf16.gmra.mxu0 %v485
  %v512 = vpop.f32.mrf.mxu0
  %v513 = vadd.f32 0.0, %v512
  %v514 = vpop.f32.mrf.mxu0
  %515 = vdwg.mxu0
  %v516 = vadd.f32 %v502, %v513
  %s517 = scalar_lea.vmem %s0, 152
  %v518 = vld [vmem:[%s517] sm:$0xff]
  %519 = vmatpush.bf16.msra.mxu0 0
  %520 = vmatpush.bf16.msra.mxu0 0
  %521 = vmatpush.bf16.msra.mxu0 0
  %522 = vmatpush.bf16.msra.mxu0 0
  %523 = vmatpush.bf16.msra.mxu0 0
  %524 = vmatpush.bf16.msra.mxu0 0
  %525 = vmatpush.bf16.msra.mxu0 %v111
  %526 = vmatpush.bf16.msra.mxu0 %v110
  %527 = vmatmul.bf16.gmra.mxu0 %v485
  %v528 = vpop.f32.mrf.mxu0
  %v529 = vadd.f32 0.0, %v528
  %v530 = vpop.f32.mrf.mxu0
  %531 = vdwg.mxu0
  %v532 = vadd.f32 %v518, %v529
  %s533 = scalar_lea.vmem %s0, 216
  %v534 = vld [vmem:[%s533] sm:$0xff]
  %535 = vmatpush.bf16.msra.mxu0 0
  %536 = vmatpush.bf16.msra.mxu0 0
  %537 = vmatpush.bf16.msra.mxu0 0
  %538 = vmatpush.bf16.msra.mxu0 0
  %539 = vmatpush.bf16.msra.mxu0 0
  %540 = vmatpush.bf16.msra.mxu0 0
  %541 = vmatpush.bf16.msra.mxu0 %v139
  %542 = vmatpush.bf16.msra.mxu0 %v138
  %543 = vmatmul.bf16.gmra.mxu0 %v485
  %v544 = vpop.f32.mrf.mxu0
  %v545 = vadd.f32 0.0, %v544
  %v546 = vpop.f32.mrf.mxu0
  %547 = vdwg.mxu0
  %v548 = vadd.f32 %v534, %v545
  %v549 = vxor.u32 %v500, 2147483648
  %v550 = vmul.f32 %v549, 1.442695
  %v551 = vpow.pop %v550
  %v552 = vadd.f32 %v551, 1.0
  %v553 = vrcp.pop %v552
  %v554 = vmul.f32 %v552, %v553
  %v555 = vsub.f32 1.0, %v554
  %v556 = vmul.f32 %v553, %v555
  %v557 = vadd.f32 %v553, %v556
  %vm558 = vweird.f32 %v552
  %vm559 = vweird.f32 %v553
  %vm560 = vmor %vm558, %vm559
  %v561 = vsel %vm560, %v553, %v557
  %v562 = vand.u32 2147483647, %v552
  %vm563 = vcmp.eq.f32.partialorder %v562, 8.507059e+37
  %v564 = vand.u32 %v552, 2147483648
  %v565 = vor.u32 1.1754944e-38, %v564
  %v566 = vsel %vm563, %v565, %v561
  %v567 = vmul.f32 1.0, %v566
  %v568 = vxor.u32 %v516, 2147483648
  %v569 = vmul.f32 %v568, 1.442695
  %v570 = vpow.pop %v569
  %v571 = vadd.f32 %v570, 1.0
  %v572 = vrcp.pop %v571
  %v573 = vmul.f32 %v571, %v572
  %v574 = vsub.f32 1.0, %v573
  %v575 = vmul.f32 %v572, %v574
  %v576 = vadd.f32 %v572, %v575
  %vm577 = vweird.f32 %v571
  %vm578 = vweird.f32 %v572
  %vm579 = vmor %vm577, %vm578
  %v580 = vsel %vm579, %v572, %v576
  %v581 = vand.u32 2147483647, %v571
  %vm582 = vcmp.eq.f32.partialorder %v581, 8.507059e+37
  %v583 = vand.u32 %v571, 2147483648
  %v584 = vor.u32 1.1754944e-38, %v583
  %v585 = vsel %vm582, %v584, %v580
  %v586 = vmul.f32 1.0, %v585
  %v587 = vtanh.pop %v532
  %v588 = vxor.u32 %v548, 2147483648
  %v589 = vmul.f32 %v588, 1.442695
  %v590 = vpow.pop %v589
  %v591 = vadd.f32 %v590, 1.0
  %v592 = vrcp.pop %v591
  %v593 = vmul.f32 %v591, %v592
  %v594 = vsub.f32 1.0, %v593
  %v595 = vmul.f32 %v592, %v594
  %v596 = vadd.f32 %v592, %v595
  %vm597 = vweird.f32 %v591
  %vm598 = vweird.f32 %v592
  %vm599 = vmor %vm597, %vm598
  %v600 = vsel %vm599, %v592, %v596
  %v601 = vand.u32 2147483647, %v591
  %vm602 = vcmp.eq.f32.partialorder %v601, 8.507059e+37
  %v603 = vand.u32 %v591, 2147483648
  %v604 = vor.u32 1.1754944e-38, %v603
  %v605 = vsel %vm602, %v604, %v600
  %v606 = vmul.f32 1.0, %v605
  %v607 = vmul.f32 %v586, %v478
  %v608 = vmul.f32 %v567, %v587
  %v609 = vadd.f32 %v607, %v608
  %v610 = vtanh.pop %v609
  %v611 = vmul.f32 %v606, %v610
  %v612 = vpack.c.bf16 %v611, %v611
  %s613 = scalar_lea.vmem %s0, 32
  %v614 = vld [vmem:[%s613] sm:$0xff]
  %v616 = vsel %vm54, %v612, 0
  %618 = vmatpush.bf16.msra.mxu0 0
  %619 = vmatpush.bf16.msra.mxu0 0
  %620 = vmatpush.bf16.msra.mxu0 0
  %621 = vmatpush.bf16.msra.mxu0 0
  %622 = vmatpush.bf16.msra.mxu0 0
  %623 = vmatpush.bf16.msra.mxu0 0
  %624 = vmatpush.bf16.msra.mxu0 %v51
  %625 = vmatpush.bf16.msra.mxu0 %v50
  %626 = vmatmul.bf16.gmra.mxu0 %v616
  %v627 = vpop.f32.mrf.mxu0
  %v628 = vadd.f32 0.0, %v627
  %v629 = vpop.f32.mrf.mxu0
  %630 = vdwg.mxu0
  %v631 = vadd.f32 %v614, %v628
  %s632 = scalar_lea.vmem %s0, 96
  %v633 = vld [vmem:[%s632] sm:$0xff]
  %634 = vmatpush.bf16.msra.mxu0 0
  %635 = vmatpush.bf16.msra.mxu0 0
  %636 = vmatpush.bf16.msra.mxu0 0
  %637 = vmatpush.bf16.msra.mxu0 0
  %638 = vmatpush.bf16.msra.mxu0 0
  %639 = vmatpush.bf16.msra.mxu0 0
  %640 = vmatpush.bf16.msra.mxu0 %v83
  %641 = vmatpush.bf16.msra.mxu0 %v82
  %642 = vmatmul.bf16.gmra.mxu0 %v616
  %v643 = vpop.f32.mrf.mxu0
  %v644 = vadd.f32 0.0, %v643
  %v645 = vpop.f32.mrf.mxu0
  %646 = vdwg.mxu0
  %v647 = vadd.f32 %v633, %v644
  %s648 = scalar_lea.vmem %s0, 160
  %v649 = vld [vmem:[%s648] sm:$0xff]
  %650 = vmatpush.bf16.msra.mxu0 0
  %651 = vmatpush.bf16.msra.mxu0 0
  %652 = vmatpush.bf16.msra.mxu0 0
  %653 = vmatpush.bf16.msra.mxu0 0
  %654 = vmatpush.bf16.msra.mxu0 0
  %655 = vmatpush.bf16.msra.mxu0 0
  %656 = vmatpush.bf16.msra.mxu0 %v111
  %657 = vmatpush.bf16.msra.mxu0 %v110
  %658 = vmatmul.bf16.gmra.mxu0 %v616
  %v659 = vpop.f32.mrf.mxu0
  %v660 = vadd.f32 0.0, %v659
  %v661 = vpop.f32.mrf.mxu0
  %662 = vdwg.mxu0
  %v663 = vadd.f32 %v649, %v660
  %s664 = scalar_lea.vmem %s0, 224
  %v665 = vld [vmem:[%s664] sm:$0xff]
  %666 = vmatpush.bf16.msra.mxu0 0
  %667 = vmatpush.bf16.msra.mxu0 0
  %668 = vmatpush.bf16.msra.mxu0 0
  %669 = vmatpush.bf16.msra.mxu0 0
  %670 = vmatpush.bf16.msra.mxu0 0
  %671 = vmatpush.bf16.msra.mxu0 0
  %672 = vmatpush.bf16.msra.mxu0 %v139
  %673 = vmatpush.bf16.msra.mxu0 %v138
  %674 = vmatmul.bf16.gmra.mxu0 %v616
  %v675 = vpop.f32.mrf.mxu0
  %v676 = vadd.f32 0.0, %v675
  %v677 = vpop.f32.mrf.mxu0
  %678 = vdwg.mxu0
  %v679 = vadd.f32 %v665, %v676
  %v680 = vxor.u32 %v631, 2147483648
  %v681 = vmul.f32 %v680, 1.442695
  %v682 = vpow.pop %v681
  %v683 = vadd.f32 %v682, 1.0
  %v684 = vrcp.pop %v683
  %v685 = vmul.f32 %v683, %v684
  %v686 = vsub.f32 1.0, %v685
  %v687 = vmul.f32 %v684, %v686
  %v688 = vadd.f32 %v684, %v687
  %vm689 = vweird.f32 %v683
  %vm690 = vweird.f32 %v684
  %vm691 = vmor %vm689, %vm690
  %v692 = vsel %vm691, %v684, %v688
  %v693 = vand.u32 2147483647, %v683
  %vm694 = vcmp.eq.f32.partialorder %v693, 8.507059e+37
  %v695 = vand.u32 %v683, 2147483648
  %v696 = vor.u32 1.1754944e-38, %v695
  %v697 = vsel %vm694, %v696, %v692
  %v698 = vmul.f32 1.0, %v697
  %v699 = vxor.u32 %v647, 2147483648
  %v700 = vmul.f32 %v699, 1.442695
  %v701 = vpow.pop %v700
  %v702 = vadd.f32 %v701, 1.0
  %v703 = vrcp.pop %v702
  %v704 = vmul.f32 %v702, %v703
  %v705 = vsub.f32 1.0, %v704
  %v706 = vmul.f32 %v703, %v705
  %v707 = vadd.f32 %v703, %v706
  %vm708 = vweird.f32 %v702
  %vm709 = vweird.f32 %v703
  %vm710 = vmor %vm708, %vm709
  %v711 = vsel %vm710, %v703, %v707
  %v712 = vand.u32 2147483647, %v702
  %vm713 = vcmp.eq.f32.partialorder %v712, 8.507059e+37
  %v714 = vand.u32 %v702, 2147483648
  %v715 = vor.u32 1.1754944e-38, %v714
  %v716 = vsel %vm713, %v715, %v711
  %v717 = vmul.f32 1.0, %v716
  %v718 = vtanh.pop %v663
  %v719 = vxor.u32 %v679, 2147483648
  %v720 = vmul.f32 %v719, 1.442695
  %v721 = vpow.pop %v720
  %v722 = vadd.f32 %v721, 1.0
  %v723 = vrcp.pop %v722
  %v724 = vmul.f32 %v722, %v723
  %v725 = vsub.f32 1.0, %v724
  %v726 = vmul.f32 %v723, %v725
  %v727 = vadd.f32 %v723, %v726
  %vm728 = vweird.f32 %v722
  %vm729 = vweird.f32 %v723
  %vm730 = vmor %vm728, %vm729
  %v731 = vsel %vm730, %v723, %v727
  %v732 = vand.u32 2147483647, %v722
  %vm733 = vcmp.eq.f32.partialorder %v732, 8.507059e+37
  %v734 = vand.u32 %v722, 2147483648
  %v735 = vor.u32 1.1754944e-38, %v734
  %v736 = vsel %vm733, %v735, %v731
  %v737 = vmul.f32 1.0, %v736
  %v738 = vmul.f32 %v717, %v609
  %v739 = vmul.f32 %v698, %v718
  %v740 = vadd.f32 %v738, %v739
  %v741 = vtanh.pop %v740
  %v742 = vmul.f32 %v737, %v741
  %v743 = vpack.c.bf16 %v742, %v742
  %s744 = scalar_lea.vmem %s0, 40
  %v745 = vld [vmem:[%s744] sm:$0xff]
  %v747 = vsel %vm54, %v743, 0
  %749 = vmatpush.bf16.msra.mxu0 0
  %750 = vmatpush.bf16.msra.mxu0 0
  %751 = vmatpush.bf16.msra.mxu0 0
  %752 = vmatpush.bf16.msra.mxu0 0
  %753 = vmatpush.bf16.msra.mxu0 0
  %754 = vmatpush.bf16.msra.mxu0 0
  %755 = vmatpush.bf16.msra.mxu0 %v51
  %756 = vmatpush.bf16.msra.mxu0 %v50
  %757 = vmatmul.bf16.gmra.mxu0 %v747
  %v758 = vpop.f32.mrf.mxu0
  %v759 = vadd.f32 0.0, %v758
  %v760 = vpop.f32.mrf.mxu0
  %761 = vdwg.mxu0
  %v762 = vadd.f32 %v745, %v759
  %s763 = scalar_lea.vmem %s0, 104
  %v764 = vld [vmem:[%s763] sm:$0xff]
  %765 = vmatpush.bf16.msra.mxu0 0
  %766 = vmatpush.bf16.msra.mxu0 0
  %767 = vmatpush.bf16.msra.mxu0 0
  %768 = vmatpush.bf16.msra.mxu0 0
  %769 = vmatpush.bf16.msra.mxu0 0
  %770 = vmatpush.bf16.msra.mxu0 0
  %771 = vmatpush.bf16.msra.mxu0 %v83
  %772 = vmatpush.bf16.msra.mxu0 %v82
  %773 = vmatmul.bf16.gmra.mxu0 %v747
  %v774 = vpop.f32.mrf.mxu0
  %v775 = vadd.f32 0.0, %v774
  %v776 = vpop.f32.mrf.mxu0
  %777 = vdwg.mxu0
  %v778 = vadd.f32 %v764, %v775
  %s779 = scalar_lea.vmem %s0, 168
  %v780 = vld [vmem:[%s779] sm:$0xff]
  %781 = vmatpush.bf16.msra.mxu0 0
  %782 = vmatpush.bf16.msra.mxu0 0
  %783 = vmatpush.bf16.msra.mxu0 0
  %784 = vmatpush.bf16.msra.mxu0 0
  %785 = vmatpush.bf16.msra.mxu0 0
  %786 = vmatpush.bf16.msra.mxu0 0
  %787 = vmatpush.bf16.msra.mxu0 %v111
  %788 = vmatpush.bf16.msra.mxu0 %v110
  %789 = vmatmul.bf16.gmra.mxu0 %v747
  %v790 = vpop.f32.mrf.mxu0
  %v791 = vadd.f32 0.0, %v790
  %v792 = vpop.f32.mrf.mxu0
  %793 = vdwg.mxu0
  %v794 = vadd.f32 %v780, %v791
  %s795 = scalar_lea.vmem %s0, 232
  %v796 = vld [vmem:[%s795] sm:$0xff]
  %797 = vmatpush.bf16.msra.mxu0 0
  %798 = vmatpush.bf16.msra.mxu0 0
  %799 = vmatpush.bf16.msra.mxu0 0
  %800 = vmatpush.bf16.msra.mxu0 0
  %801 = vmatpush.bf16.msra.mxu0 0
  %802 = vmatpush.bf16.msra.mxu0 0
  %803 = vmatpush.bf16.msra.mxu0 %v139
  %804 = vmatpush.bf16.msra.mxu0 %v138
  %805 = vmatmul.bf16.gmra.mxu0 %v747
  %v806 = vpop.f32.mrf.mxu0
  %v807 = vadd.f32 0.0, %v806
  %v808 = vpop.f32.mrf.mxu0
  %809 = vdwg.mxu0
  %v810 = vadd.f32 %v796, %v807
  %v811 = vxor.u32 %v762, 2147483648
  %v812 = vmul.f32 %v811, 1.442695
  %v813 = vpow.pop %v812
  %v814 = vadd.f32 %v813, 1.0
  %v815 = vrcp.pop %v814
  %v816 = vmul.f32 %v814, %v815
  %v817 = vsub.f32 1.0, %v816
  %v818 = vmul.f32 %v815, %v817
  %v819 = vadd.f32 %v815, %v818
  %vm820 = vweird.f32 %v814
  %vm821 = vweird.f32 %v815
  %vm822 = vmor %vm820, %vm821
  %v823 = vsel %vm822, %v815, %v819
  %v824 = vand.u32 2147483647, %v814
  %vm825 = vcmp.eq.f32.partialorder %v824, 8.507059e+37
  %v826 = vand.u32 %v814, 2147483648
  %v827 = vor.u32 1.1754944e-38, %v826
  %v828 = vsel %vm825, %v827, %v823
  %v829 = vmul.f32 1.0, %v828
  %v830 = vxor.u32 %v778, 2147483648
  %v831 = vmul.f32 %v830, 1.442695
  %v832 = vpow.pop %v831
  %v833 = vadd.f32 %v832, 1.0
  %v834 = vrcp.pop %v833
  %v835 = vmul.f32 %v833, %v834
  %v836 = vsub.f32 1.0, %v835
  %v837 = vmul.f32 %v834, %v836
  %v838 = vadd.f32 %v834, %v837
  %vm839 = vweird.f32 %v833
  %vm840 = vweird.f32 %v834
  %vm841 = vmor %vm839, %vm840
  %v842 = vsel %vm841, %v834, %v838
  %v843 = vand.u32 2147483647, %v833
  %vm844 = vcmp.eq.f32.partialorder %v843, 8.507059e+37
  %v845 = vand.u32 %v833, 2147483648
  %v846 = vor.u32 1.1754944e-38, %v845
  %v847 = vsel %vm844, %v846, %v842
  %v848 = vmul.f32 1.0, %v847
  %v849 = vtanh.pop %v794
  %v850 = vxor.u32 %v810, 2147483648
  %v851 = vmul.f32 %v850, 1.442695
  %v852 = vpow.pop %v851
  %v853 = vadd.f32 %v852, 1.0
  %v854 = vrcp.pop %v853
  %v855 = vmul.f32 %v853, %v854
  %v856 = vsub.f32 1.0, %v855
  %v857 = vmul.f32 %v854, %v856
  %v858 = vadd.f32 %v854, %v857
  %vm859 = vweird.f32 %v853
  %vm860 = vweird.f32 %v854
  %vm861 = vmor %vm859, %vm860
  %v862 = vsel %vm861, %v854, %v858
  %v863 = vand.u32 2147483647, %v853
  %vm864 = vcmp.eq.f32.partialorder %v863, 8.507059e+37
  %v865 = vand.u32 %v853, 2147483648
  %v866 = vor.u32 1.1754944e-38, %v865
  %v867 = vsel %vm864, %v866, %v862
  %v868 = vmul.f32 1.0, %v867
  %v869 = vmul.f32 %v848, %v740
  %v870 = vmul.f32 %v829, %v849
  %v871 = vadd.f32 %v869, %v870
  %v872 = vtanh.pop %v871
  %v873 = vmul.f32 %v868, %v872
  %v874 = vpack.c.bf16 %v873, %v873
  %s875 = scalar_lea.vmem %s0, 48
  %v876 = vld [vmem:[%s875] sm:$0xff]
  %v878 = vsel %vm54, %v874, 0
  %880 = vmatpush.bf16.msra.mxu0 0
  %881 = vmatpush.bf16.msra.mxu0 0
  %882 = vmatpush.bf16.msra.mxu0 0
  %883 = vmatpush.bf16.msra.mxu0 0
  %884 = vmatpush.bf16.msra.mxu0 0
  %885 = vmatpush.bf16.msra.mxu0 0
  %886 = vmatpush.bf16.msra.mxu0 %v51
  %887 = vmatpush.bf16.msra.mxu0 %v50
  %888 = vmatmul.bf16.gmra.mxu0 %v878
  %v889 = vpop.f32.mrf.mxu0
  %v890 = vadd.f32 0.0, %v889
  %v891 = vpop.f32.mrf.mxu0
  %892 = vdwg.mxu0
  %v893 = vadd.f32 %v876, %v890
  %s894 = scalar_lea.vmem %s0, 112
  %v895 = vld [vmem:[%s894] sm:$0xff]
  %896 = vmatpush.bf16.msra.mxu0 0
  %897 = vmatpush.bf16.msra.mxu0 0
  %898 = vmatpush.bf16.msra.mxu0 0
  %899 = vmatpush.bf16.msra.mxu0 0
  %900 = vmatpush.bf16.msra.mxu0 0
  %901 = vmatpush.bf16.msra.mxu0 0
  %902 = vmatpush.bf16.msra.mxu0 %v83
  %903 = vmatpush.bf16.msra.mxu0 %v82
  %904 = vmatmul.bf16.gmra.mxu0 %v878
  %v905 = vpop.f32.mrf.mxu0
  %v906 = vadd.f32 0.0, %v905
  %v907 = vpop.f32.mrf.mxu0
  %908 = vdwg.mxu0
  %v909 = vadd.f32 %v895, %v906
  %s910 = scalar_lea.vmem %s0, 176
  %v911 = vld [vmem:[%s910] sm:$0xff]
  %912 = vmatpush.bf16.msra.mxu0 0
  %913 = vmatpush.bf16.msra.mxu0 0
  %914 = vmatpush.bf16.msra.mxu0 0
  %915 = vmatpush.bf16.msra.mxu0 0
  %916 = vmatpush.bf16.msra.mxu0 0
  %917 = vmatpush.bf16.msra.mxu0 0
  %918 = vmatpush.bf16.msra.mxu0 %v111
  %919 = vmatpush.bf16.msra.mxu0 %v110
  %920 = vmatmul.bf16.gmra.mxu0 %v878
  %v921 = vpop.f32.mrf.mxu0
  %v922 = vadd.f32 0.0, %v921
  %v923 = vpop.f32.mrf.mxu0
  %924 = vdwg.mxu0
  %v925 = vadd.f32 %v911, %v922
  %s926 = scalar_lea.vmem %s0, 240
  %v927 = vld [vmem:[%s926] sm:$0xff]
  %928 = vmatpush.bf16.msra.mxu0 0
  %929 = vmatpush.bf16.msra.mxu0 0
  %930 = vmatpush.bf16.msra.mxu0 0
  %931 = vmatpush.bf16.msra.mxu0 0
  %932 = vmatpush.bf16.msra.mxu0 0
  %933 = vmatpush.bf16.msra.mxu0 0
  %934 = vmatpush.bf16.msra.mxu0 %v139
  %935 = vmatpush.bf16.msra.mxu0 %v138
  %936 = vmatmul.bf16.gmra.mxu0 %v878
  %v937 = vpop.f32.mrf.mxu0
  %v938 = vadd.f32 0.0, %v937
  %v939 = vpop.f32.mrf.mxu0
  %940 = vdwg.mxu0
  %v941 = vadd.f32 %v927, %v938
  %v942 = vxor.u32 %v893, 2147483648
  %v943 = vmul.f32 %v942, 1.442695
  %v944 = vpow.pop %v943
  %v945 = vadd.f32 %v944, 1.0
  %v946 = vrcp.pop %v945
  %v947 = vmul.f32 %v945, %v946
  %v948 = vsub.f32 1.0, %v947
  %v949 = vmul.f32 %v946, %v948
  %v950 = vadd.f32 %v946, %v949
  %vm951 = vweird.f32 %v945
  %vm952 = vweird.f32 %v946
  %vm953 = vmor %vm951, %vm952
  %v954 = vsel %vm953, %v946, %v950
  %v955 = vand.u32 2147483647, %v945
  %vm956 = vcmp.eq.f32.partialorder %v955, 8.507059e+37
  %v957 = vand.u32 %v945, 2147483648
  %v958 = vor.u32 1.1754944e-38, %v957
  %v959 = vsel %vm956, %v958, %v954
  %v960 = vmul.f32 1.0, %v959
  %v961 = vxor.u32 %v909, 2147483648
  %v962 = vmul.f32 %v961, 1.442695
  %v963 = vpow.pop %v962
  %v964 = vadd.f32 %v963, 1.0
  %v965 = vrcp.pop %v964
  %v966 = vmul.f32 %v964, %v965
  %v967 = vsub.f32 1.0, %v966
  %v968 = vmul.f32 %v965, %v967
  %v969 = vadd.f32 %v965, %v968
  %vm970 = vweird.f32 %v964
  %vm971 = vweird.f32 %v965
  %vm972 = vmor %vm970, %vm971
  %v973 = vsel %vm972, %v965, %v969
  %v974 = vand.u32 2147483647, %v964
  %vm975 = vcmp.eq.f32.partialorder %v974, 8.507059e+37
  %v976 = vand.u32 %v964, 2147483648
  %v977 = vor.u32 1.1754944e-38, %v976
  %v978 = vsel %vm975, %v977, %v973
  %v979 = vmul.f32 1.0, %v978
  %v980 = vtanh.pop %v925
  %v981 = vxor.u32 %v941, 2147483648
  %v982 = vmul.f32 %v981, 1.442695
  %v983 = vpow.pop %v982
  %v984 = vadd.f32 %v983, 1.0
  %v985 = vrcp.pop %v984
  %v986 = vmul.f32 %v984, %v985
  %v987 = vsub.f32 1.0, %v986
  %v988 = vmul.f32 %v985, %v987
  %v989 = vadd.f32 %v985, %v988
  %vm990 = vweird.f32 %v984
  %vm991 = vweird.f32 %v985
  %vm992 = vmor %vm990, %vm991
  %v993 = vsel %vm992, %v985, %v989
  %v994 = vand.u32 2147483647, %v984
  %vm995 = vcmp.eq.f32.partialorder %v994, 8.507059e+37
  %v996 = vand.u32 %v984, 2147483648
  %v997 = vor.u32 1.1754944e-38, %v996
  %v998 = vsel %vm995, %v997, %v993
  %v999 = vmul.f32 1.0, %v998
  %v1000 = vmul.f32 %v979, %v871
  %v1001 = vmul.f32 %v960, %v980
  %v1002 = vadd.f32 %v1000, %v1001
  %v1003 = vtanh.pop %v1002
  %v1004 = vmul.f32 %v999, %v1003
  %v1005 = vpack.c.bf16 %v1004, %v1004
  %s1006 = scalar_lea.vmem %s0, 56
  %v1007 = vld [vmem:[%s1006] sm:$0xff]
  %v1009 = vsel %vm54, %v1005, 0
  %1011 = vmatpush.bf16.msra.mxu0 0
  %1012 = vmatpush.bf16.msra.mxu0 0
  %1013 = vmatpush.bf16.msra.mxu0 0
  %1014 = vmatpush.bf16.msra.mxu0 0
  %1015 = vmatpush.bf16.msra.mxu0 0
  %1016 = vmatpush.bf16.msra.mxu0 0
  %1017 = vmatpush.bf16.msra.mxu0 %v51
  %1018 = vmatpush.bf16.msra.mxu0 %v50
  %1019 = vmatmul.bf16.gmra.mxu0 %v1009
  %v1020 = vpop.f32.mrf.mxu0
  %v1021 = vadd.f32 0.0, %v1020
  %v1022 = vpop.f32.mrf.mxu0
  %1023 = vdwg.mxu0
  %v1024 = vadd.f32 %v1007, %v1021
  %s1025 = scalar_lea.vmem %s0, 120
  %v1026 = vld [vmem:[%s1025] sm:$0xff]
  %1027 = vmatpush.bf16.msra.mxu0 0
  %1028 = vmatpush.bf16.msra.mxu0 0
  %1029 = vmatpush.bf16.msra.mxu0 0
  %1030 = vmatpush.bf16.msra.mxu0 0
  %1031 = vmatpush.bf16.msra.mxu0 0
  %1032 = vmatpush.bf16.msra.mxu0 0
  %1033 = vmatpush.bf16.msra.mxu0 %v83
  %1034 = vmatpush.bf16.msra.mxu0 %v82
  %1035 = vmatmul.bf16.gmra.mxu0 %v1009
  %v1036 = vpop.f32.mrf.mxu0
  %v1037 = vadd.f32 0.0, %v1036
  %v1038 = vpop.f32.mrf.mxu0
  %1039 = vdwg.mxu0
  %v1040 = vadd.f32 %v1026, %v1037
  %s1041 = scalar_lea.vmem %s0, 184
  %v1042 = vld [vmem:[%s1041] sm:$0xff]
  %1043 = vmatpush.bf16.msra.mxu0 0
  %1044 = vmatpush.bf16.msra.mxu0 0
  %1045 = vmatpush.bf16.msra.mxu0 0
  %1046 = vmatpush.bf16.msra.mxu0 0
  %1047 = vmatpush.bf16.msra.mxu0 0
  %1048 = vmatpush.bf16.msra.mxu0 0
  %1049 = vmatpush.bf16.msra.mxu0 %v111
  %1050 = vmatpush.bf16.msra.mxu0 %v110
  %1051 = vmatmul.bf16.gmra.mxu0 %v1009
  %v1052 = vpop.f32.mrf.mxu0
  %v1053 = vadd.f32 0.0, %v1052
  %v1054 = vpop.f32.mrf.mxu0
  %1055 = vdwg.mxu0
  %v1056 = vadd.f32 %v1042, %v1053
  %s1057 = scalar_lea.vmem %s0, 248
  %v1058 = vld [vmem:[%s1057] sm:$0xff]
  %1059 = vmatpush.bf16.msra.mxu0 0
  %1060 = vmatpush.bf16.msra.mxu0 0
  %1061 = vmatpush.bf16.msra.mxu0 0
  %1062 = vmatpush.bf16.msra.mxu0 0
  %1063 = vmatpush.bf16.msra.mxu0 0
  %1064 = vmatpush.bf16.msra.mxu0 0
  %1065 = vmatpush.bf16.msra.mxu0 %v139
  %1066 = vmatpush.bf16.msra.mxu0 %v138
  %1067 = vmatmul.bf16.gmra.mxu0 %v1009
  %v1068 = vpop.f32.mrf.mxu0
  %v1069 = vadd.f32 0.0, %v1068
  %v1070 = vpop.f32.mrf.mxu0
  %1071 = vdwg.mxu0
  %v1072 = vadd.f32 %v1058, %v1069
  %v1073 = vxor.u32 %v1024, 2147483648
  %v1074 = vmul.f32 %v1073, 1.442695
  %v1075 = vpow.pop %v1074
  %v1076 = vadd.f32 %v1075, 1.0
  %v1077 = vrcp.pop %v1076
  %v1078 = vmul.f32 %v1076, %v1077
  %v1079 = vsub.f32 1.0, %v1078
  %v1080 = vmul.f32 %v1077, %v1079
  %v1081 = vadd.f32 %v1077, %v1080
  %vm1082 = vweird.f32 %v1076
  %vm1083 = vweird.f32 %v1077
  %vm1084 = vmor %vm1082, %vm1083
  %v1085 = vsel %vm1084, %v1077, %v1081
  %v1086 = vand.u32 2147483647, %v1076
  %vm1087 = vcmp.eq.f32.partialorder %v1086, 8.507059e+37
  %v1088 = vand.u32 %v1076, 2147483648
  %v1089 = vor.u32 1.1754944e-38, %v1088
  %v1090 = vsel %vm1087, %v1089, %v1085
  %v1091 = vmul.f32 1.0, %v1090
  %v1092 = vxor.u32 %v1040, 2147483648
  %v1093 = vmul.f32 %v1092, 1.442695
  %v1094 = vpow.pop %v1093
  %v1095 = vadd.f32 %v1094, 1.0
  %v1096 = vrcp.pop %v1095
  %v1097 = vmul.f32 %v1095, %v1096
  %v1098 = vsub.f32 1.0, %v1097
  %v1099 = vmul.f32 %v1096, %v1098
  %v1100 = vadd.f32 %v1096, %v1099
  %vm1101 = vweird.f32 %v1095
  %vm1102 = vweird.f32 %v1096
  %vm1103 = vmor %vm1101, %vm1102
  %v1104 = vsel %vm1103, %v1096, %v1100
  %v1105 = vand.u32 2147483647, %v1095
  %vm1106 = vcmp.eq.f32.partialorder %v1105, 8.507059e+37
  %v1107 = vand.u32 %v1095, 2147483648
  %v1108 = vor.u32 1.1754944e-38, %v1107
  %v1109 = vsel %vm1106, %v1108, %v1104
  %v1110 = vmul.f32 1.0, %v1109
  %v1111 = vtanh.pop %v1056
  %v1112 = vxor.u32 %v1072, 2147483648
  %v1113 = vmul.f32 %v1112, 1.442695
  %v1114 = vpow.pop %v1113
  %v1115 = vadd.f32 %v1114, 1.0
  %v1116 = vrcp.pop %v1115
  %v1117 = vmul.f32 %v1115, %v1116
  %v1118 = vsub.f32 1.0, %v1117
  %v1119 = vmul.f32 %v1116, %v1118
  %v1120 = vadd.f32 %v1116, %v1119
  %vm1121 = vweird.f32 %v1115
  %vm1122 = vweird.f32 %v1116
  %vm1123 = vmor %vm1121, %vm1122
  %v1124 = vsel %vm1123, %v1116, %v1120
  %v1125 = vand.u32 2147483647, %v1115
  %vm1126 = vcmp.eq.f32.partialorder %v1125, 8.507059e+37
  %v1127 = vand.u32 %v1115, 2147483648
  %v1128 = vor.u32 1.1754944e-38, %v1127
  %v1129 = vsel %vm1126, %v1128, %v1124
  %v1130 = vmul.f32 1.0, %v1129
  %v1131 = vmul.f32 %v1110, %v1002
  %v1132 = vmul.f32 %v1091, %v1111
  %v1133 = vadd.f32 %v1131, %v1132
  %v1134 = vtanh.pop %v1133
  %v1135 = vmul.f32 %v1130, %v1134
  %1136 = vst.msk [vmem:[#allocation2] sm:$0xff] %vm54, %v1135
  %1137 = vst.msk [vmem:[#allocation3] sm:$0xff] %vm54, %v1133
  %1138 = vst.msk [vmem:[%s2] sm:$0xff] %vm54, %v1135
  // Predicated region
  $region14: #{lstm_classifier_head.2} parent=0 // pred_check
    _
  $region15: #{lstm_classifier_head.2} parent=0 // pred_check_branch
    %1140 = sbr.rel (0) target = $region17
  $region16: #{lstm_classifier_head.2} parent=0 // pred_region
    _
  $region17: #{lstm_classifier_head.2} parent=0 // pred_fallthru
    _
  // Predicated region
  $region18: #{lstm_classifier_head.2} parent=0 // pred_check
    _
  $region19: #{lstm_classifier_head.2} parent=0 // pred_check_branch
    %1142 = sbr.rel (0) target = $region21
  $region20: #{lstm_classifier_head.2} parent=0 // pred_region
    _
  $region21: #{lstm_classifier_head.2} parent=0 // pred_fallthru
    _

// kernel: lstm_classifier_head.3
$region0: #{lstm_classifier_head.3}
  #allocation0 [shape = 'u32[]', space=smem, size = 0x4, offset = 0x4, fixed_abs, tag = 'smem constant byte address 0x4 - core index']
  #allocation1 [shape = 'u32[72,128]{1,0:T(1,128)}', space=vmem, size = 0x9000, scoped, tag = 'internal scratch']
  %s0 = inlined_call_operand.vmem [shape: f32[8,32], index: 0, kind: input, shape index: {}]
  %s1 = inlined_call_operand.vmem [shape: f32[8,32], index: 1, kind: input, shape index: {}]
  %s2 = inlined_call_operand.vmem [shape: bf16[32,128], index: 2, kind: input, shape index: {}]
  %s3 = inlined_call_operand.vmem [shape: f32[1,128], index: 3, kind: input, shape index: {}]
  %s4 = inlined_call_operand.vmem [shape: bf16[32,30], index: 4, kind: input, shape index: {}]
  %s5 = inlined_call_operand.vmem [shape: bf16[32,30], index: 5, kind: input, shape index: {}]
  %s6 = inlined_call_operand.vmem [shape: f32[1,30], index: 6, kind: input, shape index: {}]
  %s7 = inlined_call_operand.vmem [shape: f32[8,30], index: 7, kind: output, shape index: {}]
  %s8 = sld [smem:[#allocation0]]
  $region38: #{lstm_classifier_head.3} parent=0
    _
  %s10 = ssub.s32 1, %s8
  %s11 = scalar_select 0, %s10, %s8
  // Predicated region
  $region2: #{lstm_classifier_head.3} parent=0 // pred_check
    _
  $region3: #{lstm_classifier_head.3} parent=0 // pred_check_branch
    %13 = sbr.rel (0) target = $region5
  $region4: #{lstm_classifier_head.3} parent=0 // pred_region
    _
  $region5: #{lstm_classifier_head.3} parent=0 // pred_fallthru
    _
  // Predicated region
  $region6: #{lstm_classifier_head.3} parent=0 // pred_check
    _
  $region7: #{lstm_classifier_head.3} parent=0 // pred_check_branch
    %15 = sbr.rel (0) target = $region9
  $region8: #{lstm_classifier_head.3} parent=0 // pred_region
    _
  $region9: #{lstm_classifier_head.3} parent=0 // pred_fallthru
    _
  // Predicated region
  $region10: #{lstm_classifier_head.3} parent=0 // pred_check
    _
  $region11: #{lstm_classifier_head.3} parent=0 // pred_check_branch
    %17 = sbr.rel (0) target = $region13
  $region12: #{lstm_classifier_head.3} parent=0 // pred_region
    _
  $region13: #{lstm_classifier_head.3} parent=0 // pred_fallthru
    _
  // Predicated region
  $region14: #{lstm_classifier_head.3} parent=0 // pred_check
    _
  $region15: #{lstm_classifier_head.3} parent=0 // pred_check_branch
    %19 = sbr.rel (0) target = $region17
  $region16: #{lstm_classifier_head.3} parent=0 // pred_region
    _
  $region17: #{lstm_classifier_head.3} parent=0 // pred_fallthru
    _
  // Predicated region
  $region18: #{lstm_classifier_head.3} parent=0 // pred_check
    _
  $region19: #{lstm_classifier_head.3} parent=0 // pred_check_branch
    %21 = sbr.rel (0) target = $region21
  $region20: #{lstm_classifier_head.3} parent=0 // pred_region
    _
  $region21: #{lstm_classifier_head.3} parent=0 // pred_fallthru
    _
  // Predicated region
  $region22: #{lstm_classifier_head.3} parent=0 // pred_check
    _
  $region23: #{lstm_classifier_head.3} parent=0 // pred_check_branch
    %23 = sbr.rel (0) target = $region25
  $region24: #{lstm_classifier_head.3} parent=0 // pred_region
    _
  $region25: #{lstm_classifier_head.3} parent=0 // pred_fallthru
    _
  // Predicated region
  $region26: #{lstm_classifier_head.3} parent=0 // pred_check
    _
  $region27: #{lstm_classifier_head.3} parent=0 // pred_check_branch
    %25 = sbr.rel (0) target = $region29
  $region28: #{lstm_classifier_head.3} parent=0 // pred_region
    _
  $region29: #{lstm_classifier_head.3} parent=0 // pred_fallthru
    _
  %v27 = vld [vmem:[%s1] sm:$0xff]
  %v28 = vpack.c.bf16 %v27, %v27
  %v29 = vld [vmem:[%s2] sm:$0xf]
  %v30 = vld [vmem:[%s2 + $0x4] sm:$0xf]
  %v31 = vld [vmem:[%s2 + $0x8] sm:$0xf]
  %v32 = vld [vmem:[%s2 + $0xc] sm:$0xf]
  %v33 = vld [vmem:[%s3] sm:$0x1]
  %v35 = vperm.slane %v33, 0
  %v41 = vunpack.c.l.b16 %v29
  %v42 = vunpack.c.l.b16 %v30
  %v43 = vunpack.c.l.b16 %v31
  %v44 = vunpack.c.l.b16 %v32
  %v45 = vpack.c.b16 %v42, %v41
  %v46 = vpack.c.b16 %v44, %v43
  %vm49 = vcmask 261120
  %v51 = vsel %vm49, %v28, 0
  %53 = vmatpush.bf16.msra.mxu0 0
  %54 = vmatpush.bf16.msra.mxu0 0
  %55 = vmatpush.bf16.msra.mxu0 0
  %56 = vmatpush.bf16.msra.mxu0 0
  %57 = vmatpush.bf16.msra.mxu0 0
  %58 = vmatpush.bf16.msra.mxu0 0
  %59 = vmatpush.bf16.msra.mxu0 %v46
  %60 = vmatpush.bf16.msra.mxu0 %v45
  %61 = vmatmul.bf16.gmra.mxu0 %v51
  %v62 = vpop.f32.mrf.mxu0
  %v63 = vadd.f32 %v35, %v62
  %v64 = vpop.f32.mrf.mxu0
  %65 = vdwg.mxu0
  %v66 = vxor.u32 %v63, 2147483648
  %v67 = vmul.f32 %v66, 1.442695
  %v68 = vpow.pop %v67
  %v69 = vadd.f32 %v68, 1.0
  %v70 = vrcp.pop %v69
  %v71 = vmul.f32 %v69, %v70
  %v72 = vsub.f32 1.0, %v71
  %v73 = vmul.f32 %v70, %v72
  %v74 = vadd.f32 %v70, %v73
  %vm75 = vweird.f32 %v69
  %vm76 = vweird.f32 %v70
  %vm77 = vmor %vm75, %vm76
  %v78 = vsel %vm77, %v70, %v74
  %v79 = vand.u32 2147483647, %v69
  %vm80 = vcmp.eq.f32.partialorder %v79, 8.507059e+37
  %v81 = vand.u32 %v69, 2147483648
  %v82 = vor.u32 1.1754944e-38, %v81
  %v83 = vsel %vm80, %v82, %v78
  %v84 = vmul.f32 1.0, %v83
  %v85 = vtanh.pop %v63
  %87 = vrot.lane.b32.xlu0 %v85, 64
  %v88 = vpop.permute.xlu0 %87
  %v90 = vmul.f32 %v84, %v88
  %v91 = vtanh.pop %v90
  %93 = vrot.lane.b32.xlu0 %v91, 96
  %v94 = vpop.permute.xlu0 %93
  %v96 = vmul.f32 %v84, %v94
  %v97 = vld [vmem:[%s0] sm:$0xff]
  %v98 = vpack.c.bf16 %v97, %v97
  %v99 = vld [vmem:[%s4] sm:$0xf]
  %v100 = vld [vmem:[%s4 + $0x4] sm:$0xf]
  %v101 = vld [vmem:[%s4 + $0x8] sm:$0xf]
  %v102 = vld [vmem:[%s4 + $0xc] sm:$0xf]
  %v103 = vpack.c.bf16 %v96, %v96
  %v104 = vld [vmem:[%s5] sm:$0xf]
  %v105 = vld [vmem:[%s5 + $0x4] sm:$0xf]
  %v106 = vld [vmem:[%s5 + $0x8] sm:$0xf]
  %v107 = vld [vmem:[%s5 + $0xc] sm:$0xf]
  %109 = vrot.lane.b32.xlu0 %v103, 32
  %v110 = vpop.permute.xlu0 %109
  %v115 = vunpack.c.l.b16 %v104
  %v116 = vunpack.c.l.b16 %v105
  %v117 = vunpack.c.l.b16 %v106
  %v118 = vunpack.c.l.b16 %v107
  %v119 = vpack.c.b16 %v116, %v115
  %v120 = vpack.c.b16 %v118, %v117
  %v124 = vsel %vm49, %v110, 0
  %126 = vmatpush.bf16.msra.mxu0 0
  %127 = vmatpush.bf16.msra.mxu0 0
  %128 = vmatpush.bf16.msra.mxu0 0
  %129 = vmatpush.bf16.msra.mxu0 0
  %130 = vmatpush.bf16.msra.mxu0 0
  %131 = vmatpush.bf16.msra.mxu0 0
  %132 = vmatpush.bf16.msra.mxu0 %v120
  %133 = vmatpush.bf16.msra.mxu0 %v119
  %134 = vmatmul.bf16.gmra.mxu0 %v124
  %v135 = vpop.f32.mrf.mxu0
  %v136 = vadd.f32 0.0, %v135
  %v137 = vpop.f32.mrf.mxu0
  %138 = vdwg.mxu0
  %v143 = vunpack.c.l.b16 %v99
  %v144 = vunpack.c.l.b16 %v100
  %v145 = vunpack.c.l.b16 %v101
  %v146 = vunpack.c.l.b16 %v102
  %v147 = vpack.c.b16 %v144, %v143
  %v148 = vpack.c.b16 %v146, %v145
  %v152 = vsel %vm49, %v98, 0
  %154 = vmatpush.bf16.msra.mxu0 0
  %155 = vmatpush.bf16.msra.mxu0 0
  %156 = vmatpush.bf16.msra.mxu0 0
  %157 = vmatpush.bf16.msra.mxu0 0
  %158 = vmatpush.bf16.msra.mxu0 0
  %159 = vmatpush.bf16.msra.mxu0 0
  %160 = vmatpush.bf16.msra.mxu0 %v148
  %161 = vmatpush.bf16.msra.mxu0 %v147
  %162 = vmatmul.bf16.gmra.mxu0 %v152
  %v163 = vpop.f32.mrf.mxu0
  %v164 = vadd.f32 %v136, %v163
  %v165 = vpop.f32.mrf.mxu0
  %166 = vdwg.mxu0
  %v167 = vld [vmem:[%s6] sm:$0x1]
  %v169 = vperm.slane %v167, 0
  %v171 = vadd.f32 %v164, %v169
  %vm172 = vcmask 244736
  %173 = vst.msk [vmem:[%s7] sm:$0xff] %vm172, %v171
  // Predicated region
  $region30: #{lstm_classifier_head.3} parent=0 // pred_check
    _
  $region31: #{lstm_classifier_head.3} parent=0 // pred_check_branch
    %175 = sbr.rel (0) target = $region33
  $region32: #{lstm_classifier_head.3} parent=0 // pred_region
    _
  $region33: #{lstm_classifier_head.3} parent=0 // pred_fallthru
    _
  // Predicated region
  $region34: #{lstm_classifier_head.3} parent=0 // pred_check
    _
  $region35: #{lstm_classifier_head.3} parent=0 // pred_check_branch
    %177 = sbr.rel (0) target = $region37
  $region36: #{lstm_classifier_head.3} parent=0 // pred_region
    _
  $region37: #{lstm_classifier_head.3} parent=0 // pred_fallthru
    _

// kernel: lstm_classifier_head.2
$region0: #{lstm_classifier_head.2}
  #allocation0 [shape = 'u32[]', space=smem, size = 0x4, offset = 0x4, fixed_abs, tag = 'smem constant byte address 0x4 - core index']
  #allocation1 [shape = 'u32[72,128]{1,0:T(1,128)}', space=vmem, size = 0x9000, scoped, tag = 'internal scratch']
  #allocation2 [shape = 'f32[8,32]{1,0:T(8,128)}', space=vmem, size = 0x1000, scoped, tag = 'scratch operand']
  #allocation3 [shape = 'f32[8,32]{1,0:T(8,128)}', space=vmem, size = 0x1000, scoped, tag = 'scratch operand']
  %s0 = inlined_call_operand.vmem [shape: f32[4,8,8,32], index: 0, kind: input, shape index: {}]
  %s1 = inlined_call_operand.vmem [shape: bf16[4,32,32], index: 1, kind: input, shape index: {}]
  %s2 = inlined_call_operand.vmem [shape: f32[8,32], index: 2, kind: output, shape index: {}]
  %s3 = sld [smem:[#allocation0]]
  $region22: #{lstm_classifier_head.2} parent=0
    _
  %s5 = ssub.s32 1, %s3
  %s6 = scalar_select 0, %s5, %s3
  // Predicated region
  $region2: #{lstm_classifier_head.2} parent=0 // pred_check
    _
  $region3: #{lstm_classifier_head.2} parent=0 // pred_check_branch
    %8 = sbr.rel (0) target = $region5
  $region4: #{lstm_classifier_head.2} parent=0 // pred_region
    _
  $region5: #{lstm_classifier_head.2} parent=0 // pred_fallthru
    _
  // Predicated region
  $region6: #{lstm_classifier_head.2} parent=0 // pred_check
    _
  $region7: #{lstm_classifier_head.2} parent=0 // pred_check_branch
    %10 = sbr.rel (0) target = $region9
  $region8: #{lstm_classifier_head.2} parent=0 // pred_region
    _
  $region9: #{lstm_classifier_head.2} parent=0 // pred_fallthru
    _
  %p12 = scmp.eq.s32.totalorder 0, 0
  // Predicated region
  $region10: #{lstm_classifier_head.2} parent=0 // pred_check
    %p13 = pneg %p12
  $region11: #{lstm_classifier_head.2} parent=0 // pred_check_branch
    %15 = sbr.rel (%p13) target = $region13
  $region12: #{lstm_classifier_head.2} parent=0 // pred_region
    %vm16 = vcmask 261120
    %17 = vst.msk [vmem:[#allocation2] sm:$0xff] %vm16, 0.0
    %18 = vst.msk [vmem:[#allocation3] sm:$0xff] %vm16, 0.0
  $region13: #{lstm_classifier_head.2} parent=0 // pred_fallthru
    _
  %v19 = vld [vmem:[%s1] sm:$0xf]
  %v20 = vld [vmem:[%s1 + $0x4] sm:$0xf]
  %v21 = vld [vmem:[%s1 + $0x8] sm:$0xf]
  %v22 = vld [vmem:[%s1 + $0xc] sm:$0xf]
  %s23 = scalar_lea.vmem %s1, 16
  %v24 = vld [vmem:[%s23] sm:$0xf]
  %v25 = vld [vmem:[%s23 + $0x4] sm:$0xf]
  %v26 = vld [vmem:[%s23 + $0x8] sm:$0xf]
  %v27 = vld [vmem:[%s23 + $0xc] sm:$0xf]
  %s28 = scalar_lea.vmem %s1, 32
  %v29 = vld [vmem:[%s28] sm:$0xf]
  %v30 = vld [vmem:[%s28 + $0x4] sm:$0xf]
  %v31 = vld [vmem:[%s28 + $0x8] sm:$0xf]
  %v32 = vld [vmem:[%s28 + $0xc] sm:$0xf]
  %s33 = scalar_lea.vmem %s1, 48
  %v34 = vld [vmem:[%s33] sm:$0xf]
  %v35 = vld [vmem:[%s33 + $0x4] sm:$0xf]
  %v36 = vld [vmem:[%s33 + $0x8] sm:$0xf]
  %v37 = vld [vmem:[%s33 + $0xc] sm:$0xf]
  %v38 = vld [vmem:[#allocation2] sm:$0xff]
  %v39 = vld [vmem:[#allocation3] sm:$0xff]
  %v40 = vpack.c.bf16 %v38, %v38
  %v41 = vld [vmem:[%s0] sm:$0xff]
  %v46 = vunpack.c.l.b16 %v19
  %v47 = vunpack.c.l.b16 %v20
  %v48 = vunpack.c.l.b16 %v21
  %v49 = vunpack.c.l.b16 %v22
  %v50 = vpack.c.b16 %v47, %v46
  %v51 = vpack.c.b16 %v49, %v48
  %vm54 = vcmask 261120
  %v56 = vsel %vm54, %v40, 0
  %58 = vmatpush.bf16.msra.mxu0 0
  %59 = vmatpush.bf16.msra.mxu0 0
  %60 = vmatpush.bf16.msra.mxu0 0
  %61 = vmatpush.bf16.msra.mxu0 0
  %62 = vmatpush.bf16.msra.mxu0 0
  %63 = vmatpush.bf16.msra.mxu0 0
  %64 = vmatpush.bf16.msra.mxu0 %v51
  %65 = vmatpush.bf16.msra.mxu0 %v50
  %66 = vmatmul.bf16.gmra.mxu0 %v56
  %v67 = vpop.f32.mrf.mxu0
  %v68 = vadd.f32 0.0, %v67
  %v69 = vpop.f32.mrf.mxu0
  %70 = vdwg.mxu0
  %v71 = vadd.f32 %v41, %v68
  %s72 = scalar_lea.vmem %s0, 64
  %v73 = vld [vmem:[%s72] sm:$0xff]
  %v78 = vunpack.c.l.b16 %v24
  %v79 = vunpack.c.l.b16 %v25
  %v80 = vunpack.c.l.b16 %v26
  %v81 = vunpack.c.l.b16 %v27
  %v82 = vpack.c.b16 %v79, %v78
  %v83 = vpack.c.b16 %v81, %v80
  %86 = vmatpush.bf16.msra.mxu0 0
  %87 = vmatpush.bf16.msra.mxu0 0
  %88 = vmatpush.bf16.msra.mxu0 0
  %89 = vmatpush.bf16.msra.mxu0 0
  %90 = vmatpush.bf16.msra.mxu0 0
  %91 = vmatpush.bf16.msra.mxu0 0
  %92 = vmatpush.bf16.msra.mxu0 %v83
  %93 = vmatpush.bf16.msra.mxu0 %v82
  %94 = vmatmul.bf16.gmra.mxu0 %v56
  %v95 = vpop.f32.mrf.mxu0
  %v96 = vadd.f32 0.0, %v95
  %v97 = vpop.f32.mrf.mxu0
  %98 = vdwg.mxu0
  %v99 = vadd.f32 %v73, %v96
  %s100 = scalar_lea.vmem %s0, 128
  %v101 = vld [vmem:[%s100] sm:$0xff]
  %v106 = vunpack.c.l.b16 %v29
  %v107 = vunpack.c.l.b16 %v30
  %v108 = vunpack.c.l.b16 %v31
  %v109 = vunpack.c.l.b16 %v32
  %v110 = vpack.c.b16 %v107, %v106
  %v111 = vpack.c.b16 %v109, %v108
  %114 = vmatpush.bf16.msra.mxu0 0
  %115 = vmatpush.bf16.msra.mxu0 0
  %116 = vmatpush.bf16.msra.mxu0 0
  %117 = vmatpush.bf16.msra.mxu0 0
  %118 = vmatpush.bf16.msra.mxu0 0
  %119 = vmatpush.bf16.msra.mxu0 0
  %120 = vmatpush.bf16.msra.mxu0 %v111
  %121 = vmatpush.bf16.msra.mxu0 %v110
  %122 = vmatmul.bf16.gmra.mxu0 %v56
  %v123 = vpop.f32.mrf.mxu0
  %v124 = vadd.f32 0.0, %v123
  %v125 = vpop.f32.mrf.mxu0
  %126 = vdwg.mxu0
  %v127 = vadd.f32 %v101, %v124
  %s128 = scalar_lea.vmem %s0, 192
  %v129 = vld [vmem:[%s128] sm:$0xff]
  %v134 = vunpack.c.l.b16 %v34
  %v135 = vunpack.c.l.b16 %v35
  %v136 = vunpack.c.l.b16 %v36
  %v137 = vunpack.c.l.b16 %v37
  %v138 = vpack.c.b16 %v135, %v134
  %v139 = vpack.c.b16 %v137, %v136
  %142 = vmatpush.bf16.msra.mxu0 0
  %143 = vmatpush.bf16.msra.mxu0 0
  %144 = vmatpush.bf16.msra.mxu0 0
  %145 = vmatpush.bf16.msra.mxu0 0
  %146 = vmatpush.bf16.msra.mxu0 0
  %147 = vmatpush.bf16.msra.mxu0 0
  %148 = vmatpush.bf16.msra.mxu0 %v139
  %149 = vmatpush.bf16.msra.mxu0 %v138
  %150 = vmatmul.bf16.gmra.mxu0 %v56
  %v151 = vpop.f32.mrf.mxu0
  %v152 = vadd.f32 0.0, %v151
  %v153 = vpop.f32.mrf.mxu0
  %154 = vdwg.mxu0
  %v155 = vadd.f32 %v129, %v152
  %v156 = vxor.u32 %v71, 2147483648
  %v157 = vmul.f32 %v156, 1.442695
  %v158 = vpow.pop %v157
  %v159 = vadd.f32 %v158, 1.0
  %v160 = vrcp.pop %v159
  %v161 = vmul.f32 %v159, %v160
  %v162 = vsub.f32 1.0, %v161
  %v163 = vmul.f32 %v160, %v162
  %v164 = vadd.f32 %v160, %v163
  %vm165 = vweird.f32 %v159
  %vm166 = vweird.f32 %v160
  %vm167 = vmor %vm165, %vm166
  %v168 = vsel %vm167, %v160, %v164
  %v169 = vand.u32 2147483647, %v159
  %vm170 = vcmp.eq.f32.partialorder %v169, 8.507059e+37
  %v171 = vand.u32 %v159, 2147483648
  %v172 = vor.u32 1.1754944e-38, %v171
  %v173 = vsel %vm170, %v172, %v168
  %v174 = vmul.f32 1.0, %v173
  %v175 = vxor.u32 %v99, 2147483648
  %v176 = vmul.f32 %v175, 1.442695
  %v177 = vpow.pop %v176
  %v178 = vadd.f32 %v177, 1.0
  %v179 = vrcp.pop %v178
  %v180 = vmul.f32 %v178, %v179
  %v181 = vsub.f32 1.0, %v180
  %v182 = vmul.f32 %v179, %v181
  %v183 = vadd.f32 %v179, %v182
  %vm184 = vweird.f32 %v178
  %vm185 = vweird.f32 %v179
  %vm186 = vmor %vm184, %vm185
  %v187 = vsel %vm186, %v179, %v183
  %v188 = vand.u32 2147483647, %v178
  %vm189 = vcmp.eq.f32.partialorder %v188, 8.507059e+37
  %v190 = vand.u32 %v178, 2147483648
  %v191 = vor.u32 1.1754944e-38, %v190
  %v192 = vsel %vm189, %v191, %v187
  %v193 = vmul.f32 1.0, %v192
  %v194 = vtanh.pop %v127
  %v195 = vxor.u32 %v155, 2147483648
  %v196 = vmul.f32 %v195, 1.442695
  %v197 = vpow.pop %v196
  %v198 = vadd.f32 %v197, 1.0
  %v199 = vrcp.pop %v198
  %v200 = vmul.f32 %v198, %v199
  %v201 = vsub.f32 1.0, %v200
  %v202 = vmul.f32 %v199, %v201
  %v203 = vadd.f32 %v199, %v202
  %vm204 = vweird.f32 %v198
  %vm205 = vweird.f32 %v199
  %vm206 = vmor %vm204, %vm205
  %v207 = vsel %vm206, %v199, %v203
  %v208 = vand.u32 2147483647, %v198
  %vm209 = vcmp.eq.f32.partialorder %v208, 8.507059e+37
  %v210 = vand.u32 %v198, 2147483648
  %v211 = vor.u32 1.1754944e-38, %v210
  %v212 = vsel %vm209, %v211, %v207
  %v213 = vmul.f32 1.0, %v212
  %v214 = vmul.f32 %v193, %v39
  %v215 = vmul.f32 %v174, %v194
  %v216 = vadd.f32 %v214, %v215
  %v217 = vtanh.pop %v216
  %v218 = vmul.f32 %v213, %v217
  %v219 = vpack.c.bf16 %v218, %v218
  %s220 = scalar_lea.vmem %s0, 8
  %v221 = vld [vmem:[%s220] sm:$0xff]
  %v223 = vsel %vm54, %v219, 0
  %225 = vmatpush.bf16.msra.mxu0 0
  %226 = vmatpush.bf16.msra.mxu0 0
  %227 = vmatpush.bf16.msra.mxu0 0
  %228 = vmatpush.bf16.msra.mxu0 0
  %229 = vmatpush.bf16.msra.mxu0 0
  %230 = vmatpush.bf16.msra.mxu0 0
  %231 = vmatpush.bf16.msra.mxu0 %v51
  %232 = vmatpush.bf16.msra.mxu0 %v50
  %233 = vmatmul.bf16.gmra.mxu0 %v223
  %v234 = vpop.f32.mrf.mxu0
  %v235 = vadd.f32 0.0, %v234
  %v236 = vpop.f32.mrf.mxu0
  %237 = vdwg.mxu0
  %v238 = vadd.f32 %v221, %v235
  %s239 = scalar_lea.vmem %s0, 72
  %v240 = vld [vmem:[%s239] sm:$0xff]
  %241 = vmatpush.bf16.msra.mxu0 0
  %242 = vmatpush.bf16.msra.mxu0 0
  %243 = vmatpush.bf16.msra.mxu0 0
  %244 = vmatpush.bf16.msra.mxu0 0
  %245 = vmatpush.bf16.msra.mxu0 0
  %246 = vmatpush.bf16.msra.mxu0 0
  %247 = vmatpush.bf16.msra.mxu0 %v83
  %248 = vmatpush.bf16.msra.mxu0 %v82
  %249 = vmatmul.bf16.gmra.mxu0 %v223
  %v250 = vpop.f32.mrf.mxu0
  %v251 = vadd.f32 0.0, %v250
  %v252 = vpop.f32.mrf.mxu0
  %253 = vdwg.mxu0
  %v254 = vadd.f32 %v240, %v251
  %s255 = scalar_lea.vmem %s0, 136
  %v256 = vld [vmem:[%s255] sm:$0xff]
  %257 = vmatpush.bf16.msra.mxu0 0
  %258 = vmatpush.bf16.msra.mxu0 0
  %259 = vmatpush.bf16.msra.mxu0 0
  %260 = vmatpush.bf16.msra.mxu0 0
  %261 = vmatpush.bf16.msra.mxu0 0
  %262 = vmatpush.bf16.msra.mxu0 0
  %263 = vmatpush.bf16.msra.mxu0 %v111
  %264 = vmatpush.bf16.msra.mxu0 %v110
  %265 = vmatmul.bf16.gmra.mxu0 %v223
  %v266 = vpop.f32.mrf.mxu0
  %v267 = vadd.f32 0.0, %v266
  %v268 = vpop.f32.mrf.mxu0
  %269 = vdwg.mxu0
  %v270 = vadd.f32 %v256, %v267
  %s271 = scalar_lea.vmem %s0, 200
  %v272 = vld [vmem:[%s271] sm:$0xff]
  %273 = vmatpush.bf16.msra.mxu0 0
  %274 = vmatpush.bf16.msra.mxu0 0
  %275 = vmatpush.bf16.msra.mxu0 0
  %276 = vmatpush.bf16.msra.mxu0 0
  %277 = vmatpush.bf16.msra.mxu0 0
  %278 = vmatpush.bf16.msra.mxu0 0
  %279 = vmatpush.bf16.msra.mxu0 %v139
  %280 = vmatpush.bf16.msra.mxu0 %v138
  %281 = vmatmul.bf16.gmra.mxu0 %v223
  %v282 = vpop.f32.mrf.mxu0
  %v283 = vadd.f32 0.0, %v282
  %v284 = vpop.f32.mrf.mxu0
  %285 = vdwg.mxu0
  %v286 = vadd.f32 %v272, %v283
  %v287 = vxor.u32 %v238, 2147483648
  %v288 = vmul.f32 %v287, 1.442695
  %v289 = vpow.pop %v288
  %v290 = vadd.f32 %v289, 1.0
  %v291 = vrcp.pop %v290
  %v292 = vmul.f32 %v290, %v291
  %v293 = vsub.f32 1.0, %v292
  %v294 = vmul.f32 %v291, %v293
  %v295 = vadd.f32 %v291, %v294
  %vm296 = vweird.f32 %v290
  %vm297 = vweird.f32 %v291
  %vm298 = vmor %vm296, %vm297
  %v299 = vsel %vm298, %v291, %v295
  %v300 = vand.u32 2147483647, %v290
  %vm301 = vcmp.eq.f32.partialorder %v300, 8.507059e+37
  %v302 = vand.u32 %v290, 2147483648
  %v303 = vor.u32 1.1754944e-38, %v302
  %v304 = vsel %vm301, %v303, %v299
  %v305 = vmul.f32 1.0, %v304
  %v306 = vxor.u32 %v254, 2147483648
  %v307 = vmul.f32 %v306, 1.442695
  %v308 = vpow.pop %v307
  %v309 = vadd.f32 %v308, 1.0
  %v310 = vrcp.pop %v309
  %v311 = vmul.f32 %v309, %v310
  %v312 = vsub.f32 1.0, %v311
  %v313 = vmul.f32 %v310, %v312
  %v314 = vadd.f32 %v310, %v313
  %vm315 = vweird.f32 %v309
  %vm316 = vweird.f32 %v310
  %vm317 = vmor %vm315, %vm316
  %v318 = vsel %vm317, %v310, %v314
  %v319 = vand.u32 2147483647, %v309
  %vm320 = vcmp.eq.f32.partialorder %v319, 8.507059e+37
  %v321 = vand.u32 %v309, 2147483648
  %v322 = vor.u32 1.1754944e-38, %v321
  %v323 = vsel %vm320, %v322, %v318
  %v324 = vmul.f32 1.0, %v323
  %v325 = vtanh.pop %v270
  %v326 = vxor.u32 %v286, 2147483648
  %v327 = vmul.f32 %v326, 1.442695
  %v328 = vpow.pop %v327
  %v329 = vadd.f32 %v328, 1.0
  %v330 = vrcp.pop %v329
  %v331 = vmul.f32 %v329, %v330
  %v332 = vsub.f32 1.0, %v331
  %v333 = vmul.f32 %v330, %v332
  %v334 = vadd.f32 %v330, %v333
  %vm335 = vweird.f32 %v329
  %vm336 = vweird.f32 %v330
  %vm337 = vmor %vm335, %vm336
  %v338 = vsel %vm337, %v330, %v334
  %v339 = vand.u32 2147483647, %v329
  %vm340 = vcmp.eq.f32.partialorder %v339, 8.507059e+37
  %v341 = vand.u32 %v329, 2147483648
  %v342 = vor.u32 1.1754944e-38, %v341
  %v343 = vsel %vm340, %v342, %v338
  %v344 = vmul.f32 1.0, %v343
  %v345 = vmul.f32 %v324, %v216
  %v346 = vmul.f32 %v305, %v325
  %v347 = vadd.f32 %v345, %v346
  %v348 = vtanh.pop %v347
  %v349 = vmul.f32 %v344, %v348
  %v350 = vpack.c.bf16 %v349, %v349
  %s351 = scalar_lea.vmem %s0, 16
  %v352 = vld [vmem:[%s351] sm:$0xff]
  %v354 = vsel %vm54, %v350, 0
  %356 = vmatpush.bf16.msra.mxu0 0
  %357 = vmatpush.bf16.msra.mxu0 0
  %358 = vmatpush.bf16.msra.mxu0 0
  %359 = vmatpush.bf16.msra.mxu0 0
  %360 = vmatpush.bf16.msra.mxu0 0
  %361 = vmatpush.bf16.msra.mxu0 0
  %362 = vmatpush.bf16.msra.mxu0 %v51
  %363 = vmatpush.bf16.msra.mxu0 %v50
  %364 = vmatmul.bf16.gmra.mxu0 %v354
  %v365 = vpop.f32.mrf.mxu0
  %v366 = vadd.f32 0.0, %v365
  %v367 = vpop.f32.mrf.mxu0
  %368 = vdwg.mxu0
  %v369 = vadd.f32 %v352, %v366
  %s370 = scalar_lea.vmem %s0, 80
  %v371 = vld [vmem:[%s370] sm:$0xff]
  %372 = vmatpush.bf16.msra.mxu0 0
  %373 = vmatpush.bf16.msra.mxu0 0
  %374 = vmatpush.bf16.msra.mxu0 0
  %375 = vmatpush.bf16.msra.mxu0 0
  %376 = vmatpush.bf16.msra.mxu0 0
  %377 = vmatpush.bf16.msra.mxu0 0
  %378 = vmatpush.bf16.msra.mxu0 %v83
  %379 = vmatpush.bf16.msra.mxu0 %v82
  %380 = vmatmul.bf16.gmra.mxu0 %v354
  %v381 = vpop.f32.mrf.mxu0
  %v382 = vadd.f32 0.0, %v381
  %v383 = vpop.f32.mrf.mxu0
  %384 = vdwg.mxu0
  %v385 = vadd.f32 %v371, %v382
  %s386 = scalar_lea.vmem %s0, 144
  %v387 = vld [vmem:[%s386] sm:$0xff]
  %388 = vmatpush.bf16.msra.mxu0 0
  %389 = vmatpush.bf16.msra.mxu0 0
  %390 = vmatpush.bf16.msra.mxu0 0
  %391 = vmatpush.bf16.msra.mxu0 0
  %392 = vmatpush.bf16.msra.mxu0 0
  %393 = vmatpush.bf16.msra.mxu0 0
  %394 = vmatpush.bf16.msra.mxu0 %v111
  %395 = vmatpush.bf16.msra.mxu0 %v110
  %396 = vmatmul.bf16.gmra.mxu0 %v354
  %v397 = vpop.f32.mrf.mxu0
  %v398 = vadd.f32 0.0, %v397
  %v399 = vpop.f32.mrf.mxu0
  %400 = vdwg.mxu0
  %v401 = vadd.f32 %v387, %v398
  %s402 = scalar_lea.vmem %s0, 208
  %v403 = vld [vmem:[%s402] sm:$0xff]
  %404 = vmatpush.bf16.msra.mxu0 0
  %405 = vmatpush.bf16.msra.mxu0 0
  %406 = vmatpush.bf16.msra.mxu0 0
  %407 = vmatpush.bf16.msra.mxu0 0
  %408 = vmatpush.bf16.msra.mxu0 0
  %409 = vmatpush.bf16.msra.mxu0 0
  %410 = vmatpush.bf16.msra.mxu0 %v139
  %411 = vmatpush.bf16.msra.mxu0 %v138
  %412 = vmatmul.bf16.gmra.mxu0 %v354
  %v413 = vpop.f32.mrf.mxu0
  %v414 = vadd.f32 0.0, %v413
  %v415 = vpop.f32.mrf.mxu0
  %416 = vdwg.mxu0
  %v417 = vadd.f32 %v403, %v414
  %v418 = vxor.u32 %v369, 2147483648
  %v419 = vmul.f32 %v418, 1.442695
  %v420 = vpow.pop %v419
  %v421 = vadd.f32 %v420, 1.0
  %v422 = vrcp.pop %v421
  %v423 = vmul.f32 %v421, %v422
  %v424 = vsub.f32 1.0, %v423
  %v425 = vmul.f32 %v422, %v424
  %v426 = vadd.f32 %v422, %v425
  %vm427 = vweird.f32 %v421
  %vm428 = vweird.f32 %v422
  %vm429 = vmor %vm427, %vm428
  %v430 = vsel %vm429, %v422, %v426
  %v431 = vand.u32 2147483647, %v421
  %vm432 = vcmp.eq.f32.partialorder %v431, 8.507059e+37
  %v433 = vand.u32 %v421, 2147483648
  %v434 = vor.u32 1.1754944e-38, %v433
  %v435 = vsel %vm432, %v434, %v430
  %v436 = vmul.f32 1.0, %v435
  %v437 = vxor.u32 %v385, 2147483648
  %v438 = vmul.f32 %v437, 1.442695
  %v439 = vpow.pop %v438
  %v440 = vadd.f32 %v439, 1.0
  %v441 = vrcp.pop %v440
  %v442 = vmul.f32 %v440, %v441
  %v443 = vsub.f32 1.0, %v442
  %v444 = vmul.f32 %v441, %v443
  %v445 = vadd.f32 %v441, %v444
  %vm446 = vweird.f32 %v440
  %vm447 = vweird.f32 %v441
  %vm448 = vmor %vm446, %vm447
  %v449 = vsel %vm448, %v441, %v445
  %v450 = vand.u32 2147483647, %v440
  %vm451 = vcmp.eq.f32.partialorder %v450, 8.507059e+37
  %v452 = vand.u32 %v440, 2147483648
  %v453 = vor.u32 1.1754944e-38, %v452
  %v454 = vsel %vm451, %v453, %v449
  %v455 = vmul.f32 1.0, %v454
  %v456 = vtanh.pop %v401
  %v457 = vxor.u32 %v417, 2147483648
  %v458 = vmul.f32 %v457, 1.442695
  %v459 = vpow.pop %v458
  %v460 = vadd.f32 %v459, 1.0
  %v461 = vrcp.pop %v460
  %v462 = vmul.f32 %v460, %v461
  %v463 = vsub.f32 1.0, %v462
  %v464 = vmul.f32 %v461, %v463
  %v465 = vadd.f32 %v461, %v464
  %vm466 = vweird.f32 %v460
  %vm467 = vweird.f32 %v461
  %vm468 = vmor %vm466, %vm467
  %v469 = vsel %vm468, %v461, %v465
  %v470 = vand.u32 2147483647, %v460
  %vm471 = vcmp.eq.f32.partialorder %v470, 8.507059e+37
  %v472 = vand.u32 %v460, 2147483648
  %v473 = vor.u32 1.1754944e-38, %v472
  %v474 = vsel %vm471, %v473, %v469
  %v475 = vmul.f32 1.0, %v474
  %v476 = vmul.f32 %v455, %v347
  %v477 = vmul.f32 %v436, %v456
  %v478 = vadd.f32 %v476, %v477
  %v479 = vtanh.pop %v478
  %v480 = vmul.f32 %v475, %v479
  %v481 = vpack.c.bf16 %v480, %v480
  %s482 = scalar_lea.vmem %s0, 24
  %v483 = vld [vmem:[%s482] sm:$0xff]
  %v485 = vsel %vm54, %v481, 0
  %487 = vmatpush.bf16.msra.mxu0 0
  %488 = vmatpush.bf16.msra.mxu0 0
  %489 = vmatpush.bf16.msra.mxu0 0
  %490 = vmatpush.bf16.msra.mxu0 0
  %491 = vmatpush.bf16.msra.mxu0 0
  %492 = vmatpush.bf16.msra.mxu0 0
  %493 = vmatpush.bf16.msra.mxu0 %v51
  %494 = vmatpush.bf16.msra.mxu0 %v50
  %495 = vmatmul.bf16.gmra.mxu0 %v485
  %v496 = vpop.f32.mrf.mxu0
  %v497 = vadd.f32 0.0, %v496
  %v498 = vpop.f32.mrf.mxu0
  %499 = vdwg.mxu0
  %v500 = vadd.f32 %v483, %v497
  %s501 = scalar_lea.vmem %s0, 88
  %v502 = vld [vmem:[%s501] sm:$0xff]
  %503 = vmatpush.bf16.msra.mxu0 0
  %504 = vmatpush.bf16.msra.mxu0 0
  %505 = vmatpush.bf16.msra.mxu0 0
  %506 = vmatpush.bf16.msra.mxu0 0
  %507 = vmatpush.bf16.msra.mxu0 0
  %508 = vmatpush.bf16.msra.mxu0 0
  %509 = vmatpush.bf16.msra.mxu0 %v83
  %510 = vmatpush.bf16.msra.mxu0 %v82
  %511 = vmatmul.bf16.gmra.mxu0 %v485
  %v512 = vpop.f32.mrf.mxu0
  %v513 = vadd.f32 0.0, %v512
  %v514 = vpop.f32.mrf.mxu0
  %515 = vdwg.mxu0
  %v516 = vadd.f32 %v502, %v513
  %s517 = scalar_lea.vmem %s0, 152
  %v518 = vld [vmem:[%s517] sm:$0xff]
  %519 = vmatpush.bf16.msra.mxu0 0
  %520 = vmatpush.bf16.msra.mxu0 0
  %521 = vmatpush.bf16.msra.mxu0 0
  %522 = vmatpush.bf16.msra.mxu0 0
  %523 = vmatpush.bf16.msra.mxu0 0
  %524 = vmatpush.bf16.msra.mxu0 0
  %525 = vmatpush.bf16.msra.mxu0 %v111
  %526 = vmatpush.bf16.msra.mxu0 %v110
  %527 = vmatmul.bf16.gmra.mxu0 %v485
  %v528 = vpop.f32.mrf.mxu0
  %v529 = vadd.f32 0.0, %v528
  %v530 = vpop.f32.mrf.mxu0
  %531 = vdwg.mxu0
  %v532 = vadd.f32 %v518, %v529
  %s533 = scalar_lea.vmem %s0, 216
  %v534 = vld [vmem:[%s533] sm:$0xff]
  %535 = vmatpush.bf16.msra.mxu0 0
  %536 = vmatpush.bf16.msra.mxu0 0
  %537 = vmatpush.bf16.msra.mxu0 0
  %538 = vmatpush.bf16.msra.mxu0 0
  %539 = vmatpush.bf16.msra.mxu0 0
  %540 = vmatpush.bf16.msra.mxu0 0
  %541 = vmatpush.bf16.msra.mxu0 %v139
  %542 = vmatpush.bf16.msra.mxu0 %v138
  %543 = vmatmul.bf16.gmra.mxu0 %v485
  %v544 = vpop.f32.mrf.mxu0
  %v545 = vadd.f32 0.0, %v544
  %v546 = vpop.f32.mrf.mxu0
  %547 = vdwg.mxu0
  %v548 = vadd.f32 %v534, %v545
  %v549 = vxor.u32 %v500, 2147483648
  %v550 = vmul.f32 %v549, 1.442695
  %v551 = vpow.pop %v550
  %v552 = vadd.f32 %v551, 1.0
  %v553 = vrcp.pop %v552
  %v554 = vmul.f32 %v552, %v553
  %v555 = vsub.f32 1.0, %v554
  %v556 = vmul.f32 %v553, %v555
  %v557 = vadd.f32 %v553, %v556
  %vm558 = vweird.f32 %v552
  %vm559 = vweird.f32 %v553
  %vm560 = vmor %vm558, %vm559
  %v561 = vsel %vm560, %v553, %v557
  %v562 = vand.u32 2147483647, %v552
  %vm563 = vcmp.eq.f32.partialorder %v562, 8.507059e+37
  %v564 = vand.u32 %v552, 2147483648
  %v565 = vor.u32 1.1754944e-38, %v564
  %v566 = vsel %vm563, %v565, %v561
  %v567 = vmul.f32 1.0, %v566
  %v568 = vxor.u32 %v516, 2147483648
  %v569 = vmul.f32 %v568, 1.442695
  %v570 = vpow.pop %v569
  %v571 = vadd.f32 %v570, 1.0
  %v572 = vrcp.pop %v571
  %v573 = vmul.f32 %v571, %v572
  %v574 = vsub.f32 1.0, %v573
  %v575 = vmul.f32 %v572, %v574
  %v576 = vadd.f32 %v572, %v575
  %vm577 = vweird.f32 %v571
  %vm578 = vweird.f32 %v572
  %vm579 = vmor %vm577, %vm578
  %v580 = vsel %vm579, %v572, %v576
  %v581 = vand.u32 2147483647, %v571
  %vm582 = vcmp.eq.f32.partialorder %v581, 8.507059e+37
  %v583 = vand.u32 %v571, 2147483648
  %v584 = vor.u32 1.1754944e-38, %v583
  %v585 = vsel %vm582, %v584, %v580
  %v586 = vmul.f32 1.0, %v585
  %v587 = vtanh.pop %v532
  %v588 = vxor.u32 %v548, 2147483648
  %v589 = vmul.f32 %v588, 1.442695
  %v590 = vpow.pop %v589
  %v591 = vadd.f32 %v590, 1.0
  %v592 = vrcp.pop %v591
  %v593 = vmul.f32 %v591, %v592
  %v594 = vsub.f32 1.0, %v593
  %v595 = vmul.f32 %v592, %v594
  %v596 = vadd.f32 %v592, %v595
  %vm597 = vweird.f32 %v591
  %vm598 = vweird.f32 %v592
  %vm599 = vmor %vm597, %vm598
  %v600 = vsel %vm599, %v592, %v596
  %v601 = vand.u32 2147483647, %v591
  %vm602 = vcmp.eq.f32.partialorder %v601, 8.507059e+37
  %v603 = vand.u32 %v591, 2147483648
  %v604 = vor.u32 1.1754944e-38, %v603
  %v605 = vsel %vm602, %v604, %v600
  %v606 = vmul.f32 1.0, %v605
  %v607 = vmul.f32 %v586, %v478
  %v608 = vmul.f32 %v567, %v587
  %v609 = vadd.f32 %v607, %v608
  %v610 = vtanh.pop %v609
  %v611 = vmul.f32 %v606, %v610
  %v612 = vpack.c.bf16 %v611, %v611
  %s613 = scalar_lea.vmem %s0, 32
  %v614 = vld [vmem:[%s613] sm:$0xff]
  %v616 = vsel %vm54, %v612, 0
  %618 = vmatpush.bf16.msra.mxu0 0
  %619 = vmatpush.bf16.msra.mxu0 0
  %620 = vmatpush.bf16.msra.mxu0 0
  %621 = vmatpush.bf16.msra.mxu0 0
  %622 = vmatpush.bf16.msra.mxu0 0
  %623 = vmatpush.bf16.msra.mxu0 0
  %624 = vmatpush.bf16.msra.mxu0 %v51
  %625 = vmatpush.bf16.msra.mxu0 %v50
  %626 = vmatmul.bf16.gmra.mxu0 %v616
  %v627 = vpop.f32.mrf.mxu0
  %v628 = vadd.f32 0.0, %v627
  %v629 = vpop.f32.mrf.mxu0
  %630 = vdwg.mxu0
  %v631 = vadd.f32 %v614, %v628
  %s632 = scalar_lea.vmem %s0, 96
  %v633 = vld [vmem:[%s632] sm:$0xff]
  %634 = vmatpush.bf16.msra.mxu0 0
  %635 = vmatpush.bf16.msra.mxu0 0
  %636 = vmatpush.bf16.msra.mxu0 0
  %637 = vmatpush.bf16.msra.mxu0 0
  %638 = vmatpush.bf16.msra.mxu0 0
  %639 = vmatpush.bf16.msra.mxu0 0
  %640 = vmatpush.bf16.msra.mxu0 %v83
  %641 = vmatpush.bf16.msra.mxu0 %v82
  %642 = vmatmul.bf16.gmra.mxu0 %v616
  %v643 = vpop.f32.mrf.mxu0
  %v644 = vadd.f32 0.0, %v643
  %v645 = vpop.f32.mrf.mxu0
  %646 = vdwg.mxu0
  %v647 = vadd.f32 %v633, %v644
  %s648 = scalar_lea.vmem %s0, 160
  %v649 = vld [vmem:[%s648] sm:$0xff]
  %650 = vmatpush.bf16.msra.mxu0 0
  %651 = vmatpush.bf16.msra.mxu0 0
  %652 = vmatpush.bf16.msra.mxu0 0
  %653 = vmatpush.bf16.msra.mxu0 0
  %654 = vmatpush.bf16.msra.mxu0 0
  %655 = vmatpush.bf16.msra.mxu0 0
  %656 = vmatpush.bf16.msra.mxu0 %v111
  %657 = vmatpush.bf16.msra.mxu0 %v110
  %658 = vmatmul.bf16.gmra.mxu0 %v616
  %v659 = vpop.f32.mrf.mxu0
  %v660 = vadd.f32 0.0, %v659
  %v661 = vpop.f32.mrf.mxu0
  %662 = vdwg.mxu0
  %v663 = vadd.f32 %v649, %v660
  %s664 = scalar_lea.vmem %s0, 224
  %v665 = vld [vmem:[%s664] sm:$0xff]
  %666 = vmatpush.bf16.msra.mxu0 0
  %667 = vmatpush.bf16.msra.mxu0 0
  %668 = vmatpush.bf16.msra.mxu0 0
  %669 = vmatpush.bf16.msra.mxu0 0
  %670 = vmatpush.bf16.msra.mxu0 0
  %671 = vmatpush.bf16.msra.mxu0 0
  %672 = vmatpush.bf16.msra.mxu0 %v139
  %673 = vmatpush.bf16.msra.mxu0 %v138
  %674 = vmatmul.bf16.gmra.mxu0 %v616
  %v675 = vpop.f32.mrf.mxu0
  %v676 = vadd.f32 0.0, %v675
  %v677 = vpop.f32.mrf.mxu0
  %678 = vdwg.mxu0
  %v679 = vadd.f32 %v665, %v676
  %v680 = vxor.u32 %v631, 2147483648
  %v681 = vmul.f32 %v680, 1.442695
  %v682 = vpow.pop %v681
  %v683 = vadd.f32 %v682, 1.0
  %v684 = vrcp.pop %v683
  %v685 = vmul.f32 %v683, %v684
  %v686 = vsub.f32 1.0, %v685
  %v687 = vmul.f32 %v684, %v686
  %v688 = vadd.f32 %v684, %v687
  %vm689 = vweird.f32 %v683
  %vm690 = vweird.f32 %v684
  %vm691 = vmor %vm689, %vm690
  %v692 = vsel %vm691, %v684, %v688
  %v693 = vand.u32 2147483647, %v683
  %vm694 = vcmp.eq.f32.partialorder %v693, 8.507059e+37
  %v695 = vand.u32 %v683, 2147483648
  %v696 = vor.u32 1.1754944e-38, %v695
  %v697 = vsel %vm694, %v696, %v692
  %v698 = vmul.f32 1.0, %v697
  %v699 = vxor.u32 %v647, 2147483648
  %v700 = vmul.f32 %v699, 1.442695
  %v701 = vpow.pop %v700
  %v702 = vadd.f32 %v701, 1.0
  %v703 = vrcp.pop %v702
  %v704 = vmul.f32 %v702, %v703
  %v705 = vsub.f32 1.0, %v704
  %v706 = vmul.f32 %v703, %v705
  %v707 = vadd.f32 %v703, %v706
  %vm708 = vweird.f32 %v702
  %vm709 = vweird.f32 %v703
  %vm710 = vmor %vm708, %vm709
  %v711 = vsel %vm710, %v703, %v707
  %v712 = vand.u32 2147483647, %v702
  %vm713 = vcmp.eq.f32.partialorder %v712, 8.507059e+37
  %v714 = vand.u32 %v702, 2147483648
  %v715 = vor.u32 1.1754944e-38, %v714
  %v716 = vsel %vm713, %v715, %v711
  %v717 = vmul.f32 1.0, %v716
  %v718 = vtanh.pop %v663
  %v719 = vxor.u32 %v679, 2147483648
  %v720 = vmul.f32 %v719, 1.442695
  %v721 = vpow.pop %v720
  %v722 = vadd.f32 %v721, 1.0
  %v723 = vrcp.pop %v722
  %v724 = vmul.f32 %v722, %v723
  %v725 = vsub.f32 1.0, %v724
  %v726 = vmul.f32 %v723, %v725
  %v727 = vadd.f32 %v723, %v726
  %vm728 = vweird.f32 %v722
  %vm729 = vweird.f32 %v723
  %vm730 = vmor %vm728, %vm729
  %v731 = vsel %vm730, %v723, %v727
  %v732 = vand.u32 2147483647, %v722
  %vm733 = vcmp.eq.f32.partialorder %v732, 8.507059e+37
  %v734 = vand.u32 %v722, 2147483648
  %v735 = vor.u32 1.1754944e-38, %v734
  %v736 = vsel %vm733, %v735, %v731
  %v737 = vmul.f32 1.0, %v736
  %v738 = vmul.f32 %v717, %v609
  %v739 = vmul.f32 %v698, %v718
  %v740 = vadd.f32 %v738, %v739
  %v741 = vtanh.pop %v740
  %v742 = vmul.f32 %v737, %v741
  %v743 = vpack.c.bf16 %v742, %v742
  %s744 = scalar_lea.vmem %s0, 40
  %v745 = vld [vmem:[%s744] sm:$0xff]
  %v747 = vsel %vm54, %v743, 0
  %749 = vmatpush.bf16.msra.mxu0 0
  %750 = vmatpush.bf16.msra.mxu0 0
  %751 = vmatpush.bf16.msra.mxu0 0
  %752 = vmatpush.bf16.msra.mxu0 0
  %753 = vmatpush.bf16.msra.mxu0 0
  %754 = vmatpush.bf16.msra.mxu0 0
  %755 = vmatpush.bf16.msra.mxu0 %v51
  %756 = vmatpush.bf16.msra.mxu0 %v50
  %757 = vmatmul.bf16.gmra.mxu0 %v747
  %v758 = vpop.f32.mrf.mxu0
  %v759 = vadd.f32 0.0, %v758
  %v760 = vpop.f32.mrf.mxu0
  %761 = vdwg.mxu0
  %v762 = vadd.f32 %v745, %v759
  %s763 = scalar_lea.vmem %s0, 104
  %v764 = vld [vmem:[%s763] sm:$0xff]
  %765 = vmatpush.bf16.msra.mxu0 0
  %766 = vmatpush.bf16.msra.mxu0 0
  %767 = vmatpush.bf16.msra.mxu0 0
  %768 = vmatpush.bf16.msra.mxu0 0
  %769 = vmatpush.bf16.msra.mxu0 0
  %770 = vmatpush.bf16.msra.mxu0 0
  %771 = vmatpush.bf16.msra.mxu0 %v83
  %772 = vmatpush.bf16.msra.mxu0 %v82
  %773 = vmatmul.bf16.gmra.mxu0 %v747
  %v774 = vpop.f32.mrf.mxu0
  %v775 = vadd.f32 0.0, %v774
  %v776 = vpop.f32.mrf.mxu0
  %777 = vdwg.mxu0
  %v778 = vadd.f32 %v764, %v775
  %s779 = scalar_lea.vmem %s0, 168
  %v780 = vld [vmem:[%s779] sm:$0xff]
  %781 = vmatpush.bf16.msra.mxu0 0
  %782 = vmatpush.bf16.msra.mxu0 0
  %783 = vmatpush.bf16.msra.mxu0 0
  %784 = vmatpush.bf16.msra.mxu0 0
  %785 = vmatpush.bf16.msra.mxu0 0
  %786 = vmatpush.bf16.msra.mxu0 0
  %787 = vmatpush.bf16.msra.mxu0 %v111
  %788 = vmatpush.bf16.msra.mxu0 %v110
  %789 = vmatmul.bf16.gmra.mxu0 %v747
  %v790 = vpop.f32.mrf.mxu0
  %v791 = vadd.f32 0.0, %v790
  %v792 = vpop.f32.mrf.mxu0
  %793 = vdwg.mxu0
  %v794 = vadd.f32 %v780, %v791
  %s795 = scalar_lea.vmem %s0, 232
  %v796 = vld [vmem:[%s795] sm:$0xff]
  %797 = vmatpush.bf16.msra.mxu0 0
  %798 = vmatpush.bf16.msra.mxu0 0
  %799 = vmatpush.bf16.msra.mxu0 0
  %800 = vmatpush.bf16.msra.mxu0 0
  %801 = vmatpush.bf16.msra.mxu0 0
  %802 = vmatpush.bf16.msra.mxu0 0
  %803 = vmatpush.bf16.msra.mxu0 %v139
  %804 = vmatpush.bf16.msra.mxu0 %v138
  %805 = vmatmul.bf16.gmra.mxu0 %v747
  %v806 = vpop.f32.mrf.mxu0
  %v807 = vadd.f32 0.0, %v806
  %v808 = vpop.f32.mrf.mxu0
  %809 = vdwg.mxu0
  %v810 = vadd.f32 %v796, %v807
  %v811 = vxor.u32 %v762, 2147483648
  %v812 = vmul.f32 %v811, 1.442695
  %v813 = vpow.pop %v812
  %v814 = vadd.f32 %v813, 1.0
  %v815 = vrcp.pop %v814
  %v816 = vmul.f32 %v814, %v815
  %v817 = vsub.f32 1.0, %v816
  %v818 = vmul.f32 %v815, %v817
  %v819 = vadd.f32 %v815, %v818
  %vm820 = vweird.f32 %v814
  %vm821 = vweird.f32 %v815
  %vm822 = vmor %vm820, %vm821
  %v823 = vsel %vm822, %v815, %v819
  %v824 = vand.u32 2147483647, %v814
  %vm825 = vcmp.eq.f32.partialorder %v824, 8.507059e+37
  %v826 = vand.u32 %v814, 2147483648
  %v827 = vor.u32 1.1754944e-38, %v826
  %v828 = vsel %vm825, %v827, %v823
  %v829 = vmul.f32 1.0, %v828
  %v830 = vxor.u32 %v778, 2147483648
  %v831 = vmul.f32 %v830, 1.442695
  %v832 = vpow.pop %v831
  %v833 = vadd.f32 %v832, 1.0
  %v834 = vrcp.pop %v833
  %v835 = vmul.f32 %v833, %v834
  %v836 = vsub.f32 1.0, %v835
  %v837 = vmul.f32 %v834, %v836
  %v838 = vadd.f32 %v834, %v837
  %vm839 = vweird.f32 %v833
  %vm840 = vweird.f32 %v834
  %vm841 = vmor %vm839, %vm840
  %v842 = vsel %vm841, %v834, %v838
  %v843 = vand.u32 2147483647, %v833
  %vm844 = vcmp.eq.f32.partialorder %v843, 8.507059e+37
  %v845 = vand.u32 %v833, 2147483648
  %v846 = vor.u32 1.1754944e-38, %v845
  %v847 = vsel %vm844, %v846, %v842
  %v848 = vmul.f32 1.0, %v847
  %v849 = vtanh.pop %v794
  %v850 = vxor.u32 %v810, 2147483648
  %v851 = vmul.f32 %v850, 1.442695
  %v852 = vpow.pop %v851
  %v853 = vadd.f32 %v852, 1.0
  %v854 = vrcp.pop %v853
  %v855 = vmul.f32 %v853, %v854
  %v856 = vsub.f32 1.0, %v855
  %v857 = vmul.f32 %v854, %v856
  %v858 = vadd.f32 %v854, %v857
  %vm859 = vweird.f32 %v853
  %vm860 = vweird.f32 %v854
  %vm861 = vmor %vm859, %vm860
  %v862 = vsel %vm861, %v854, %v858
  %v863 = vand.u32 2147483647, %v853
  %vm864 = vcmp.eq.f32.partialorder %v863, 8.507059e+37
  %v865 = vand.u32 %v853, 2147483648
  %v866 = vor.u32 1.1754944e-38, %v865
  %v867 = vsel %vm864, %v866, %v862
  %v868 = vmul.f32 1.0, %v867
  %v869 = vmul.f32 %v848, %v740
  %v870 = vmul.f32 %v829, %v849
  %v871 = vadd.f32 %v869, %v870
  %v872 = vtanh.pop %v871
  %v873 = vmul.f32 %v868, %v872
  %v874 = vpack.c.bf16 %v873, %v873
  %s875 = scalar_lea.vmem %s0, 48
  %v876 = vld [vmem:[%s875] sm:$0xff]
  %v878 = vsel %vm54, %v874, 0
  %880 = vmatpush.bf16.msra.mxu0 0
  %881 = vmatpush.bf16.msra.mxu0 0
  %882 = vmatpush.bf16.msra.mxu0 0
  %883 = vmatpush.bf16.msra.mxu0 0
  %884 = vmatpush.bf16.msra.mxu0 0
  %885 = vmatpush.bf16.msra.mxu0 0
  %886 = vmatpush.bf16.msra.mxu0 %v51
  %887 = vmatpush.bf16.msra.mxu0 %v50
  %888 = vmatmul.bf16.gmra.mxu0 %v878
  %v889 = vpop.f32.mrf.mxu0
  %v890 = vadd.f32 0.0, %v889
  %v891 = vpop.f32.mrf.mxu0
  %892 = vdwg.mxu0
  %v893 = vadd.f32 %v876, %v890
  %s894 = scalar_lea.vmem %s0, 112
  %v895 = vld [vmem:[%s894] sm:$0xff]
  %896 = vmatpush.bf16.msra.mxu0 0
  %897 = vmatpush.bf16.msra.mxu0 0
  %898 = vmatpush.bf16.msra.mxu0 0
  %899 = vmatpush.bf16.msra.mxu0 0
  %900 = vmatpush.bf16.msra.mxu0 0
  %901 = vmatpush.bf16.msra.mxu0 0
  %902 = vmatpush.bf16.msra.mxu0 %v83
  %903 = vmatpush.bf16.msra.mxu0 %v82
  %904 = vmatmul.bf16.gmra.mxu0 %v878
  %v905 = vpop.f32.mrf.mxu0
  %v906 = vadd.f32 0.0, %v905
  %v907 = vpop.f32.mrf.mxu0
  %908 = vdwg.mxu0
  %v909 = vadd.f32 %v895, %v906
  %s910 = scalar_lea.vmem %s0, 176
  %v911 = vld [vmem:[%s910] sm:$0xff]
  %912 = vmatpush.bf16.msra.mxu0 0
  %913 = vmatpush.bf16.msra.mxu0 0
  %914 = vmatpush.bf16.msra.mxu0 0
  %915 = vmatpush.bf16.msra.mxu0 0
  %916 = vmatpush.bf16.msra.mxu0 0
  %917 = vmatpush.bf16.msra.mxu0 0
  %918 = vmatpush.bf16.msra.mxu0 %v111
  %919 = vmatpush.bf16.msra.mxu0 %v110
  %920 = vmatmul.bf16.gmra.mxu0 %v878
  %v921 = vpop.f32.mrf.mxu0
  %v922 = vadd.f32 0.0, %v921
  %v923 = vpop.f32.mrf.mxu0
  %924 = vdwg.mxu0
  %v925 = vadd.f32 %v911, %v922
  %s926 = scalar_lea.vmem %s0, 240
  %v927 = vld [vmem:[%s926] sm:$0xff]
  %928 = vmatpush.bf16.msra.mxu0 0
  %929 = vmatpush.bf16.msra.mxu0 0
  %930 = vmatpush.bf16.msra.mxu0 0
  %931 = vmatpush.bf16.msra.mxu0 0
  %932 = vmatpush.bf16.msra.mxu0 0
  %933 = vmatpush.bf16.msra.mxu0 0
  %934 = vmatpush.bf16.msra.mxu0 %v139
  %935 = vmatpush.bf16.msra.mxu0 %v138
  %936 = vmatmul.bf16.gmra.mxu0 %v878
  %v937 = vpop.f32.mrf.mxu0
  %v938 = vadd.f32 0.0, %v937
  %v939 = vpop.f32.mrf.mxu0
  %940 = vdwg.mxu0
  %v941 = vadd.f32 %v927, %v938
  %v942 = vxor.u32 %v893, 2147483648
  %v943 = vmul.f32 %v942, 1.442695
  %v944 = vpow.pop %v943
  %v945 = vadd.f32 %v944, 1.0
  %v946 = vrcp.pop %v945
  %v947 = vmul.f32 %v945, %v946
  %v948 = vsub.f32 1.0, %v947
  %v949 = vmul.f32 %v946, %v948
  %v950 = vadd.f32 %v946, %v949
  %vm951 = vweird.f32 %v945
  %vm952 = vweird.f32 %v946
  %vm953 = vmor %vm951, %vm952
  %v954 = vsel %vm953, %v946, %v950
  %v955 = vand.u32 2147483647, %v945
  %vm956 = vcmp.eq.f32.partialorder %v955, 8.507059e+37
  %v957 = vand.u32 %v945, 2147483648
  %v958 = vor.u32 1.1754944e-38, %v957
  %v959 = vsel %vm956, %v958, %v954
  %v960 = vmul.f32 1.0, %v959
  %v961 = vxor.u32 %v909, 2147483648
  %v962 = vmul.f32 %v961, 1.442695
  %v963 = vpow.pop %v962
  %v964 = vadd.f32 %v963, 1.0
  %v965 = vrcp.pop %v964
  %v966 = vmul.f32 %v964, %v965
  %v967 = vsub.f32 1.0, %v966
  %v968 = vmul.f32 %v965, %v967
  %v969 = vadd.f32 %v965, %v968
  %vm970 = vweird.f32 %v964
  %vm971 = vweird.f32 %v965
  %vm972 = vmor %vm970, %vm971
  %v973 = vsel %vm972, %v965, %v969
  %v974 = vand.u32 2147483647, %v964
  %vm975 = vcmp.eq.f32.partialorder %v974, 8.507059e+37
  %v976 = vand.u32 %v964, 2147483648
  %v977 = vor.u32 1.1754944e-38, %v976
  %v978 = vsel %vm975, %v977, %v973
  %v979 = vmul.f32 1.0, %v978
  %v980 = vtanh.pop %v925
  %v981 = vxor.u32 %v941, 2147483648
  %v982 = vmul.f32 %v981, 1.442695
  %v983 = vpow.pop %v982
  %v984 = vadd.f32 %v983, 1.0
  %v985 = vrcp.pop %v984
  %v986 = vmul.f32 %v984, %v985
  %v987 = vsub.f32 1.0, %v986
  %v988 = vmul.f32 %v985, %v987
  %v989 = vadd.f32 %v985, %v988
  %vm990 = vweird.f32 %v984
  %vm991 = vweird.f32 %v985
  %vm992 = vmor %vm990, %vm991
  %v993 = vsel %vm992, %v985, %v989
  %v994 = vand.u32 2147483647, %v984
  %vm995 = vcmp.eq.f32.partialorder %v994, 8.507059e+37
  %v996 = vand.u32 %v984, 2147483648
  %v997 = vor.u32 1.1754944e-38, %v996
  %v998 = vsel %vm995, %v997, %v993
  %v999 = vmul.f32 1.0, %v998
  %v1000 = vmul.f32 %v979, %v871
  %v1001 = vmul.f32 %v960, %v980
  %v1002 = vadd.f32 %v1000, %v1001
  %v1003 = vtanh.pop %v1002
  %v1004 = vmul.f32 %v999, %v1003
  %v1005 = vpack.c.bf16 %v1004, %v1004
  %s1006 = scalar_lea.vmem %s0, 56
  %v1007 = vld [vmem:[%s1006] sm:$0xff]
  %v1009 = vsel %vm54, %v1005, 0
  %1011 = vmatpush.bf16.msra.mxu0 0
  %1012 = vmatpush.bf16.msra.mxu0 0
  %1013 = vmatpush.bf16.msra.mxu0 0
  %1014 = vmatpush.bf16.msra.mxu0 0
  %1015 = vmatpush.bf16.msra.mxu0 0
  %1016 = vmatpush.bf16.msra.mxu0 0
  %1017 = vmatpush.bf16.msra.mxu0 %v51
  %1018 = vmatpush.bf16.msra.mxu0 %v50
  %1019 = vmatmul.bf16.gmra.mxu0 %v1009
  %v1020 = vpop.f32.mrf.mxu0
  %v1021 = vadd.f32 0.0, %v1020
  %v1022 = vpop.f32.mrf.mxu0
  %1023 = vdwg.mxu0
  %v1024 = vadd.f32 %v1007, %v1021
  %s1025 = scalar_lea.vmem %s0, 120
  %v1026 = vld [vmem:[%s1025] sm:$0xff]
  %1027 = vmatpush.bf16.msra.mxu0 0
  %1028 = vmatpush.bf16.msra.mxu0 0
  %1029 = vmatpush.bf16.msra.mxu0 0
  %1030 = vmatpush.bf16.msra.mxu0 0
  %1031 = vmatpush.bf16.msra.mxu0 0
  %1032 = vmatpush.bf16.msra.mxu0 0
  %1033 = vmatpush.bf16.msra.mxu0 %v83
  %1034 = vmatpush.bf16.msra.mxu0 %v82
  %1035 = vmatmul.bf16.gmra.mxu0 %v1009
  %v1036 = vpop.f32.mrf.mxu0
  %v1037 = vadd.f32 0.0, %v1036
  %v1038 = vpop.f32.mrf.mxu0
  %1039 = vdwg.mxu0
  %v1040 = vadd.f32 %v1026, %v1037
  %s1041 = scalar_lea.vmem %s0, 184
  %v1042 = vld [vmem:[%s1041] sm:$0xff]
  %1043 = vmatpush.bf16.msra.mxu0 0
  %1044 = vmatpush.bf16.msra.mxu0 0
  %1045 = vmatpush.bf16.msra.mxu0 0
  %1046 = vmatpush.bf16.msra.mxu0 0
  %1047 = vmatpush.bf16.msra.mxu0 0
  %1048 = vmatpush.bf16.msra.mxu0 0
  %1049 = vmatpush.bf16.msra.mxu0 %v111
  %1050 = vmatpush.bf16.msra.mxu0 %v110
  %1051 = vmatmul.bf16.gmra.mxu0 %v1009
  %v1052 = vpop.f32.mrf.mxu0
  %v1053 = vadd.f32 0.0, %v1052
  %v1054 = vpop.f32.mrf.mxu0
  %1055 = vdwg.mxu0
  %v1056 = vadd.f32 %v1042, %v1053
  %s1057 = scalar_lea.vmem %s0, 248
  %v1058 = vld [vmem:[%s1057] sm:$0xff]
  %1059 = vmatpush.bf16.msra.mxu0 0
  %1060 = vmatpush.bf16.msra.mxu0 0
  %1061 = vmatpush.bf16.msra.mxu0 0
  %1062 = vmatpush.bf16.msra.mxu0 0
  %1063 = vmatpush.bf16.msra.mxu0 0
  %1064 = vmatpush.bf16.msra.mxu0 0
  %1065 = vmatpush.bf16.msra.mxu0 %v139
  %1066 = vmatpush.bf16.msra.mxu0 %v138
  %1067 = vmatmul.bf16.gmra.mxu0 %v1009
  %v1068 = vpop.f32.mrf.mxu0
  %v1069 = vadd.f32 0.0, %v1068
  %v1070 = vpop.f32.mrf.mxu0
  %1071 = vdwg.mxu0
  %v1072 = vadd.f32 %v1058, %v1069
  %v1073 = vxor.u32 %v1024, 2147483648
  %v1074 = vmul.f32 %v1073, 1.442695
  %v1075 = vpow.pop %v1074
  %v1076 = vadd.f32 %v1075, 1.0
  %v1077 = vrcp.pop %v1076
  %v1078 = vmul.f32 %v1076, %v1077
  %v1079 = vsub.f32 1.0, %v1078
  %v1080 = vmul.f32 %v1077, %v1079
  %v1081 = vadd.f32 %v1077, %v1080
  %vm1082 = vweird.f32 %v1076
  %vm1083 = vweird.f32 %v1077
  %vm1084 = vmor %vm1082, %vm1083
  %v1085 = vsel %vm1084, %v1077, %v1081
  %v1086 = vand.u32 2147483647, %v1076
  %vm1087 = vcmp.eq.f32.partialorder %v1086, 8.507059e+37
  %v1088 = vand.u32 %v1076, 2147483648
  %v1089 = vor.u32 1.1754944e-38, %v1088
  %v1090 = vsel %vm1087, %v1089, %v1085
  %v1091 = vmul.f32 1.0, %v1090
  %v1092 = vxor.u32 %v1040, 2147483648
  %v1093 = vmul.f32 %v1092, 1.442695
  %v1094 = vpow.pop %v1093
  %v1095 = vadd.f32 %v1094, 1.0
  %v1096 = vrcp.pop %v1095
  %v1097 = vmul.f32 %v1095, %v1096
  %v1098 = vsub.f32 1.0, %v1097
  %v1099 = vmul.f32 %v1096, %v1098
  %v1100 = vadd.f32 %v1096, %v1099
  %vm1101 = vweird.f32 %v1095
  %vm1102 = vweird.f32 %v1096
  %vm1103 = vmor %vm1101, %vm1102
  %v1104 = vsel %vm1103, %v1096, %v1100
  %v1105 = vand.u32 2147483647, %v1095
  %vm1106 = vcmp.eq.f32.partialorder %v1105, 8.507059e+37
  %v1107 = vand.u32 %v1095, 2147483648
  %v1108 = vor.u32 1.1754944e-38, %v1107
  %v1109 = vsel %vm1106, %v1108, %v1104
  %v1110 = vmul.f32 1.0, %v1109
  %v1111 = vtanh.pop %v1056
  %v1112 = vxor.u32 %v1072, 2147483648
  %v1113 = vmul.f32 %v1112, 1.442695
  %v1114 = vpow.pop %v1113
  %v1115 = vadd.f32 %v1114, 1.0
  %v1116 = vrcp.pop %v1115
  %v1117 = vmul.f32 %v1115, %v1116
  %v1118 = vsub.f32 1.0, %v1117
  %v1119 = vmul.f32 %v1116, %v1118
  %v1120 = vadd.f32 %v1116, %v1119
  %vm1121 = vweird.f32 %v1115
  %vm1122 = vweird.f32 %v1116
  %vm1123 = vmor %vm1121, %vm1122
  %v1124 = vsel %vm1123, %v1116, %v1120
  %v1125 = vand.u32 2147483647, %v1115
  %vm1126 = vcmp.eq.f32.partialorder %v1125, 8.507059e+37
  %v1127 = vand.u32 %v1115, 2147483648
  %v1128 = vor.u32 1.1754944e-38, %v1127
  %v1129 = vsel %vm1126, %v1128, %v1124
  %v1130 = vmul.f32 1.0, %v1129
  %v1131 = vmul.f32 %v1110, %v1002
  %v1132 = vmul.f32 %v1091, %v1111
  %v1133 = vadd.f32 %v1131, %v1132
  %v1134 = vtanh.pop %v1133
  %v1135 = vmul.f32 %v1130, %v1134
  %1136 = vst.msk [vmem:[#allocation2] sm:$0xff] %vm54, %v1135
  %1137 = vst.msk [vmem:[#allocation3] sm:$0xff] %vm54, %v1133
  %1138 = vst.msk [vmem:[%s2] sm:$0xff] %vm54, %v1135
  // Predicated region
  $region14: #{lstm_classifier_head.2} parent=0 // pred_check
    _
  $region15: #{lstm_classifier_head.2} parent=0 // pred_check_branch
    %1140 = sbr.rel (0) target = $region17
  $region16: #{lstm_classifier_head.2} parent=0 // pred_region
    _
  $region17: #{lstm_classifier_head.2} parent=0 // pred_fallthru
    _
  // Predicated region
  $region18: #{lstm_classifier_head.2} parent=0 // pred_check
    _
  $region19: #{lstm_classifier_head.2} parent=0 // pred_check_branch
    %1142 = sbr.rel (0) target = $region21
  $region20: #{lstm_classifier_head.2} parent=0 // pred_region
    _
  $region21: #{lstm_classifier_head.2} parent=0 // pred_fallthru
    _

</llo_original>
